<compile_context>
chip_gen: v6e
topology: v6e:2x2x1
jax: 0.10.0
libtpu: 0.0.40
codegen_flags: <defaults>
</compile_context>

<pallas_src>
import math

import jax
import jax.numpy as jnp
from jax.experimental import pallas as pl
from jax.experimental.pallas import tpu as pltpu

# Problem sizes (small, consistent with the module's forward signature)
N, T, S, E, H, F = 2, 8, 8, 32, 4, 64
D = E // H                      # per-head dim
LN_EPS = 1e-5                   # PyTorch nn.LayerNorm default
NEG = -1e9                      # additive mask value for disallowed positions

# misc-slab row layout (f32, width 64)
_MASK_ROWS = N * T              # rows 0..15: additive masks (N*T, T+S), lanes [:T+S]
_R_BQ_S, _R_BK_S, _R_BV_S, _R_BO_S = 16, 17, 18, 19
_R_BQ_C, _R_BK_C, _R_BV_C, _R_BO_C = 20, 21, 22, 23
_R_B1, _R_B2 = 24, 25
_R_LNG, _R_LNB = 26, 29         # 3 rows each
# w-slab row layout (bf16, width 3*E=96)
#   rows [0:E)      : [Wq_self | Wk_self | Wv_self]   (Wq,bq pre-scaled by 1/sqrt(D))
#   rows [E:2E)     : [Wq_cross| Wk_cross| Wv_cross]
#   rows [2E:3E)    : [Wo_self | Wo_cross| 0]
#   rows [3E:4E)    : [W1 (E,F)| 0]
#   rows [4E:4E+F)  : [W2 (F,E)| 0 | 0]


# ----------------------------------------------------------------------------
# Kernel
# ----------------------------------------------------------------------------
def decoder_block_kernel(x_ref, enc_ref, w_ref, misc_ref, out_ref):
    f32, bf16 = jnp.float32, jnp.bfloat16
    misc = misc_ref[...]                                   # (32, 64) f32

    add_self = misc[0:N * T, 0:T].reshape(N, T, T)         # additive (0 / -1e9) masks
    add_cross = misc[0:N * T, T:T + S].reshape(N, T, S)

    bq_s, bk_s = misc[_R_BQ_S, :E], misc[_R_BK_S, :E]
    bv_s, bo_s = misc[_R_BV_S, :E], misc[_R_BO_S, :E]
    bq_c, bk_c = misc[_R_BQ_C, :E], misc[_R_BK_C, :E]
    bv_c, bo_c = misc[_R_BV_C, :E], misc[_R_BO_C, :E]
    b1, b2 = misc[_R_B1, :F], misc[_R_B2, :E]
    ln_g = misc[_R_LNG:_R_LNG + 3, :E]                     # (3, E)
    ln_b = misc[_R_LNB:_R_LNB + 3, :E]

    def layer_norm(h2d, gamma, beta):                      # h2d: (N*T, E) f32
        mu = jnp.mean(h2d, axis=-1, keepdims=True)
        var = jnp.mean(jnp.square(h2d - mu), axis=-1, keepdims=True)   # biased, like nn.LayerNorm
        return (h2d - mu) * jax.lax.rsqrt(var + LN_EPS) * gamma[None, :] + beta[None, :]

    def attention_core(q2d, k2d, v2d, add_mask, wo_bf, bo):
        """q2d:(N*T,E) k2d/v2d:(N*L,E) f32 (biases already added; 1/sqrt(D) folded into q)."""
        q_bf = q2d.reshape(N, T, E).astype(bf16)           # casts hoisted out of the head loop
        k_bf = k2d.reshape(N, -1, E).astype(bf16)
        v_bf = v2d.reshape(N, -1, E).astype(bf16)
        heads = []
        for h in range(H):                                 # static, unrolled
            sl = slice(h * D, (h + 1) * D)
            s = jnp.einsum('ntd,nsd->nts', q_bf[..., sl], k_bf[..., sl],
                           preferred_element_type=f32) + add_mask
            # softmax without max-subtraction (shift-invariant; -1e9 underflows exp to 0)
            p = jnp.exp(s)
            p = p * pl.reciprocal(jnp.sum(p, axis=-1, keepdims=True), approx=True)
            heads.append(jnp.einsum('nts,nsd->ntd', p.astype(bf16), v_bf[..., sl],
                                    preferred_element_type=f32))
        # fused output projection: lane-concat head outputs, single (N*T,E)@(E,E) matmul
        o2d = jnp.concatenate(heads, axis=-1).reshape(N * T, E).astype(bf16)
        return jnp.dot(o2d, wo_bf, preferred_element_type=f32) + bo[None, :]

    # ---- 1) masked self-attention + residual + layer norm ----
    x2d = x_ref[...].reshape(N * T, E)                     # (16, 32) f32
    qkv = jnp.dot(x2d.astype(bf16), w_ref[0:E, :],         # fused QKV: (16, 96) f32
                  preferred_element_type=f32)
    attn1 = attention_core(qkv[:, 0:E] + bq_s[None, :],
                           qkv[:, E:2 * E] + bk_s[None, :],
                           qkv[:, 2 * E:3 * E] + bv_s[None, :],
                           add_self, w_ref[2 * E:3 * E, 0:E], bo_s)
    x1 = layer_norm(x2d + attn1, ln_g[0], ln_b[0])

    # ---- 2) cross-attention over encoder states + residual + layer norm ----
    enc2d = enc_ref[...].reshape(N * S, E)
    qc = jnp.dot(x1.astype(bf16), w_ref[E:2 * E, 0:E], preferred_element_type=f32)
    kvc = jnp.dot(enc2d.astype(bf16), w_ref[E:2 * E, E:3 * E],      # fused K/V: (16, 64)
                  preferred_element_type=f32)
    attn2 = attention_core(qc + bq_c[None, :],
                           kvc[:, 0:E] + bk_c[None, :],
                           kvc[:, E:2 * E] + bv_c[None, :],
                           add_cross, w_ref[2 * E:3 * E, E:2 * E], bo_c)
    x2 = layer_norm(x1 + attn2, ln_g[1], ln_b[1])

    # ---- 3) position-wise feed-forward (Linear -> ReLU -> Linear) + residual + LN ----
    h1 = jnp.dot(x2.astype(bf16), w_ref[3 * E:4 * E, 0:F],
                 preferred_element_type=f32) + b1[None, :]
    h1 = jnp.maximum(h1, 0.0)
    ff = jnp.dot(h1.astype(bf16), w_ref[4 * E:4 * E + F, 0:E],
                 preferred_element_type=f32) + b2[None, :]
    out_ref[...] = layer_norm(x2 + ff, ln_g[2], ln_b[2]).reshape(N, T, E)


# ----------------------------------------------------------------------------
# Host-side packing + wrapper
# ----------------------------------------------------------------------------
def _pack_inputs(p, future_mask, src_padding_mask):
    """Pack all params into one bf16 weight slab and one f32 misc slab (biases/LN/masks)."""
    f32 = jnp.float32
    inv = 1.0 / math.sqrt(D)                               # fold 1/sqrt(D) into Wq, bq
    ws, wc = p['w_self'], p['w_cross']                     # (4,E,E): [Wq, Wk, Wv, Wo]
    zE = jnp.zeros((E, E), f32)
    w_slab = jnp.concatenate([
        jnp.concatenate([ws[0] * inv, ws[1], ws[2]], axis=1),          # (E, 3E)
        jnp.concatenate([wc[0] * inv, wc[1], wc[2]], axis=1),          # (E, 3E)
        jnp.concatenate([ws[3], wc[3], zE], axis=1),                   # (E, 3E)
        jnp.concatenate([p['w1'], zE], axis=1),                        # (E, F+E) = (E, 3E)
        jnp.concatenate([p['w2'], jnp.zeros((F, 2 * E), f32)], axis=1) # (F, 3E)
    ], axis=0).astype(jnp.bfloat16)                                    # (4E+F, 3E) = (192, 96)

    # additive masks precomputed at full broadcast shape (0 keep / -1e9 drop)
    add_self = jnp.broadcast_to(((1.0 - future_mask) * NEG)[None, :, :], (N, T, T))
    add_cross = jnp.broadcast_to(((1.0 - src_padding_mask) * NEG)[:, None, :], (N, T, S))
    masks = jnp.concatenate([add_self, add_cross], axis=-1).reshape(N * T, T + S)
    mask_rows = jnp.zeros((N * T, 2 * E), f32).at[:, :T + S].set(masks)

    def row(v):
        return jnp.zeros((2 * E,), f32).at[:v.shape[0]].set(v)

    bias_rows = jnp.stack([
        row(p['b_self'][0] * inv), row(p['b_self'][1]), row(p['b_self'][2]), row(p['b_self'][3]),
        row(p['b_cross'][0] * inv), row(p['b_cross'][1]), row(p['b_cross'][2]), row(p['b_cross'][3]),
        row(p['b1']), row(p['b2']),
        row(p['ln_g'][0]), row(p['ln_g'][1]), row(p['ln_g'][2]),
        row(p['ln_b'][0]), row(p['ln_b'][1]), row(p['ln_b'][2]),
    ])
    misc_slab = jnp.concatenate([mask_rows, bias_rows], axis=0)        # (32, 64) f32
    return w_slab, misc_slab


def transformer_decoder_block(x, enc, future_mask, src_padding_mask, p):
    w_slab, misc_slab = _pack_inputs(p, future_mask, src_padding_mask)
    inputs = (x, enc, w_slab, misc_slab)                   # 4 input DMAs (was 7)
    return pl.pallas_call(
        decoder_block_kernel,
        out_shape=jax.ShapeDtypeStruct(x.shape, jnp.float32),
        in_specs=[pl.BlockSpec(memory_space=pltpu.MemorySpace.VMEM) for _ in inputs],
        out_specs=pl.BlockSpec(memory_space=pltpu.MemorySpace.VMEM),
    )(*inputs)


# ----------------------------------------------------------------------------
# Parameters, independent pure-JAX reference, test
# ----------------------------------------------------------------------------
def init_params(key):
    ks = jax.random.split(key, 10)

    def xavier(k, shape):
        fan_in, fan_out = shape[-2], shape[-1]
        limit = math.sqrt(6.0 / (fan_in + fan_out))
        return jax.random.uniform(k, shape, jnp.float32, -limit, limit)

    return dict(
        w_self=xavier(ks[0], (4, E, E)),    # stacked [Wq, Wk, Wv, Wo]
        b_self=0.02 * jax.random.normal(ks[1], (4, E), jnp.float32),
        w_cross=xavier(ks[2], (4, E, E)),
        b_cross=0.02 * jax.random.normal(ks[3], (4, E), jnp.float32),
        w1=xavier(ks[4], (E, F)),
        b1=0.02 * jax.random.normal(ks[5], (F,), jnp.float32),
        w2=xavier(ks[6], (F, E)),
        b2=0.02 * jax.random.normal(ks[7], (E,), jnp.float32),
        ln_g=1.0 + 0.05 * jax.random.normal(ks[8], (3, E), jnp.float32),
        ln_b=0.05 * jax.random.normal(ks[9], (3, E), jnp.float32),
    )


def reference(x, enc, future_mask, src_padding_mask, p):
    """Independent pure-JAX reference: full-matrix MHA, boolean masking, exact f32 softmax."""
    def mha(q_in, kv_in, w, b, mask):
        n, lq, _ = q_in.shape
        lk = kv_in.shape[1]
        q = q_in @ w[0] + b[0]
        k = kv_in @ w[1] + b[1]
        v = kv_in @ w[2] + b[2]
        qh = q.reshape(n, lq, H, D).transpose(0, 2, 1, 3)
        kh = k.reshape(n, lk, H, D).transpose(0, 2, 1, 3)
        vh = v.reshape(n, lk, H, D).transpose(0, 2, 1, 3)
        s = jnp.einsum('nhtd,nhsd->nhts', qh, kh) / math.sqrt(D)
        s = jnp.where(mask[:, None, :, :] > 0.0, s, -1e9)
        a = jax.nn.softmax(s, axis=-1)
        o = jnp.einsum('nhts,nhsd->nhtd', a, vh)
        o = o.transpose(0, 2, 1, 3).reshape(n, lq, E)
        return o @ w[3] + b[3]

    def ln(h, g, bta):
        mu = h.mean(-1, keepdims=True)
        var = ((h - mu) ** 2).mean(-1, keepdims=True)
        return (h - mu) / jnp.sqrt(var + LN_EPS) * g + bta

    a1 = mha(x, x, p['w_self'], p['b_self'],
             jnp.broadcast_to(future_mask[None], (N, T, T)))
    x1 = ln(x + a1, p['ln_g'][0], p['ln_b'][0])
    a2 = mha(x1, enc, p['w_cross'], p['b_cross'],
             jnp.broadcast_to(src_padding_mask[:, None, :], (N, T, S)))
    x2 = ln(x1 + a2, p['ln_g'][1], p['ln_b'][1])
    hmid = jax.nn.relu(x2 @ p['w1'] + p['b1'])
    ff = hmid @ p['w2'] + p['b2']
    return ln(x2 + ff, p['ln_g'][2], p['ln_b'][2])


if __name__ == "__main__":
    key = jax.random.PRNGKey(0)
    kx, ke, kp = jax.random.split(key, 3)

    x = jax.random.normal(kx, (N, T, E), jnp.float32)
    enc = jax.random.normal(ke, (N, S, E), jnp.float32)
    # causal future mask (T, T): 1.0 on/below diagonal
    future_mask = jnp.tril(jnp.ones((T, T), jnp.float32))
    # source padding mask (N, S): batch 1 has its last two tokens padded
    src_padding_mask = jnp.ones((N, S), jnp.float32).at[1, S - 2:].set(0.0)

    params = init_params(kp)

    out = transformer_decoder_block(x, enc, future_mask, src_padding_mask, params)
    out = jax.block_until_ready(out)

    ref = reference(x, enc, future_mask, src_padding_mask, params)
    assert out.shape == (N, T, E)
    assert jnp.allclose(out, ref, atol=5e-2, rtol=5e-2), "Pallas kernel disagrees with JAX reference"

    print("KERNEL_OK")
</pallas_src>

<mosaic_0001>
module attributes {stable_mosaic.version = 11 : i64} {
  func.func @decoder_block_kernel(%arg0: memref<2x8x32xf32, #tpu.memory_space<vmem>>, %arg1: memref<2x8x32xf32, #tpu.memory_space<vmem>>, %arg2: memref<192x96xbf16, #tpu.memory_space<vmem>>, %arg3: memref<32x64xf32, #tpu.memory_space<vmem>>, %arg4: memref<2x8x32xf32, #tpu.memory_space<vmem>>) attributes {dimension_semantics = [], scalar_prefetch = 0 : i64, scratch_operands = 0 : i64, tpu.core_type = #tpu.core_type<tc>} {
    %c0 = arith.constant 0 : index
    %c0_0 = arith.constant 0 : index
    %0 = vector.load %arg3[%c0, %c0_0] : memref<32x64xf32, #tpu.memory_space<vmem>>, vector<32x64xf32>
    %1 = vector.extract_strided_slice %0 {offsets = [0, 0], sizes = [16, 8], strides = [1, 1]} : vector<32x64xf32> to vector<16x8xf32>
    %2 = vector.shape_cast %1 : vector<16x8xf32> to vector<2x8x8xf32>
    %3 = vector.extract_strided_slice %0 {offsets = [0, 8], sizes = [16, 8], strides = [1, 1]} : vector<32x64xf32> to vector<16x8xf32>
    %4 = vector.shape_cast %3 : vector<16x8xf32> to vector<2x8x8xf32>
    %5 = vector.extract_strided_slice %0 {offsets = [16, 0], sizes = [1, 32], strides = [1, 1]} : vector<32x64xf32> to vector<1x32xf32>
    %6 = vector.shape_cast %5 : vector<1x32xf32> to vector<32xf32>
    %7 = vector.extract_strided_slice %0 {offsets = [17, 0], sizes = [1, 32], strides = [1, 1]} : vector<32x64xf32> to vector<1x32xf32>
    %8 = vector.shape_cast %7 : vector<1x32xf32> to vector<32xf32>
    %9 = vector.extract_strided_slice %0 {offsets = [18, 0], sizes = [1, 32], strides = [1, 1]} : vector<32x64xf32> to vector<1x32xf32>
    %10 = vector.shape_cast %9 : vector<1x32xf32> to vector<32xf32>
    %11 = vector.extract_strided_slice %0 {offsets = [19, 0], sizes = [1, 32], strides = [1, 1]} : vector<32x64xf32> to vector<1x32xf32>
    %12 = vector.shape_cast %11 : vector<1x32xf32> to vector<32xf32>
    %13 = vector.extract_strided_slice %0 {offsets = [20, 0], sizes = [1, 32], strides = [1, 1]} : vector<32x64xf32> to vector<1x32xf32>
    %14 = vector.shape_cast %13 : vector<1x32xf32> to vector<32xf32>
    %15 = vector.extract_strided_slice %0 {offsets = [21, 0], sizes = [1, 32], strides = [1, 1]} : vector<32x64xf32> to vector<1x32xf32>
    %16 = vector.shape_cast %15 : vector<1x32xf32> to vector<32xf32>
    %17 = vector.extract_strided_slice %0 {offsets = [22, 0], sizes = [1, 32], strides = [1, 1]} : vector<32x64xf32> to vector<1x32xf32>
    %18 = vector.shape_cast %17 : vector<1x32xf32> to vector<32xf32>
    %19 = vector.extract_strided_slice %0 {offsets = [23, 0], sizes = [1, 32], strides = [1, 1]} : vector<32x64xf32> to vector<1x32xf32>
    %20 = vector.shape_cast %19 : vector<1x32xf32> to vector<32xf32>
    %21 = vector.extract_strided_slice %0 {offsets = [24, 0], sizes = [1, 64], strides = [1, 1]} : vector<32x64xf32> to vector<1x64xf32>
    %22 = vector.shape_cast %21 : vector<1x64xf32> to vector<64xf32>
    %23 = vector.extract_strided_slice %0 {offsets = [25, 0], sizes = [1, 32], strides = [1, 1]} : vector<32x64xf32> to vector<1x32xf32>
    %24 = vector.shape_cast %23 : vector<1x32xf32> to vector<32xf32>
    %25 = vector.extract_strided_slice %0 {offsets = [26, 0], sizes = [3, 32], strides = [1, 1]} : vector<32x64xf32> to vector<3x32xf32>
    %26 = vector.extract_strided_slice %0 {offsets = [29, 0], sizes = [3, 32], strides = [1, 1]} : vector<32x64xf32> to vector<3x32xf32>
    %c0_1 = arith.constant 0 : index
    %c0_2 = arith.constant 0 : index
    %c0_3 = arith.constant 0 : index
    %27 = vector.load %arg0[%c0_1, %c0_2, %c0_3] : memref<2x8x32xf32, #tpu.memory_space<vmem>>, vector<2x8x32xf32>
    %28 = vector.shape_cast %27 : vector<2x8x32xf32> to vector<16x32xf32>
    %29 = arith.truncf %28 : vector<16x32xf32> to vector<16x32xbf16>
    %c0_4 = arith.constant 0 : index
    %c0_5 = arith.constant 0 : index
    %30 = vector.load %arg2[%c0_4, %c0_5] : memref<192x96xbf16, #tpu.memory_space<vmem>>, vector<32x96xbf16>
    %cst = arith.constant dense<0.000000e+00> : vector<16x96xf32>
    %31 = tpu.matmul %29, %30, %cst {dimension_numbers = #tpu.dot_dimension_numbers<[1], [0], [0], [1], [0, 0, 1, 1], [], []>} : vector<16x32xbf16>, vector<32x96xbf16>, vector<16x96xf32> -> vector<16x96xf32>
    %32 = vector.extract_strided_slice %31 {offsets = [0, 0], sizes = [16, 32], strides = [1, 1]} : vector<16x96xf32> to vector<16x32xf32>
    %33 = vector.shape_cast %6 : vector<32xf32> to vector<1x32xf32>
    %34 = vector.broadcast %33 : vector<1x32xf32> to vector<16x32xf32>
    %35 = arith.addf %32, %34 : vector<16x32xf32>
    %36 = vector.extract_strided_slice %31 {offsets = [0, 32], sizes = [16, 32], strides = [1, 1]} : vector<16x96xf32> to vector<16x32xf32>
    %37 = vector.shape_cast %8 : vector<32xf32> to vector<1x32xf32>
    %38 = vector.broadcast %37 : vector<1x32xf32> to vector<16x32xf32>
    %39 = arith.addf %36, %38 : vector<16x32xf32>
    %40 = vector.extract_strided_slice %31 {offsets = [0, 64], sizes = [16, 32], strides = [1, 1]} : vector<16x96xf32> to vector<16x32xf32>
    %41 = vector.shape_cast %10 : vector<32xf32> to vector<1x32xf32>
    %42 = vector.broadcast %41 : vector<1x32xf32> to vector<16x32xf32>
    %43 = arith.addf %40, %42 : vector<16x32xf32>
    %c64 = arith.constant 64 : index
    %c0_6 = arith.constant 0 : index
    %44 = vector.load %arg2[%c64, %c0_6] : memref<192x96xbf16, #tpu.memory_space<vmem>>, vector<32x32xbf16>
    %45 = vector.shape_cast %35 : vector<16x32xf32> to vector<2x8x32xf32>
    %46 = arith.truncf %45 : vector<2x8x32xf32> to vector<2x8x32xbf16>
    %47 = vector.shape_cast %39 : vector<16x32xf32> to vector<2x8x32xf32>
    %48 = arith.truncf %47 : vector<2x8x32xf32> to vector<2x8x32xbf16>
    %49 = vector.shape_cast %43 : vector<16x32xf32> to vector<2x8x32xf32>
    %50 = arith.truncf %49 : vector<2x8x32xf32> to vector<2x8x32xbf16>
    %51 = vector.extract_strided_slice %46 {offsets = [0, 0, 0], sizes = [2, 8, 8], strides = [1, 1, 1]} : vector<2x8x32xbf16> to vector<2x8x8xbf16>
    %52 = vector.extract_strided_slice %48 {offsets = [0, 0, 0], sizes = [2, 8, 8], strides = [1, 1, 1]} : vector<2x8x32xbf16> to vector<2x8x8xbf16>
    "tpu.trace_start"() <{level = 10 : i32, message = "ntd,nsd->nts"}> : () -> ()
    %cst_7 = arith.constant dense<0.000000e+00> : vector<2x8x8xf32>
    %53 = tpu.matmul %51, %52, %cst_7 {dimension_numbers = #tpu.dot_dimension_numbers<[2], [2], [1], [1], [0, 0, 0, 1, 1, 1], [0], [0]>} : vector<2x8x8xbf16>, vector<2x8x8xbf16>, vector<2x8x8xf32> -> vector<2x8x8xf32>
    "tpu.trace_stop"() : () -> ()
    %54 = arith.addf %53, %2 : vector<2x8x8xf32>
    %55 = math.exp %54 : vector<2x8x8xf32>
    %cst_8 = arith.constant dense<0.000000e+00> : vector<2x8xf32>
    %56 = vector.multi_reduction <add>, %55, %cst_8 [2] : vector<2x8x8xf32> to vector<2x8xf32>
    %57 = vector.shape_cast %56 : vector<2x8xf32> to vector<2x8x1xf32>
    %58 = tpu.reciprocal %57 {approx = true} : vector<2x8x1xf32> -> vector<2x8x1xf32>
    %59 = vector.broadcast %58 : vector<2x8x1xf32> to vector<2x8x8xf32>
    %60 = arith.mulf %55, %59 : vector<2x8x8xf32>
    %61 = arith.truncf %60 : vector<2x8x8xf32> to vector<2x8x8xbf16>
    %62 = vector.extract_strided_slice %50 {offsets = [0, 0, 0], sizes = [2, 8, 8], strides = [1, 1, 1]} : vector<2x8x32xbf16> to vector<2x8x8xbf16>
    "tpu.trace_start"() <{level = 10 : i32, message = "nts,nsd->ntd"}> : () -> ()
    %cst_9 = arith.constant dense<0.000000e+00> : vector<2x8x8xf32>
    %63 = tpu.matmul %61, %62, %cst_9 {dimension_numbers = #tpu.dot_dimension_numbers<[2], [1], [1], [2], [0, 0, 0, 1, 1, 2], [0], [0]>} : vector<2x8x8xbf16>, vector<2x8x8xbf16>, vector<2x8x8xf32> -> vector<2x8x8xf32>
    "tpu.trace_stop"() : () -> ()
    %64 = vector.extract_strided_slice %46 {offsets = [0, 0, 8], sizes = [2, 8, 8], strides = [1, 1, 1]} : vector<2x8x32xbf16> to vector<2x8x8xbf16>
    %65 = vector.extract_strided_slice %48 {offsets = [0, 0, 8], sizes = [2, 8, 8], strides = [1, 1, 1]} : vector<2x8x32xbf16> to vector<2x8x8xbf16>
    "tpu.trace_start"() <{level = 10 : i32, message = "ntd,nsd->nts"}> : () -> ()
    %cst_10 = arith.constant dense<0.000000e+00> : vector<2x8x8xf32>
    %66 = tpu.matmul %64, %65, %cst_10 {dimension_numbers = #tpu.dot_dimension_numbers<[2], [2], [1], [1], [0, 0, 0, 1, 1, 1], [0], [0]>} : vector<2x8x8xbf16>, vector<2x8x8xbf16>, vector<2x8x8xf32> -> vector<2x8x8xf32>
    "tpu.trace_stop"() : () -> ()
    %67 = arith.addf %66, %2 : vector<2x8x8xf32>
    %68 = math.exp %67 : vector<2x8x8xf32>
    %cst_11 = arith.constant dense<0.000000e+00> : vector<2x8xf32>
    %69 = vector.multi_reduction <add>, %68, %cst_11 [2] : vector<2x8x8xf32> to vector<2x8xf32>
    %70 = vector.shape_cast %69 : vector<2x8xf32> to vector<2x8x1xf32>
    %71 = tpu.reciprocal %70 {approx = true} : vector<2x8x1xf32> -> vector<2x8x1xf32>
    %72 = vector.broadcast %71 : vector<2x8x1xf32> to vector<2x8x8xf32>
    %73 = arith.mulf %68, %72 : vector<2x8x8xf32>
    %74 = arith.truncf %73 : vector<2x8x8xf32> to vector<2x8x8xbf16>
    %75 = vector.extract_strided_slice %50 {offsets = [0, 0, 8], sizes = [2, 8, 8], strides = [1, 1, 1]} : vector<2x8x32xbf16> to vector<2x8x8xbf16>
    "tpu.trace_start"() <{level = 10 : i32, message = "nts,nsd->ntd"}> : () -> ()
    %cst_12 = arith.constant dense<0.000000e+00> : vector<2x8x8xf32>
    %76 = tpu.matmul %74, %75, %cst_12 {dimension_numbers = #tpu.dot_dimension_numbers<[2], [1], [1], [2], [0, 0, 0, 1, 1, 2], [0], [0]>} : vector<2x8x8xbf16>, vector<2x8x8xbf16>, vector<2x8x8xf32> -> vector<2x8x8xf32>
    "tpu.trace_stop"() : () -> ()
    %77 = vector.extract_strided_slice %46 {offsets = [0, 0, 16], sizes = [2, 8, 8], strides = [1, 1, 1]} : vector<2x8x32xbf16> to vector<2x8x8xbf16>
    %78 = vector.extract_strided_slice %48 {offsets = [0, 0, 16], sizes = [2, 8, 8], strides = [1, 1, 1]} : vector<2x8x32xbf16> to vector<2x8x8xbf16>
    "tpu.trace_start"() <{level = 10 : i32, message = "ntd,nsd->nts"}> : () -> ()
    %cst_13 = arith.constant dense<0.000000e+00> : vector<2x8x8xf32>
    %79 = tpu.matmul %77, %78, %cst_13 {dimension_numbers = #tpu.dot_dimension_numbers<[2], [2], [1], [1], [0, 0, 0, 1, 1, 1], [0], [0]>} : vector<2x8x8xbf16>, vector<2x8x8xbf16>, vector<2x8x8xf32> -> vector<2x8x8xf32>
    "tpu.trace_stop"() : () -> ()
    %80 = arith.addf %79, %2 : vector<2x8x8xf32>
    %81 = math.exp %80 : vector<2x8x8xf32>
    %cst_14 = arith.constant dense<0.000000e+00> : vector<2x8xf32>
    %82 = vector.multi_reduction <add>, %81, %cst_14 [2] : vector<2x8x8xf32> to vector<2x8xf32>
    %83 = vector.shape_cast %82 : vector<2x8xf32> to vector<2x8x1xf32>
    %84 = tpu.reciprocal %83 {approx = true} : vector<2x8x1xf32> -> vector<2x8x1xf32>
    %85 = vector.broadcast %84 : vector<2x8x1xf32> to vector<2x8x8xf32>
    %86 = arith.mulf %81, %85 : vector<2x8x8xf32>
    %87 = arith.truncf %86 : vector<2x8x8xf32> to vector<2x8x8xbf16>
    %88 = vector.extract_strided_slice %50 {offsets = [0, 0, 16], sizes = [2, 8, 8], strides = [1, 1, 1]} : vector<2x8x32xbf16> to vector<2x8x8xbf16>
    "tpu.trace_start"() <{level = 10 : i32, message = "nts,nsd->ntd"}> : () -> ()
    %cst_15 = arith.constant dense<0.000000e+00> : vector<2x8x8xf32>
    %89 = tpu.matmul %87, %88, %cst_15 {dimension_numbers = #tpu.dot_dimension_numbers<[2], [1], [1], [2], [0, 0, 0, 1, 1, 2], [0], [0]>} : vector<2x8x8xbf16>, vector<2x8x8xbf16>, vector<2x8x8xf32> -> vector<2x8x8xf32>
    "tpu.trace_stop"() : () -> ()
    %90 = vector.extract_strided_slice %46 {offsets = [0, 0, 24], sizes = [2, 8, 8], strides = [1, 1, 1]} : vector<2x8x32xbf16> to vector<2x8x8xbf16>
    %91 = vector.extract_strided_slice %48 {offsets = [0, 0, 24], sizes = [2, 8, 8], strides = [1, 1, 1]} : vector<2x8x32xbf16> to vector<2x8x8xbf16>
    "tpu.trace_start"() <{level = 10 : i32, message = "ntd,nsd->nts"}> : () -> ()
    %cst_16 = arith.constant dense<0.000000e+00> : vector<2x8x8xf32>
    %92 = tpu.matmul %90, %91, %cst_16 {dimension_numbers = #tpu.dot_dimension_numbers<[2], [2], [1], [1], [0, 0, 0, 1, 1, 1], [0], [0]>} : vector<2x8x8xbf16>, vector<2x8x8xbf16>, vector<2x8x8xf32> -> vector<2x8x8xf32>
    "tpu.trace_stop"() : () -> ()
    %93 = arith.addf %92, %2 : vector<2x8x8xf32>
    %94 = math.exp %93 : vector<2x8x8xf32>
    %cst_17 = arith.constant dense<0.000000e+00> : vector<2x8xf32>
    %95 = vector.multi_reduction <add>, %94, %cst_17 [2] : vector<2x8x8xf32> to vector<2x8xf32>
    %96 = vector.shape_cast %95 : vector<2x8xf32> to vector<2x8x1xf32>
    %97 = tpu.reciprocal %96 {approx = true} : vector<2x8x1xf32> -> vector<2x8x1xf32>
    %98 = vector.broadcast %97 : vector<2x8x1xf32> to vector<2x8x8xf32>
    %99 = arith.mulf %94, %98 : vector<2x8x8xf32>
    %100 = arith.truncf %99 : vector<2x8x8xf32> to vector<2x8x8xbf16>
    %101 = vector.extract_strided_slice %50 {offsets = [0, 0, 24], sizes = [2, 8, 8], strides = [1, 1, 1]} : vector<2x8x32xbf16> to vector<2x8x8xbf16>
    "tpu.trace_start"() <{level = 10 : i32, message = "nts,nsd->ntd"}> : () -> ()
    %cst_18 = arith.constant dense<0.000000e+00> : vector<2x8x8xf32>
    %102 = tpu.matmul %100, %101, %cst_18 {dimension_numbers = #tpu.dot_dimension_numbers<[2], [1], [1], [2], [0, 0, 0, 1, 1, 2], [0], [0]>} : vector<2x8x8xbf16>, vector<2x8x8xbf16>, vector<2x8x8xf32> -> vector<2x8x8xf32>
    "tpu.trace_stop"() : () -> ()
    %103 = tpu.concatenate %63, %76, %89, %102 in 2 : vector<2x8x8xf32>, vector<2x8x8xf32>, vector<2x8x8xf32>, vector<2x8x8xf32> -> vector<2x8x32xf32>
    %104 = vector.shape_cast %103 : vector<2x8x32xf32> to vector<16x32xf32>
    %105 = arith.truncf %104 : vector<16x32xf32> to vector<16x32xbf16>
    %cst_19 = arith.constant dense<0.000000e+00> : vector<16x32xf32>
    %106 = tpu.matmul %105, %44, %cst_19 {dimension_numbers = #tpu.dot_dimension_numbers<[1], [0], [0], [1], [0, 0, 1, 1], [], []>} : vector<16x32xbf16>, vector<32x32xbf16>, vector<16x32xf32> -> vector<16x32xf32>
    %107 = vector.shape_cast %12 : vector<32xf32> to vector<1x32xf32>
    %108 = vector.broadcast %107 : vector<1x32xf32> to vector<16x32xf32>
    %109 = arith.addf %106, %108 : vector<16x32xf32>
    %110 = arith.addf %28, %109 : vector<16x32xf32>
    %111 = vector.extract_strided_slice %25 {offsets = [0, 0], sizes = [1, 32], strides = [1, 1]} : vector<3x32xf32> to vector<1x32xf32>
    %112 = vector.shape_cast %111 : vector<1x32xf32> to vector<32xf32>
    %113 = vector.extract_strided_slice %26 {offsets = [0, 0], sizes = [1, 32], strides = [1, 1]} : vector<3x32xf32> to vector<1x32xf32>
    %114 = vector.shape_cast %113 : vector<1x32xf32> to vector<32xf32>
    %cst_20 = arith.constant dense<0.000000e+00> : vector<16xf32>
    %115 = vector.multi_reduction <add>, %110, %cst_20 [1] : vector<16x32xf32> to vector<16xf32>
    %116 = vector.shape_cast %115 : vector<16xf32> to vector<16x1xf32>
    %cst_21 = arith.constant 3.200000e+01 : f32
    %117 = vector.broadcast %cst_21 : f32 to vector<16x1xf32>
    %118 = arith.divf %116, %117 : vector<16x1xf32>
    %119 = vector.broadcast %118 : vector<16x1xf32> to vector<16x32xf32>
    %120 = arith.subf %110, %119 : vector<16x32xf32>
    %121 = arith.mulf %120, %120 : vector<16x32xf32>
    %cst_22 = arith.constant dense<0.000000e+00> : vector<16xf32>
    %122 = vector.multi_reduction <add>, %121, %cst_22 [1] : vector<16x32xf32> to vector<16xf32>
    %123 = vector.shape_cast %122 : vector<16xf32> to vector<16x1xf32>
    %cst_23 = arith.constant 3.200000e+01 : f32
    %124 = vector.broadcast %cst_23 : f32 to vector<16x1xf32>
    %125 = arith.divf %123, %124 : vector<16x1xf32>
    %126 = vector.broadcast %118 : vector<16x1xf32> to vector<16x32xf32>
    %127 = arith.subf %110, %126 : vector<16x32xf32>
    %cst_24 = arith.constant 9.99999974E-6 : f32
    %128 = vector.broadcast %cst_24 : f32 to vector<16x1xf32>
    %129 = arith.addf %125, %128 : vector<16x1xf32>
    %130 = math.rsqrt %129 : vector<16x1xf32>
    %131 = vector.broadcast %130 : vector<16x1xf32> to vector<16x32xf32>
    %132 = arith.mulf %127, %131 : vector<16x32xf32>
    %133 = vector.shape_cast %112 : vector<32xf32> to vector<1x32xf32>
    %134 = vector.broadcast %133 : vector<1x32xf32> to vector<16x32xf32>
    %135 = arith.mulf %132, %134 : vector<16x32xf32>
    %136 = vector.shape_cast %114 : vector<32xf32> to vector<1x32xf32>
    %137 = vector.broadcast %136 : vector<1x32xf32> to vector<16x32xf32>
    %138 = arith.addf %135, %137 : vector<16x32xf32>
    %c0_25 = arith.constant 0 : index
    %c0_26 = arith.constant 0 : index
    %c0_27 = arith.constant 0 : index
    %139 = vector.load %arg1[%c0_25, %c0_26, %c0_27] : memref<2x8x32xf32, #tpu.memory_space<vmem>>, vector<2x8x32xf32>
    %140 = vector.shape_cast %139 : vector<2x8x32xf32> to vector<16x32xf32>
    %141 = arith.truncf %138 : vector<16x32xf32> to vector<16x32xbf16>
    %c32 = arith.constant 32 : index
    %c0_28 = arith.constant 0 : index
    %142 = vector.load %arg2[%c32, %c0_28] : memref<192x96xbf16, #tpu.memory_space<vmem>>, vector<32x32xbf16>
    %cst_29 = arith.constant dense<0.000000e+00> : vector<16x32xf32>
    %143 = tpu.matmul %141, %142, %cst_29 {dimension_numbers = #tpu.dot_dimension_numbers<[1], [0], [0], [1], [0, 0, 1, 1], [], []>} : vector<16x32xbf16>, vector<32x32xbf16>, vector<16x32xf32> -> vector<16x32xf32>
    %144 = arith.truncf %140 : vector<16x32xf32> to vector<16x32xbf16>
    %c32_30 = arith.constant 32 : index
    %c32_31 = arith.constant 32 : index
    %145 = vector.load %arg2[%c32_30, %c32_31] : memref<192x96xbf16, #tpu.memory_space<vmem>>, vector<32x64xbf16>
    %cst_32 = arith.constant dense<0.000000e+00> : vector<16x64xf32>
    %146 = tpu.matmul %144, %145, %cst_32 {dimension_numbers = #tpu.dot_dimension_numbers<[1], [0], [0], [1], [0, 0, 1, 1], [], []>} : vector<16x32xbf16>, vector<32x64xbf16>, vector<16x64xf32> -> vector<16x64xf32>
    %147 = vector.shape_cast %14 : vector<32xf32> to vector<1x32xf32>
    %148 = vector.broadcast %147 : vector<1x32xf32> to vector<16x32xf32>
    %149 = arith.addf %143, %148 : vector<16x32xf32>
    %150 = vector.extract_strided_slice %146 {offsets = [0, 0], sizes = [16, 32], strides = [1, 1]} : vector<16x64xf32> to vector<16x32xf32>
    %151 = vector.shape_cast %16 : vector<32xf32> to vector<1x32xf32>
    %152 = vector.broadcast %151 : vector<1x32xf32> to vector<16x32xf32>
    %153 = arith.addf %150, %152 : vector<16x32xf32>
    %154 = vector.extract_strided_slice %146 {offsets = [0, 32], sizes = [16, 32], strides = [1, 1]} : vector<16x64xf32> to vector<16x32xf32>
    %155 = vector.shape_cast %18 : vector<32xf32> to vector<1x32xf32>
    %156 = vector.broadcast %155 : vector<1x32xf32> to vector<16x32xf32>
    %157 = arith.addf %154, %156 : vector<16x32xf32>
    %c64_33 = arith.constant 64 : index
    %c32_34 = arith.constant 32 : index
    %158 = vector.load %arg2[%c64_33, %c32_34] : memref<192x96xbf16, #tpu.memory_space<vmem>>, vector<32x32xbf16>
    %159 = vector.shape_cast %149 : vector<16x32xf32> to vector<2x8x32xf32>
    %160 = arith.truncf %159 : vector<2x8x32xf32> to vector<2x8x32xbf16>
    %161 = vector.shape_cast %153 : vector<16x32xf32> to vector<2x8x32xf32>
    %162 = arith.truncf %161 : vector<2x8x32xf32> to vector<2x8x32xbf16>
    %163 = vector.shape_cast %157 : vector<16x32xf32> to vector<2x8x32xf32>
    %164 = arith.truncf %163 : vector<2x8x32xf32> to vector<2x8x32xbf16>
    %165 = vector.extract_strided_slice %160 {offsets = [0, 0, 0], sizes = [2, 8, 8], strides = [1, 1, 1]} : vector<2x8x32xbf16> to vector<2x8x8xbf16>
    %166 = vector.extract_strided_slice %162 {offsets = [0, 0, 0], sizes = [2, 8, 8], strides = [1, 1, 1]} : vector<2x8x32xbf16> to vector<2x8x8xbf16>
    "tpu.trace_start"() <{level = 10 : i32, message = "ntd,nsd->nts"}> : () -> ()
    %cst_35 = arith.constant dense<0.000000e+00> : vector<2x8x8xf32>
    %167 = tpu.matmul %165, %166, %cst_35 {dimension_numbers = #tpu.dot_dimension_numbers<[2], [2], [1], [1], [0, 0, 0, 1, 1, 1], [0], [0]>} : vector<2x8x8xbf16>, vector<2x8x8xbf16>, vector<2x8x8xf32> -> vector<2x8x8xf32>
    "tpu.trace_stop"() : () -> ()
    %168 = arith.addf %167, %4 : vector<2x8x8xf32>
    %169 = math.exp %168 : vector<2x8x8xf32>
    %cst_36 = arith.constant dense<0.000000e+00> : vector<2x8xf32>
    %170 = vector.multi_reduction <add>, %169, %cst_36 [2] : vector<2x8x8xf32> to vector<2x8xf32>
    %171 = vector.shape_cast %170 : vector<2x8xf32> to vector<2x8x1xf32>
    %172 = tpu.reciprocal %171 {approx = true} : vector<2x8x1xf32> -> vector<2x8x1xf32>
    %173 = vector.broadcast %172 : vector<2x8x1xf32> to vector<2x8x8xf32>
    %174 = arith.mulf %169, %173 : vector<2x8x8xf32>
    %175 = arith.truncf %174 : vector<2x8x8xf32> to vector<2x8x8xbf16>
    %176 = vector.extract_strided_slice %164 {offsets = [0, 0, 0], sizes = [2, 8, 8], strides = [1, 1, 1]} : vector<2x8x32xbf16> to vector<2x8x8xbf16>
    "tpu.trace_start"() <{level = 10 : i32, message = "nts,nsd->ntd"}> : () -> ()
    %cst_37 = arith.constant dense<0.000000e+00> : vector<2x8x8xf32>
    %177 = tpu.matmul %175, %176, %cst_37 {dimension_numbers = #tpu.dot_dimension_numbers<[2], [1], [1], [2], [0, 0, 0, 1, 1, 2], [0], [0]>} : vector<2x8x8xbf16>, vector<2x8x8xbf16>, vector<2x8x8xf32> -> vector<2x8x8xf32>
    "tpu.trace_stop"() : () -> ()
    %178 = vector.extract_strided_slice %160 {offsets = [0, 0, 8], sizes = [2, 8, 8], strides = [1, 1, 1]} : vector<2x8x32xbf16> to vector<2x8x8xbf16>
    %179 = vector.extract_strided_slice %162 {offsets = [0, 0, 8], sizes = [2, 8, 8], strides = [1, 1, 1]} : vector<2x8x32xbf16> to vector<2x8x8xbf16>
    "tpu.trace_start"() <{level = 10 : i32, message = "ntd,nsd->nts"}> : () -> ()
    %cst_38 = arith.constant dense<0.000000e+00> : vector<2x8x8xf32>
    %180 = tpu.matmul %178, %179, %cst_38 {dimension_numbers = #tpu.dot_dimension_numbers<[2], [2], [1], [1], [0, 0, 0, 1, 1, 1], [0], [0]>} : vector<2x8x8xbf16>, vector<2x8x8xbf16>, vector<2x8x8xf32> -> vector<2x8x8xf32>
    "tpu.trace_stop"() : () -> ()
    %181 = arith.addf %180, %4 : vector<2x8x8xf32>
    %182 = math.exp %181 : vector<2x8x8xf32>
    %cst_39 = arith.constant dense<0.000000e+00> : vector<2x8xf32>
    %183 = vector.multi_reduction <add>, %182, %cst_39 [2] : vector<2x8x8xf32> to vector<2x8xf32>
    %184 = vector.shape_cast %183 : vector<2x8xf32> to vector<2x8x1xf32>
    %185 = tpu.reciprocal %184 {approx = true} : vector<2x8x1xf32> -> vector<2x8x1xf32>
    %186 = vector.broadcast %185 : vector<2x8x1xf32> to vector<2x8x8xf32>
    %187 = arith.mulf %182, %186 : vector<2x8x8xf32>
    %188 = arith.truncf %187 : vector<2x8x8xf32> to vector<2x8x8xbf16>
    %189 = vector.extract_strided_slice %164 {offsets = [0, 0, 8], sizes = [2, 8, 8], strides = [1, 1, 1]} : vector<2x8x32xbf16> to vector<2x8x8xbf16>
    "tpu.trace_start"() <{level = 10 : i32, message = "nts,nsd->ntd"}> : () -> ()
    %cst_40 = arith.constant dense<0.000000e+00> : vector<2x8x8xf32>
    %190 = tpu.matmul %188, %189, %cst_40 {dimension_numbers = #tpu.dot_dimension_numbers<[2], [1], [1], [2], [0, 0, 0, 1, 1, 2], [0], [0]>} : vector<2x8x8xbf16>, vector<2x8x8xbf16>, vector<2x8x8xf32> -> vector<2x8x8xf32>
    "tpu.trace_stop"() : () -> ()
    %191 = vector.extract_strided_slice %160 {offsets = [0, 0, 16], sizes = [2, 8, 8], strides = [1, 1, 1]} : vector<2x8x32xbf16> to vector<2x8x8xbf16>
    %192 = vector.extract_strided_slice %162 {offsets = [0, 0, 16], sizes = [2, 8, 8], strides = [1, 1, 1]} : vector<2x8x32xbf16> to vector<2x8x8xbf16>
    "tpu.trace_start"() <{level = 10 : i32, message = "ntd,nsd->nts"}> : () -> ()
    %cst_41 = arith.constant dense<0.000000e+00> : vector<2x8x8xf32>
    %193 = tpu.matmul %191, %192, %cst_41 {dimension_numbers = #tpu.dot_dimension_numbers<[2], [2], [1], [1], [0, 0, 0, 1, 1, 1], [0], [0]>} : vector<2x8x8xbf16>, vector<2x8x8xbf16>, vector<2x8x8xf32> -> vector<2x8x8xf32>
    "tpu.trace_stop"() : () -> ()
    %194 = arith.addf %193, %4 : vector<2x8x8xf32>
    %195 = math.exp %194 : vector<2x8x8xf32>
    %cst_42 = arith.constant dense<0.000000e+00> : vector<2x8xf32>
    %196 = vector.multi_reduction <add>, %195, %cst_42 [2] : vector<2x8x8xf32> to vector<2x8xf32>
    %197 = vector.shape_cast %196 : vector<2x8xf32> to vector<2x8x1xf32>
    %198 = tpu.reciprocal %197 {approx = true} : vector<2x8x1xf32> -> vector<2x8x1xf32>
    %199 = vector.broadcast %198 : vector<2x8x1xf32> to vector<2x8x8xf32>
    %200 = arith.mulf %195, %199 : vector<2x8x8xf32>
    %201 = arith.truncf %200 : vector<2x8x8xf32> to vector<2x8x8xbf16>
    %202 = vector.extract_strided_slice %164 {offsets = [0, 0, 16], sizes = [2, 8, 8], strides = [1, 1, 1]} : vector<2x8x32xbf16> to vector<2x8x8xbf16>
    "tpu.trace_start"() <{level = 10 : i32, message = "nts,nsd->ntd"}> : () -> ()
    %cst_43 = arith.constant dense<0.000000e+00> : vector<2x8x8xf32>
    %203 = tpu.matmul %201, %202, %cst_43 {dimension_numbers = #tpu.dot_dimension_numbers<[2], [1], [1], [2], [0, 0, 0, 1, 1, 2], [0], [0]>} : vector<2x8x8xbf16>, vector<2x8x8xbf16>, vector<2x8x8xf32> -> vector<2x8x8xf32>
    "tpu.trace_stop"() : () -> ()
    %204 = vector.extract_strided_slice %160 {offsets = [0, 0, 24], sizes = [2, 8, 8], strides = [1, 1, 1]} : vector<2x8x32xbf16> to vector<2x8x8xbf16>
    %205 = vector.extract_strided_slice %162 {offsets = [0, 0, 24], sizes = [2, 8, 8], strides = [1, 1, 1]} : vector<2x8x32xbf16> to vector<2x8x8xbf16>
    "tpu.trace_start"() <{level = 10 : i32, message = "ntd,nsd->nts"}> : () -> ()
    %cst_44 = arith.constant dense<0.000000e+00> : vector<2x8x8xf32>
    %206 = tpu.matmul %204, %205, %cst_44 {dimension_numbers = #tpu.dot_dimension_numbers<[2], [2], [1], [1], [0, 0, 0, 1, 1, 1], [0], [0]>} : vector<2x8x8xbf16>, vector<2x8x8xbf16>, vector<2x8x8xf32> -> vector<2x8x8xf32>
    "tpu.trace_stop"() : () -> ()
    %207 = arith.addf %206, %4 : vector<2x8x8xf32>
    %208 = math.exp %207 : vector<2x8x8xf32>
    %cst_45 = arith.constant dense<0.000000e+00> : vector<2x8xf32>
    %209 = vector.multi_reduction <add>, %208, %cst_45 [2] : vector<2x8x8xf32> to vector<2x8xf32>
    %210 = vector.shape_cast %209 : vector<2x8xf32> to vector<2x8x1xf32>
    %211 = tpu.reciprocal %210 {approx = true} : vector<2x8x1xf32> -> vector<2x8x1xf32>
    %212 = vector.broadcast %211 : vector<2x8x1xf32> to vector<2x8x8xf32>
    %213 = arith.mulf %208, %212 : vector<2x8x8xf32>
    %214 = arith.truncf %213 : vector<2x8x8xf32> to vector<2x8x8xbf16>
    %215 = vector.extract_strided_slice %164 {offsets = [0, 0, 24], sizes = [2, 8, 8], strides = [1, 1, 1]} : vector<2x8x32xbf16> to vector<2x8x8xbf16>
    "tpu.trace_start"() <{level = 10 : i32, message = "nts,nsd->ntd"}> : () -> ()
    %cst_46 = arith.constant dense<0.000000e+00> : vector<2x8x8xf32>
    %216 = tpu.matmul %214, %215, %cst_46 {dimension_numbers = #tpu.dot_dimension_numbers<[2], [1], [1], [2], [0, 0, 0, 1, 1, 2], [0], [0]>} : vector<2x8x8xbf16>, vector<2x8x8xbf16>, vector<2x8x8xf32> -> vector<2x8x8xf32>
    "tpu.trace_stop"() : () -> ()
    %217 = tpu.concatenate %177, %190, %203, %216 in 2 : vector<2x8x8xf32>, vector<2x8x8xf32>, vector<2x8x8xf32>, vector<2x8x8xf32> -> vector<2x8x32xf32>
    %218 = vector.shape_cast %217 : vector<2x8x32xf32> to vector<16x32xf32>
    %219 = arith.truncf %218 : vector<16x32xf32> to vector<16x32xbf16>
    %cst_47 = arith.constant dense<0.000000e+00> : vector<16x32xf32>
    %220 = tpu.matmul %219, %158, %cst_47 {dimension_numbers = #tpu.dot_dimension_numbers<[1], [0], [0], [1], [0, 0, 1, 1], [], []>} : vector<16x32xbf16>, vector<32x32xbf16>, vector<16x32xf32> -> vector<16x32xf32>
    %221 = vector.shape_cast %20 : vector<32xf32> to vector<1x32xf32>
    %222 = vector.broadcast %221 : vector<1x32xf32> to vector<16x32xf32>
    %223 = arith.addf %220, %222 : vector<16x32xf32>
    %224 = arith.addf %138, %223 : vector<16x32xf32>
    %225 = vector.extract_strided_slice %25 {offsets = [1, 0], sizes = [1, 32], strides = [1, 1]} : vector<3x32xf32> to vector<1x32xf32>
    %226 = vector.shape_cast %225 : vector<1x32xf32> to vector<32xf32>
    %227 = vector.extract_strided_slice %26 {offsets = [1, 0], sizes = [1, 32], strides = [1, 1]} : vector<3x32xf32> to vector<1x32xf32>
    %228 = vector.shape_cast %227 : vector<1x32xf32> to vector<32xf32>
    %cst_48 = arith.constant dense<0.000000e+00> : vector<16xf32>
    %229 = vector.multi_reduction <add>, %224, %cst_48 [1] : vector<16x32xf32> to vector<16xf32>
    %230 = vector.shape_cast %229 : vector<16xf32> to vector<16x1xf32>
    %cst_49 = arith.constant 3.200000e+01 : f32
    %231 = vector.broadcast %cst_49 : f32 to vector<16x1xf32>
    %232 = arith.divf %230, %231 : vector<16x1xf32>
    %233 = vector.broadcast %232 : vector<16x1xf32> to vector<16x32xf32>
    %234 = arith.subf %224, %233 : vector<16x32xf32>
    %235 = arith.mulf %234, %234 : vector<16x32xf32>
    %cst_50 = arith.constant dense<0.000000e+00> : vector<16xf32>
    %236 = vector.multi_reduction <add>, %235, %cst_50 [1] : vector<16x32xf32> to vector<16xf32>
    %237 = vector.shape_cast %236 : vector<16xf32> to vector<16x1xf32>
    %cst_51 = arith.constant 3.200000e+01 : f32
    %238 = vector.broadcast %cst_51 : f32 to vector<16x1xf32>
    %239 = arith.divf %237, %238 : vector<16x1xf32>
    %240 = vector.broadcast %232 : vector<16x1xf32> to vector<16x32xf32>
    %241 = arith.subf %224, %240 : vector<16x32xf32>
    %cst_52 = arith.constant 9.99999974E-6 : f32
    %242 = vector.broadcast %cst_52 : f32 to vector<16x1xf32>
    %243 = arith.addf %239, %242 : vector<16x1xf32>
    %244 = math.rsqrt %243 : vector<16x1xf32>
    %245 = vector.broadcast %244 : vector<16x1xf32> to vector<16x32xf32>
    %246 = arith.mulf %241, %245 : vector<16x32xf32>
    %247 = vector.shape_cast %226 : vector<32xf32> to vector<1x32xf32>
    %248 = vector.broadcast %247 : vector<1x32xf32> to vector<16x32xf32>
    %249 = arith.mulf %246, %248 : vector<16x32xf32>
    %250 = vector.shape_cast %228 : vector<32xf32> to vector<1x32xf32>
    %251 = vector.broadcast %250 : vector<1x32xf32> to vector<16x32xf32>
    %252 = arith.addf %249, %251 : vector<16x32xf32>
    %253 = arith.truncf %252 : vector<16x32xf32> to vector<16x32xbf16>
    %c96 = arith.constant 96 : index
    %c0_53 = arith.constant 0 : index
    %254 = vector.load %arg2[%c96, %c0_53] : memref<192x96xbf16, #tpu.memory_space<vmem>>, vector<32x64xbf16>
    %cst_54 = arith.constant dense<0.000000e+00> : vector<16x64xf32>
    %255 = tpu.matmul %253, %254, %cst_54 {dimension_numbers = #tpu.dot_dimension_numbers<[1], [0], [0], [1], [0, 0, 1, 1], [], []>} : vector<16x32xbf16>, vector<32x64xbf16>, vector<16x64xf32> -> vector<16x64xf32>
    %256 = vector.shape_cast %22 : vector<64xf32> to vector<1x64xf32>
    %257 = vector.broadcast %256 : vector<1x64xf32> to vector<16x64xf32>
    %258 = arith.addf %255, %257 : vector<16x64xf32>
    %cst_55 = arith.constant 0.000000e+00 : f32
    %259 = vector.broadcast %cst_55 : f32 to vector<16x64xf32>
    %260 = arith.maximumf %258, %259 : vector<16x64xf32>
    %261 = arith.truncf %260 : vector<16x64xf32> to vector<16x64xbf16>
    %c128 = arith.constant 128 : index
    %c0_56 = arith.constant 0 : index
    %262 = vector.load %arg2[%c128, %c0_56] : memref<192x96xbf16, #tpu.memory_space<vmem>>, vector<64x32xbf16>
    %cst_57 = arith.constant dense<0.000000e+00> : vector<16x32xf32>
    %263 = tpu.matmul %261, %262, %cst_57 {dimension_numbers = #tpu.dot_dimension_numbers<[1], [0], [0], [1], [0, 0, 1, 1], [], []>} : vector<16x64xbf16>, vector<64x32xbf16>, vector<16x32xf32> -> vector<16x32xf32>
    %264 = vector.shape_cast %24 : vector<32xf32> to vector<1x32xf32>
    %265 = vector.broadcast %264 : vector<1x32xf32> to vector<16x32xf32>
    %266 = arith.addf %263, %265 : vector<16x32xf32>
    %267 = arith.addf %252, %266 : vector<16x32xf32>
    %268 = vector.extract_strided_slice %25 {offsets = [2, 0], sizes = [1, 32], strides = [1, 1]} : vector<3x32xf32> to vector<1x32xf32>
    %269 = vector.shape_cast %268 : vector<1x32xf32> to vector<32xf32>
    %270 = vector.extract_strided_slice %26 {offsets = [2, 0], sizes = [1, 32], strides = [1, 1]} : vector<3x32xf32> to vector<1x32xf32>
    %271 = vector.shape_cast %270 : vector<1x32xf32> to vector<32xf32>
    %cst_58 = arith.constant dense<0.000000e+00> : vector<16xf32>
    %272 = vector.multi_reduction <add>, %267, %cst_58 [1] : vector<16x32xf32> to vector<16xf32>
    %273 = vector.shape_cast %272 : vector<16xf32> to vector<16x1xf32>
    %cst_59 = arith.constant 3.200000e+01 : f32
    %274 = vector.broadcast %cst_59 : f32 to vector<16x1xf32>
    %275 = arith.divf %273, %274 : vector<16x1xf32>
    %276 = vector.broadcast %275 : vector<16x1xf32> to vector<16x32xf32>
    %277 = arith.subf %267, %276 : vector<16x32xf32>
    %278 = arith.mulf %277, %277 : vector<16x32xf32>
    %cst_60 = arith.constant dense<0.000000e+00> : vector<16xf32>
    %279 = vector.multi_reduction <add>, %278, %cst_60 [1] : vector<16x32xf32> to vector<16xf32>
    %280 = vector.shape_cast %279 : vector<16xf32> to vector<16x1xf32>
    %cst_61 = arith.constant 3.200000e+01 : f32
    %281 = vector.broadcast %cst_61 : f32 to vector<16x1xf32>
    %282 = arith.divf %280, %281 : vector<16x1xf32>
    %283 = vector.broadcast %275 : vector<16x1xf32> to vector<16x32xf32>
    %284 = arith.subf %267, %283 : vector<16x32xf32>
    %cst_62 = arith.constant 9.99999974E-6 : f32
    %285 = vector.broadcast %cst_62 : f32 to vector<16x1xf32>
    %286 = arith.addf %282, %285 : vector<16x1xf32>
    %287 = math.rsqrt %286 : vector<16x1xf32>
    %288 = vector.broadcast %287 : vector<16x1xf32> to vector<16x32xf32>
    %289 = arith.mulf %284, %288 : vector<16x32xf32>
    %290 = vector.shape_cast %269 : vector<32xf32> to vector<1x32xf32>
    %291 = vector.broadcast %290 : vector<1x32xf32> to vector<16x32xf32>
    %292 = arith.mulf %289, %291 : vector<16x32xf32>
    %293 = vector.shape_cast %271 : vector<32xf32> to vector<1x32xf32>
    %294 = vector.broadcast %293 : vector<1x32xf32> to vector<16x32xf32>
    %295 = arith.addf %292, %294 : vector<16x32xf32>
    %296 = vector.shape_cast %295 : vector<16x32xf32> to vector<2x8x32xf32>
    %c0_63 = arith.constant 0 : index
    %c0_64 = arith.constant 0 : index
    %c0_65 = arith.constant 0 : index
    %297 = vector.load %arg4[%c0_63, %c0_64, %c0_65] : memref<2x8x32xf32, #tpu.memory_space<vmem>>, vector<2x8x32xf32>
    tpu.vector_store %arg4[%c0_63, %c0_64, %c0_65], %296 {strides = array<i32>} : memref<2x8x32xf32, #tpu.memory_space<vmem>>, vector<2x8x32xf32>,
    return
  }
}

</mosaic_0001>

<llo_original>
// kernel: tpu_custom_call.1
$region0: #{tpu_custom_call.1}
  #allocation0 [shape = 'u32[]', space=smem, size = 0x4, offset = 0x4, fixed_abs, tag = 'smem constant byte address 0x4 - core index']
  #allocation1 [shape = 'u32[144,128]{1,0:T(1,128)}', space=vmem, size = 0x12000, scoped, tag = 'internal scratch']
  %s0 = inlined_call_operand.hbm [shape: f32[2,8,32], index: 0, kind: input, shape index: {}]
  %s1 = inlined_call_operand.hbm [shape: f32[2,8,32], index: 1, kind: input, shape index: {}]
  %s2 = inlined_call_operand.hbm [shape: bf16[192,96], index: 2, kind: input, shape index: {}]
  %s3 = inlined_call_operand.hbm [shape: f32[32,64], index: 3, kind: input, shape index: {}]
  %s4 = inlined_call_operand.hbm [shape: f32[2,8,32], index: 4, kind: output, shape index: {}]
  %s5 = sld [smem:[#allocation0]]
  $region42: #{tpu_custom_call.1} parent=0
    _
  %s7 = ssub.s32 1, %s5
  %s8 = scalar_select 0, %s7, %s5
  $region1: #{tpu_custom_call.1} parent=0
    #allocation2 [shape = 'u8[8192]{0}', space=vmem, size = 0x2000, scoped, tag = 'input window, operand 0, single buffered']
    #allocation3 [shape = 's32[1]{0}', space=sflag, size = 0x4, scoped, tag = 'scoped memory for tpu_custom_call.1']
    #allocation4 [shape = 's32[1]{0}', space=sflag, size = 0x4, scoped, tag = 'scoped memory for tpu_custom_call.1']
    #allocation5 [shape = 'u8[8192]{0}', space=vmem, size = 0x2000, scoped, tag = 'input window, operand 1, single buffered']
    #allocation6 [shape = 's32[1]{0}', space=sflag, size = 0x4, scoped, tag = 'scoped memory for tpu_custom_call.1']
    #allocation7 [shape = 'u8[49152]{0}', space=vmem, size = 0xc000, scoped, tag = 'input window, operand 2, single buffered']
    #allocation8 [shape = 'u8[16384]{0}', space=vmem, size = 0x4000, scoped, tag = 'input window, operand 3, single buffered']
    #allocation9 [shape = 's32[1]{0}', space=sflag, size = 0x4, scoped, tag = 'scoped memory for tpu_custom_call.1']
    #allocation10 [shape = 'u8[8192]{0}', space=vmem, size = 0x2000, scoped, tag = 'output window, operand 0, single buffered']
    %9 = vsyncpa [#allocation3], 0
    %10 = vsyncpa [#allocation6], 0
    %11 = vsyncpa [#allocation9], 0
    %12 = vsyncpa [#allocation4], 0
    // Predicated region
    $region2: #{tpu_custom_call.1} parent=1 // pred_check
      _
    $region3: #{tpu_custom_call.1} parent=1 // pred_check_branch
      %14 = sbr.rel (0) target = $region5
    $region4: #{tpu_custom_call.1} parent=1 // pred_region
      %s16 = ssub.s32 256, 256
      %17 = vsyncadd [#allocation3], %s16
      %s18 = sshll.u32 [#allocation2], 4
      %s19 = int_to_ptr.vmem [resolvable:$true] %s18
      %24 = dma.hbm_to_vmem [thread:$0]  %s0, 256, %s19, [#allocation3], 128, 128, 8
    $region5: #{tpu_custom_call.1} parent=1 // pred_fallthru
      _
    // Predicated region
    $region6: #{tpu_custom_call.1} parent=1 // pred_check
      _
    $region7: #{tpu_custom_call.1} parent=1 // pred_check_branch
      %26 = sbr.rel (0) target = $region9
    $region8: #{tpu_custom_call.1} parent=1 // pred_region
      %s28 = ssub.s32 256, 256
      %29 = vsyncadd [#allocation6], %s28
      %s30 = sshll.u32 [#allocation5], 4
      %s31 = int_to_ptr.vmem [resolvable:$true] %s30
      %36 = dma.hbm_to_vmem [thread:$0]  %s1, 256, %s31, [#allocation6], 128, 128, 8
    $region9: #{tpu_custom_call.1} parent=1 // pred_fallthru
      _
    // Predicated region
    $region10: #{tpu_custom_call.1} parent=1 // pred_check
      _
    $region11: #{tpu_custom_call.1} parent=1 // pred_check_branch
      %38 = sbr.rel (0) target = $region13
    $region12: #{tpu_custom_call.1} parent=1 // pred_region
      %s40 = ssub.s32 1536, 1536
      %41 = vsyncadd [#allocation6], %s40
      %s42 = sshll.u32 [#allocation7], 4
      %s43 = int_to_ptr.vmem [resolvable:$true] %s42
      %48 = dma.hbm_to_vmem [thread:$0]  %s2, 1536, %s43, [#allocation6], 64, 64, 4
    $region13: #{tpu_custom_call.1} parent=1 // pred_fallthru
      _
    // Predicated region
    $region14: #{tpu_custom_call.1} parent=1 // pred_check
      _
    $region15: #{tpu_custom_call.1} parent=1 // pred_check_branch
      %50 = sbr.rel (0) target = $region17
    $region16: #{tpu_custom_call.1} parent=1 // pred_region
      %s52 = ssub.s32 512, 512
      %53 = vsyncadd [#allocation9], %s52
      %s54 = sshll.u32 [#allocation8], 4
      %s55 = int_to_ptr.vmem [resolvable:$true] %s54
      %60 = dma.hbm_to_vmem [thread:$0]  %s3, 512, %s55, [#allocation9], 128, 128, 8
    $region17: #{tpu_custom_call.1} parent=1 // pred_fallthru
      _
    // Predicated region
    $region18: #{tpu_custom_call.1} parent=1 // pred_check
      _
    $region19: #{tpu_custom_call.1} parent=1 // pred_check_branch
      %62 = sbr.rel (0) target = $region21
    $region20: #{tpu_custom_call.1} parent=1 // pred_region
      %63 = dma.done [#allocation3], 256
    $region21: #{tpu_custom_call.1} parent=1 // pred_fallthru
      _
    // Predicated region
    $region22: #{tpu_custom_call.1} parent=1 // pred_check
      _
    $region23: #{tpu_custom_call.1} parent=1 // pred_check_branch
      %65 = sbr.rel (0) target = $region25
    $region24: #{tpu_custom_call.1} parent=1 // pred_region
      %66 = dma.done [#allocation6], 256
    $region25: #{tpu_custom_call.1} parent=1 // pred_fallthru
      _
    // Predicated region
    $region26: #{tpu_custom_call.1} parent=1 // pred_check
      _
    $region27: #{tpu_custom_call.1} parent=1 // pred_check_branch
      %68 = sbr.rel (0) target = $region29
    $region28: #{tpu_custom_call.1} parent=1 // pred_region
      %69 = dma.done [#allocation6], 1536
    $region29: #{tpu_custom_call.1} parent=1 // pred_fallthru
      _
    // Predicated region
    $region30: #{tpu_custom_call.1} parent=1 // pred_check
      _
    $region31: #{tpu_custom_call.1} parent=1 // pred_check_branch
      %71 = sbr.rel (0) target = $region33
    $region32: #{tpu_custom_call.1} parent=1 // pred_region
      %72 = dma.done [#allocation9], 512
    $region33: #{tpu_custom_call.1} parent=1 // pred_fallthru
      _
    %v74 = vld [vmem:[#allocation8] sm:$0xff]
    %v75 = vld [vmem:[#allocation8 + $0x8] sm:$0xff]
    %v76 = vld [vmem:[#allocation8 + $0x10] sm:$0xff]
    %v77 = vld [vmem:[#allocation8 + $0x18] sm:$0xff]
    %v78 = vld [vmem:[#allocation2] sm:$0xff]
    %v79 = vld [vmem:[#allocation2 + $0x8] sm:$0xff]
    %v80 = vpack.c.bf16 %v79, %v78
    %v81 = vld [vmem:[#allocation7] sm:$0xf]
    %v82 = vld [vmem:[#allocation7 + $0x4] sm:$0xf]
    %v83 = vld [vmem:[#allocation7 + $0x8] sm:$0xf]
    %v84 = vld [vmem:[#allocation7 + $0xc] sm:$0xf]
    %v89 = vunpack.c.l.b16 %v81
    %v90 = vunpack.c.l.b16 %v82
    %v91 = vunpack.c.l.b16 %v83
    %v92 = vunpack.c.l.b16 %v84
    %v93 = vpack.c.b16 %v90, %v89
    %v94 = vpack.c.b16 %v92, %v91
    %vm97 = vcmask 261120
    %v99 = vsel %vm97, %v80, 0
    %101 = vmatprep.subr.bf16.mxu0 0
    %102 = vmatpush1.bf16.msra.mxu0 0
    %103 = vmatprep.subr.bf16.mxu0 0
    %104 = vmatpush1.bf16.msra.mxu0 0
    %105 = vmatprep.subr.bf16.mxu0 0
    %106 = vmatpush1.bf16.msra.mxu0 0
    %107 = vmatprep.subr.bf16.mxu0 0
    %108 = vmatpush1.bf16.msra.mxu0 0
    %109 = vmatprep.subr.bf16.mxu0 0
    %110 = vmatpush1.bf16.msra.mxu0 0
    %111 = vmatprep.subr.bf16.mxu0 0
    %112 = vmatpush1.bf16.msra.mxu0 0
    %113 = vmatprep.subr.bf16.mxu0 0
    %114 = vmatpush1.bf16.msra.mxu0 %v94
    %115 = vmatprep.subr.bf16.mxu0 0
    %116 = vmatpush1.bf16.msra.mxu0 %v93
    %117 = vmatprep.subr.bf16.mxu0 0
    %118 = vmatpush2.bf16.msra.mxu0 0
    %119 = vmatprep.subr.bf16.mxu0 0
    %120 = vmatpush2.bf16.msra.mxu0 0
    %121 = vmatprep.subr.bf16.mxu0 0
    %122 = vmatpush2.bf16.msra.mxu0 0
    %123 = vmatprep.subr.bf16.mxu0 0
    %124 = vmatpush2.bf16.msra.mxu0 0
    %125 = vmatprep.subr.bf16.mxu0 0
    %126 = vmatpush2.bf16.msra.mxu0 0
    %127 = vmatprep.subr.bf16.mxu0 0
    %128 = vmatpush2.bf16.msra.mxu0 0
    %129 = vmatprep.subr.bf16.mxu0 0
    %130 = vmatpush2.bf16.msra.mxu0 0
    %131 = vmatprep.subr.bf16.mxu0 0
    %132 = vmatpush2.bf16.msra.mxu0 0
    %133 = vmatprep.mubr.bf16.mxu0 0
    %134 = vmatmul.mubr.bf16.gmra.mxu0 %v99
    %v135 = vpop.f32.mrf.mxu0
    %v136 = vadd.f32 0.0, %v135
    %v137 = vpop.f32.mrf.mxu0
    %v138 = vpop.f32.mrf.mxu0
    %v139 = vadd.f32 0.0, %v138
    %v140 = vpop.f32.mrf.mxu0
    %141 = vdwg.mxu0
    %v142 = vlaneseq
    %v143 = vshrl.u32 %v142, 7
    %v144 = vsub.s32 0, %v143
    %v145 = vrot.slane %v76, %v144
    %v146 = vadd.f32 %v136, %v145
    %v147 = vadd.f32 %v139, %v145
    %v148 = vlaneseq
    %v149 = vshrl.u32 %v148, 7
    %v150 = vsub.s32 1, %v149
    %v151 = vrot.slane %v76, %v150
    %153 = vrot.lane.b32.xlu0 %v151, 32
    %v154 = vpop.permute.xlu0 %153
    %v156 = vadd.f32 %v136, %v154
    %v157 = vadd.f32 %v139, %v154
    %v158 = vlaneseq
    %v159 = vshrl.u32 %v158, 7
    %v160 = vsub.s32 2, %v159
    %v161 = vrot.slane %v76, %v160
    %163 = vrot.lane.b32.xlu0 %v161, 64
    %v164 = vpop.permute.xlu0 %163
    %v166 = vadd.f32 %v136, %v164
    %v167 = vadd.f32 %v139, %v164
    %v168 = vld [vmem:[#allocation7 + $0x20] sm:$0xf]
    %v169 = vld [vmem:[#allocation7 + $0x24] sm:$0xf]
    %v170 = vld [vmem:[#allocation7 + $0x28] sm:$0xf]
    %v171 = vld [vmem:[#allocation7 + $0x2c] sm:$0xf]
    %v172 = vpack.c.bf16 %v146, %v146
    %v173 = vpack.c.bf16 %v147, %v147
    %v174 = vpack.c.bf16 %v156, %v156
    %v175 = vpack.c.bf16 %v157, %v157
    %v176 = vpack.c.bf16 %v166, %v166
    %v177 = vpack.c.bf16 %v167, %v167
    %179 = vrot.lane.b32.xlu0 %v174, 96
    %v180 = vpop.permute.xlu0 %179
    %vm181 = vcmask 64512
    %v183 = vsel %vm181, %v172, 0
    %v186 = vsel %vm181, %v180, 0
    %188 = vmatprep.subr.bf16.mxu0 0
    %189 = vmatpush1.bf16.xpose.msra.mxu0 0
    %190 = vmatprep.subr.bf16.mxu0 0
    %191 = vmatpush1.bf16.xpose.msra.mxu0 0
    %192 = vmatprep.subr.bf16.mxu0 0
    %193 = vmatpush1.bf16.xpose.msra.mxu0 0
    %194 = vmatprep.subr.bf16.mxu0 0
    %195 = vmatpush1.bf16.xpose.msra.mxu0 0
    %196 = vmatprep.subr.bf16.mxu0 0
    %197 = vmatpush1.bf16.xpose.msra.mxu0 0
    %198 = vmatprep.subr.bf16.mxu0 0
    %199 = vmatpush1.bf16.xpose.msra.mxu0 0
    %200 = vmatprep.subr.bf16.mxu0 0
    %201 = vmatpush1.bf16.xpose.msra.mxu0 0
    %202 = vmatprep.subr.bf16.mxu0 0
    %203 = vmatpush1.bf16.xpose.msra.mxu0 %v186
    %204 = vmatprep.subr.bf16.mxu0 0
    %205 = vmatpush2.bf16.xpose.msra.mxu0 0
    %206 = vmatprep.subr.bf16.mxu0 0
    %207 = vmatpush2.bf16.xpose.msra.mxu0 0
    %208 = vmatprep.subr.bf16.mxu0 0
    %209 = vmatpush2.bf16.xpose.msra.mxu0 0
    %210 = vmatprep.subr.bf16.mxu0 0
    %211 = vmatpush2.bf16.xpose.msra.mxu0 0
    %212 = vmatprep.subr.bf16.mxu0 0
    %213 = vmatpush2.bf16.xpose.msra.mxu0 0
    %214 = vmatprep.subr.bf16.mxu0 0
    %215 = vmatpush2.bf16.xpose.msra.mxu0 0
    %216 = vmatprep.subr.bf16.mxu0 0
    %217 = vmatpush2.bf16.xpose.msra.mxu0 0
    %218 = vmatprep.subr.bf16.mxu0 0
    %219 = vmatpush2.bf16.xpose.msra.mxu0 0
    %220 = vmatprep.mubr.bf16.mxu0 0
    %221 = vmatmul.mubr.bf16.gmra.mxu0 %v183
    %v222 = vpop.f32.mrf.mxu0
    %v223 = vadd.f32 %v74, %v222
    %v224 = vpop.f32.mrf.mxu0
    %v225 = vpop.f32.mrf.mxu0
    %v226 = vpop.f32.mrf.mxu0
    %227 = vdwg.mxu0
    %229 = vrot.lane.b32.xlu0 %v175, 96
    %v230 = vpop.permute.xlu0 %229
    %v232 = vsel %vm181, %v173, 0
    %v235 = vsel %vm181, %v230, 0
    %237 = vmatprep.subr.bf16.mxu0 0
    %238 = vmatpush1.bf16.xpose.msra.mxu0 0
    %239 = vmatprep.subr.bf16.mxu0 0
    %240 = vmatpush1.bf16.xpose.msra.mxu0 0
    %241 = vmatprep.subr.bf16.mxu0 0
    %242 = vmatpush1.bf16.xpose.msra.mxu0 0
    %243 = vmatprep.subr.bf16.mxu0 0
    %244 = vmatpush1.bf16.xpose.msra.mxu0 0
    %245 = vmatprep.subr.bf16.mxu0 0
    %246 = vmatpush1.bf16.xpose.msra.mxu0 0
    %247 = vmatprep.subr.bf16.mxu0 0
    %248 = vmatpush1.bf16.xpose.msra.mxu0 0
    %249 = vmatprep.subr.bf16.mxu0 0
    %250 = vmatpush1.bf16.xpose.msra.mxu0 0
    %251 = vmatprep.subr.bf16.mxu0 0
    %252 = vmatpush1.bf16.xpose.msra.mxu0 %v235
    %253 = vmatprep.subr.bf16.mxu0 0
    %254 = vmatpush2.bf16.xpose.msra.mxu0 0
    %255 = vmatprep.subr.bf16.mxu0 0
    %256 = vmatpush2.bf16.xpose.msra.mxu0 0
    %257 = vmatprep.subr.bf16.mxu0 0
    %258 = vmatpush2.bf16.xpose.msra.mxu0 0
    %259 = vmatprep.subr.bf16.mxu0 0
    %260 = vmatpush2.bf16.xpose.msra.mxu0 0
    %261 = vmatprep.subr.bf16.mxu0 0
    %262 = vmatpush2.bf16.xpose.msra.mxu0 0
    %263 = vmatprep.subr.bf16.mxu0 0
    %264 = vmatpush2.bf16.xpose.msra.mxu0 0
    %265 = vmatprep.subr.bf16.mxu0 0
    %266 = vmatpush2.bf16.xpose.msra.mxu0 0
    %267 = vmatprep.subr.bf16.mxu0 0
    %268 = vmatpush2.bf16.xpose.msra.mxu0 0
    %269 = vmatprep.mubr.bf16.mxu0 0
    %270 = vmatmul.mubr.bf16.gmra.mxu0 %v232
    %v271 = vpop.f32.mrf.mxu0
    %v272 = vadd.f32 %v75, %v271
    %v273 = vpop.f32.mrf.mxu0
    %v274 = vpop.f32.mrf.mxu0
    %v275 = vpop.f32.mrf.mxu0
    %276 = vdwg.mxu0
    %v277 = vmul.f32 %v223, 1.442695
    %v278 = vpow.pop %v277
    %v279 = vmul.f32 %v272, 1.442695
    %v280 = vpow.pop %v279
    %v281 = vsel %vm181, %v278, 0.0
    %282 = vadd.xlane.f32.xlu0 %v281
    %v283 = vpop.xlane.xlu0 %282
    %v284 = vsel %vm181, %v280, 0.0
    %285 = vadd.xlane.f32.xlu0 %v284
    %v286 = vpop.xlane.xlu0 %285
    %v287 = vrcp.pop %v283
    %v288 = vrcp.pop %v286
    %v289 = vmul.f32 %v278, %v287
    %v290 = vmul.f32 %v280, %v288
    %v291 = vpack.c.bf16 %v289, %v289
    %v292 = vpack.c.bf16 %v290, %v290
    %294 = vrot.lane.b32.xlu0 %v176, 64
    %v295 = vpop.permute.xlu0 %294
    %v297 = vsel %vm181, %v291, 0
    %vm299 = vcmask 1043456
    %v301 = vsel %vm299, %v295, 0
    %303 = vmatprep.subr.bf16.mxu0 0
    %304 = vmatpush1.bf16.msra.mxu0 0
    %305 = vmatprep.subr.bf16.mxu0 0
    %306 = vmatpush1.bf16.msra.mxu0 0
    %307 = vmatprep.subr.bf16.mxu0 0
    %308 = vmatpush1.bf16.msra.mxu0 0
    %309 = vmatprep.subr.bf16.mxu0 0
    %310 = vmatpush1.bf16.msra.mxu0 0
    %311 = vmatprep.subr.bf16.mxu0 0
    %312 = vmatpush1.bf16.msra.mxu0 0
    %313 = vmatprep.subr.bf16.mxu0 0
    %314 = vmatpush1.bf16.msra.mxu0 0
    %315 = vmatprep.subr.bf16.mxu0 0
    %316 = vmatpush1.bf16.msra.mxu0 0
    %317 = vmatprep.subr.bf16.mxu0 0
    %318 = vmatpush1.bf16.msra.mxu0 %v301
    %319 = vmatprep.subr.bf16.mxu0 0
    %320 = vmatpush2.bf16.msra.mxu0 0
    %321 = vmatprep.subr.bf16.mxu0 0
    %322 = vmatpush2.bf16.msra.mxu0 0
    %323 = vmatprep.subr.bf16.mxu0 0
    %324 = vmatpush2.bf16.msra.mxu0 0
    %325 = vmatprep.subr.bf16.mxu0 0
    %326 = vmatpush2.bf16.msra.mxu0 0
    %327 = vmatprep.subr.bf16.mxu0 0
    %328 = vmatpush2.bf16.msra.mxu0 0
    %329 = vmatprep.subr.bf16.mxu0 0
    %330 = vmatpush2.bf16.msra.mxu0 0
    %331 = vmatprep.subr.bf16.mxu0 0
    %332 = vmatpush2.bf16.msra.mxu0 0
    %333 = vmatprep.subr.bf16.mxu0 0
    %334 = vmatpush2.bf16.msra.mxu0 0
    %335 = vmatprep.mubr.bf16.mxu0 0
    %336 = vmatmul.mubr.bf16.gmra.mxu0 %v297
    %v337 = vpop.f32.mrf.mxu0
    %v338 = vadd.f32 0.0, %v337
    %v339 = vpop.f32.mrf.mxu0
    %v340 = vpop.f32.mrf.mxu0
    %v341 = vpop.f32.mrf.mxu0
    %342 = vdwg.mxu0
    %344 = vrot.lane.b32.xlu0 %v177, 64
    %v345 = vpop.permute.xlu0 %344
    %v347 = vsel %vm181, %v292, 0
    %v350 = vsel %vm299, %v345, 0
    %352 = vmatprep.subr.bf16.mxu0 0
    %353 = vmatpush1.bf16.msra.mxu0 0
    %354 = vmatprep.subr.bf16.mxu0 0
    %355 = vmatpush1.bf16.msra.mxu0 0
    %356 = vmatprep.subr.bf16.mxu0 0
    %357 = vmatpush1.bf16.msra.mxu0 0
    %358 = vmatprep.subr.bf16.mxu0 0
    %359 = vmatpush1.bf16.msra.mxu0 0
    %360 = vmatprep.subr.bf16.mxu0 0
    %361 = vmatpush1.bf16.msra.mxu0 0
    %362 = vmatprep.subr.bf16.mxu0 0
    %363 = vmatpush1.bf16.msra.mxu0 0
    %364 = vmatprep.subr.bf16.mxu0 0
    %365 = vmatpush1.bf16.msra.mxu0 0
    %366 = vmatprep.subr.bf16.mxu0 0
    %367 = vmatpush1.bf16.msra.mxu0 %v350
    %368 = vmatprep.subr.bf16.mxu0 0
    %369 = vmatpush2.bf16.msra.mxu0 0
    %370 = vmatprep.subr.bf16.mxu0 0
    %371 = vmatpush2.bf16.msra.mxu0 0
    %372 = vmatprep.subr.bf16.mxu0 0
    %373 = vmatpush2.bf16.msra.mxu0 0
    %374 = vmatprep.subr.bf16.mxu0 0
    %375 = vmatpush2.bf16.msra.mxu0 0
    %376 = vmatprep.subr.bf16.mxu0 0
    %377 = vmatpush2.bf16.msra.mxu0 0
    %378 = vmatprep.subr.bf16.mxu0 0
    %379 = vmatpush2.bf16.msra.mxu0 0
    %380 = vmatprep.subr.bf16.mxu0 0
    %381 = vmatpush2.bf16.msra.mxu0 0
    %382 = vmatprep.subr.bf16.mxu0 0
    %383 = vmatpush2.bf16.msra.mxu0 0
    %384 = vmatprep.mubr.bf16.mxu0 0
    %385 = vmatmul.mubr.bf16.gmra.mxu0 %v347
    %v386 = vpop.f32.mrf.mxu0
    %v387 = vadd.f32 0.0, %v386
    %v388 = vpop.f32.mrf.mxu0
    %v389 = vpop.f32.mrf.mxu0
    %v390 = vpop.f32.mrf.mxu0
    %391 = vdwg.mxu0
    %393 = vrot.lane.b32.xlu0 %v172, 120
    %v394 = vpop.permute.xlu0 %393
    %395 = vrot.lane.b32.xlu0 %v174, 88
    %v396 = vpop.permute.xlu0 %395
    %v398 = vsel %vm181, %v394, 0
    %v401 = vsel %vm181, %v396, 0
    %403 = vmatprep.subr.bf16.mxu0 0
    %404 = vmatpush1.bf16.xpose.msra.mxu0 0
    %405 = vmatprep.subr.bf16.mxu0 0
    %406 = vmatpush1.bf16.xpose.msra.mxu0 0
    %407 = vmatprep.subr.bf16.mxu0 0
    %408 = vmatpush1.bf16.xpose.msra.mxu0 0
    %409 = vmatprep.subr.bf16.mxu0 0
    %410 = vmatpush1.bf16.xpose.msra.mxu0 0
    %411 = vmatprep.subr.bf16.mxu0 0
    %412 = vmatpush1.bf16.xpose.msra.mxu0 0
    %413 = vmatprep.subr.bf16.mxu0 0
    %414 = vmatpush1.bf16.xpose.msra.mxu0 0
    %415 = vmatprep.subr.bf16.mxu0 0
    %416 = vmatpush1.bf16.xpose.msra.mxu0 0
    %417 = vmatprep.subr.bf16.mxu0 0
    %418 = vmatpush1.bf16.xpose.msra.mxu0 %v401
    %419 = vmatprep.subr.bf16.mxu0 0
    %420 = vmatpush2.bf16.xpose.msra.mxu0 0
    %421 = vmatprep.subr.bf16.mxu0 0
    %422 = vmatpush2.bf16.xpose.msra.mxu0 0
    %423 = vmatprep.subr.bf16.mxu0 0
    %424 = vmatpush2.bf16.xpose.msra.mxu0 0
    %425 = vmatprep.subr.bf16.mxu0 0
    %426 = vmatpush2.bf16.xpose.msra.mxu0 0
    %427 = vmatprep.subr.bf16.mxu0 0
    %428 = vmatpush2.bf16.xpose.msra.mxu0 0
    %429 = vmatprep.subr.bf16.mxu0 0
    %430 = vmatpush2.bf16.xpose.msra.mxu0 0
    %431 = vmatprep.subr.bf16.mxu0 0
    %432 = vmatpush2.bf16.xpose.msra.mxu0 0
    %433 = vmatprep.subr.bf16.mxu0 0
    %434 = vmatpush2.bf16.xpose.msra.mxu0 0
    %435 = vmatprep.mubr.bf16.mxu0 0
    %436 = vmatmul.mubr.bf16.gmra.mxu0 %v398
    %v437 = vpop.f32.mrf.mxu0
    %v438 = vadd.f32 %v74, %v437
    %v439 = vpop.f32.mrf.mxu0
    %v440 = vpop.f32.mrf.mxu0
    %v441 = vpop.f32.mrf.mxu0
    %442 = vdwg.mxu0
    %444 = vrot.lane.b32.xlu0 %v173, 120
    %v445 = vpop.permute.xlu0 %444
    %446 = vrot.lane.b32.xlu0 %v175, 88
    %v447 = vpop.permute.xlu0 %446
    %v449 = vsel %vm181, %v445, 0
    %v452 = vsel %vm181, %v447, 0
    %454 = vmatprep.subr.bf16.mxu0 0
    %455 = vmatpush1.bf16.xpose.msra.mxu0 0
    %456 = vmatprep.subr.bf16.mxu0 0
    %457 = vmatpush1.bf16.xpose.msra.mxu0 0
    %458 = vmatprep.subr.bf16.mxu0 0
    %459 = vmatpush1.bf16.xpose.msra.mxu0 0
    %460 = vmatprep.subr.bf16.mxu0 0
    %461 = vmatpush1.bf16.xpose.msra.mxu0 0
    %462 = vmatprep.subr.bf16.mxu0 0
    %463 = vmatpush1.bf16.xpose.msra.mxu0 0
    %464 = vmatprep.subr.bf16.mxu0 0
    %465 = vmatpush1.bf16.xpose.msra.mxu0 0
    %466 = vmatprep.subr.bf16.mxu0 0
    %467 = vmatpush1.bf16.xpose.msra.mxu0 0
    %468 = vmatprep.subr.bf16.mxu0 0
    %469 = vmatpush1.bf16.xpose.msra.mxu0 %v452
    %470 = vmatprep.subr.bf16.mxu0 0
    %471 = vmatpush2.bf16.xpose.msra.mxu0 0
    %472 = vmatprep.subr.bf16.mxu0 0
    %473 = vmatpush2.bf16.xpose.msra.mxu0 0
    %474 = vmatprep.subr.bf16.mxu0 0
    %475 = vmatpush2.bf16.xpose.msra.mxu0 0
    %476 = vmatprep.subr.bf16.mxu0 0
    %477 = vmatpush2.bf16.xpose.msra.mxu0 0
    %478 = vmatprep.subr.bf16.mxu0 0
    %479 = vmatpush2.bf16.xpose.msra.mxu0 0
    %480 = vmatprep.subr.bf16.mxu0 0
    %481 = vmatpush2.bf16.xpose.msra.mxu0 0
    %482 = vmatprep.subr.bf16.mxu0 0
    %483 = vmatpush2.bf16.xpose.msra.mxu0 0
    %484 = vmatprep.subr.bf16.mxu0 0
    %485 = vmatpush2.bf16.xpose.msra.mxu0 0
    %486 = vmatprep.mubr.bf16.mxu0 0
    %487 = vmatmul.mubr.bf16.gmra.mxu0 %v449
    %v488 = vpop.f32.mrf.mxu0
    %v489 = vadd.f32 %v75, %v488
    %v490 = vpop.f32.mrf.mxu0
    %v491 = vpop.f32.mrf.mxu0
    %v492 = vpop.f32.mrf.mxu0
    %493 = vdwg.mxu0
    %v494 = vmul.f32 %v438, 1.442695
    %v495 = vpow.pop %v494
    %v496 = vmul.f32 %v489, 1.442695
    %v497 = vpow.pop %v496
    %v498 = vsel %vm181, %v495, 0.0
    %499 = vadd.xlane.f32.xlu0 %v498
    %v500 = vpop.xlane.xlu0 %499
    %v501 = vsel %vm181, %v497, 0.0
    %502 = vadd.xlane.f32.xlu0 %v501
    %v503 = vpop.xlane.xlu0 %502
    %v504 = vrcp.pop %v500
    %v505 = vrcp.pop %v503
    %v506 = vmul.f32 %v495, %v504
    %v507 = vmul.f32 %v497, %v505
    %v508 = vpack.c.bf16 %v506, %v506
    %v509 = vpack.c.bf16 %v507, %v507
    %510 = vrot.lane.b32.xlu0 %v176, 56
    %v511 = vpop.permute.xlu0 %510
    %v513 = vsel %vm181, %v508, 0
    %v516 = vsel %vm299, %v511, 0
    %518 = vmatprep.subr.bf16.mxu0 0
    %519 = vmatpush1.bf16.msra.mxu0 0
    %520 = vmatprep.subr.bf16.mxu0 0
    %521 = vmatpush1.bf16.msra.mxu0 0
    %522 = vmatprep.subr.bf16.mxu0 0
    %523 = vmatpush1.bf16.msra.mxu0 0
    %524 = vmatprep.subr.bf16.mxu0 0
    %525 = vmatpush1.bf16.msra.mxu0 0
    %526 = vmatprep.subr.bf16.mxu0 0
    %527 = vmatpush1.bf16.msra.mxu0 0
    %528 = vmatprep.subr.bf16.mxu0 0
    %529 = vmatpush1.bf16.msra.mxu0 0
    %530 = vmatprep.subr.bf16.mxu0 0
    %531 = vmatpush1.bf16.msra.mxu0 0
    %532 = vmatprep.subr.bf16.mxu0 0
    %533 = vmatpush1.bf16.msra.mxu0 %v516
    %534 = vmatprep.subr.bf16.mxu0 0
    %535 = vmatpush2.bf16.msra.mxu0 0
    %536 = vmatprep.subr.bf16.mxu0 0
    %537 = vmatpush2.bf16.msra.mxu0 0
    %538 = vmatprep.subr.bf16.mxu0 0
    %539 = vmatpush2.bf16.msra.mxu0 0
    %540 = vmatprep.subr.bf16.mxu0 0
    %541 = vmatpush2.bf16.msra.mxu0 0
    %542 = vmatprep.subr.bf16.mxu0 0
    %543 = vmatpush2.bf16.msra.mxu0 0
    %544 = vmatprep.subr.bf16.mxu0 0
    %545 = vmatpush2.bf16.msra.mxu0 0
    %546 = vmatprep.subr.bf16.mxu0 0
    %547 = vmatpush2.bf16.msra.mxu0 0
    %548 = vmatprep.subr.bf16.mxu0 0
    %549 = vmatpush2.bf16.msra.mxu0 0
    %550 = vmatprep.mubr.bf16.mxu0 0
    %551 = vmatmul.mubr.bf16.gmra.mxu0 %v513
    %v552 = vpop.f32.mrf.mxu0
    %v553 = vadd.f32 0.0, %v552
    %v554 = vpop.f32.mrf.mxu0
    %v555 = vpop.f32.mrf.mxu0
    %v556 = vpop.f32.mrf.mxu0
    %557 = vdwg.mxu0
    %558 = vrot.lane.b32.xlu0 %v177, 56
    %v559 = vpop.permute.xlu0 %558
    %v561 = vsel %vm181, %v509, 0
    %v564 = vsel %vm299, %v559, 0
    %566 = vmatprep.subr.bf16.mxu0 0
    %567 = vmatpush1.bf16.msra.mxu0 0
    %568 = vmatprep.subr.bf16.mxu0 0
    %569 = vmatpush1.bf16.msra.mxu0 0
    %570 = vmatprep.subr.bf16.mxu0 0
    %571 = vmatpush1.bf16.msra.mxu0 0
    %572 = vmatprep.subr.bf16.mxu0 0
    %573 = vmatpush1.bf16.msra.mxu0 0
    %574 = vmatprep.subr.bf16.mxu0 0
    %575 = vmatpush1.bf16.msra.mxu0 0
    %576 = vmatprep.subr.bf16.mxu0 0
    %577 = vmatpush1.bf16.msra.mxu0 0
    %578 = vmatprep.subr.bf16.mxu0 0
    %579 = vmatpush1.bf16.msra.mxu0 0
    %580 = vmatprep.subr.bf16.mxu0 0
    %581 = vmatpush1.bf16.msra.mxu0 %v564
    %582 = vmatprep.subr.bf16.mxu0 0
    %583 = vmatpush2.bf16.msra.mxu0 0
    %584 = vmatprep.subr.bf16.mxu0 0
    %585 = vmatpush2.bf16.msra.mxu0 0
    %586 = vmatprep.subr.bf16.mxu0 0
    %587 = vmatpush2.bf16.msra.mxu0 0
    %588 = vmatprep.subr.bf16.mxu0 0
    %589 = vmatpush2.bf16.msra.mxu0 0
    %590 = vmatprep.subr.bf16.mxu0 0
    %591 = vmatpush2.bf16.msra.mxu0 0
    %592 = vmatprep.subr.bf16.mxu0 0
    %593 = vmatpush2.bf16.msra.mxu0 0
    %594 = vmatprep.subr.bf16.mxu0 0
    %595 = vmatpush2.bf16.msra.mxu0 0
    %596 = vmatprep.subr.bf16.mxu0 0
    %597 = vmatpush2.bf16.msra.mxu0 0
    %598 = vmatprep.mubr.bf16.mxu0 0
    %599 = vmatmul.mubr.bf16.gmra.mxu0 %v561
    %v600 = vpop.f32.mrf.mxu0
    %v601 = vadd.f32 0.0, %v600
    %v602 = vpop.f32.mrf.mxu0
    %v603 = vpop.f32.mrf.mxu0
    %v604 = vpop.f32.mrf.mxu0
    %605 = vdwg.mxu0
    %606 = vrot.lane.b32.xlu0 %v172, 112
    %v607 = vpop.permute.xlu0 %606
    %608 = vrot.lane.b32.xlu0 %v174, 80
    %v609 = vpop.permute.xlu0 %608
    %v611 = vsel %vm181, %v607, 0
    %v614 = vsel %vm181, %v609, 0
    %616 = vmatprep.subr.bf16.mxu0 0
    %617 = vmatpush1.bf16.xpose.msra.mxu0 0
    %618 = vmatprep.subr.bf16.mxu0 0
    %619 = vmatpush1.bf16.xpose.msra.mxu0 0
    %620 = vmatprep.subr.bf16.mxu0 0
    %621 = vmatpush1.bf16.xpose.msra.mxu0 0
    %622 = vmatprep.subr.bf16.mxu0 0
    %623 = vmatpush1.bf16.xpose.msra.mxu0 0
    %624 = vmatprep.subr.bf16.mxu0 0
    %625 = vmatpush1.bf16.xpose.msra.mxu0 0
    %626 = vmatprep.subr.bf16.mxu0 0
    %627 = vmatpush1.bf16.xpose.msra.mxu0 0
    %628 = vmatprep.subr.bf16.mxu0 0
    %629 = vmatpush1.bf16.xpose.msra.mxu0 0
    %630 = vmatprep.subr.bf16.mxu0 0
    %631 = vmatpush1.bf16.xpose.msra.mxu0 %v614
    %632 = vmatprep.subr.bf16.mxu0 0
    %633 = vmatpush2.bf16.xpose.msra.mxu0 0
    %634 = vmatprep.subr.bf16.mxu0 0
    %635 = vmatpush2.bf16.xpose.msra.mxu0 0
    %636 = vmatprep.subr.bf16.mxu0 0
    %637 = vmatpush2.bf16.xpose.msra.mxu0 0
    %638 = vmatprep.subr.bf16.mxu0 0
    %639 = vmatpush2.bf16.xpose.msra.mxu0 0
    %640 = vmatprep.subr.bf16.mxu0 0
    %641 = vmatpush2.bf16.xpose.msra.mxu0 0
    %642 = vmatprep.subr.bf16.mxu0 0
    %643 = vmatpush2.bf16.xpose.msra.mxu0 0
    %644 = vmatprep.subr.bf16.mxu0 0
    %645 = vmatpush2.bf16.xpose.msra.mxu0 0
    %646 = vmatprep.subr.bf16.mxu0 0
    %647 = vmatpush2.bf16.xpose.msra.mxu0 0
    %648 = vmatprep.mubr.bf16.mxu0 0
    %649 = vmatmul.mubr.bf16.gmra.mxu0 %v611
    %v650 = vpop.f32.mrf.mxu0
    %v651 = vadd.f32 %v74, %v650
    %v652 = vpop.f32.mrf.mxu0
    %v653 = vpop.f32.mrf.mxu0
    %v654 = vpop.f32.mrf.mxu0
    %655 = vdwg.mxu0
    %656 = vrot.lane.b32.xlu0 %v173, 112
    %v657 = vpop.permute.xlu0 %656
    %658 = vrot.lane.b32.xlu0 %v175, 80
    %v659 = vpop.permute.xlu0 %658
    %v661 = vsel %vm181, %v657, 0
    %v664 = vsel %vm181, %v659, 0
    %666 = vmatprep.subr.bf16.mxu0 0
    %667 = vmatpush1.bf16.xpose.msra.mxu0 0
    %668 = vmatprep.subr.bf16.mxu0 0
    %669 = vmatpush1.bf16.xpose.msra.mxu0 0
    %670 = vmatprep.subr.bf16.mxu0 0
    %671 = vmatpush1.bf16.xpose.msra.mxu0 0
    %672 = vmatprep.subr.bf16.mxu0 0
    %673 = vmatpush1.bf16.xpose.msra.mxu0 0
    %674 = vmatprep.subr.bf16.mxu0 0
    %675 = vmatpush1.bf16.xpose.msra.mxu0 0
    %676 = vmatprep.subr.bf16.mxu0 0
    %677 = vmatpush1.bf16.xpose.msra.mxu0 0
    %678 = vmatprep.subr.bf16.mxu0 0
    %679 = vmatpush1.bf16.xpose.msra.mxu0 0
    %680 = vmatprep.subr.bf16.mxu0 0
    %681 = vmatpush1.bf16.xpose.msra.mxu0 %v664
    %682 = vmatprep.subr.bf16.mxu0 0
    %683 = vmatpush2.bf16.xpose.msra.mxu0 0
    %684 = vmatprep.subr.bf16.mxu0 0
    %685 = vmatpush2.bf16.xpose.msra.mxu0 0
    %686 = vmatprep.subr.bf16.mxu0 0
    %687 = vmatpush2.bf16.xpose.msra.mxu0 0
    %688 = vmatprep.subr.bf16.mxu0 0
    %689 = vmatpush2.bf16.xpose.msra.mxu0 0
    %690 = vmatprep.subr.bf16.mxu0 0
    %691 = vmatpush2.bf16.xpose.msra.mxu0 0
    %692 = vmatprep.subr.bf16.mxu0 0
    %693 = vmatpush2.bf16.xpose.msra.mxu0 0
    %694 = vmatprep.subr.bf16.mxu0 0
    %695 = vmatpush2.bf16.xpose.msra.mxu0 0
    %696 = vmatprep.subr.bf16.mxu0 0
    %697 = vmatpush2.bf16.xpose.msra.mxu0 0
    %698 = vmatprep.mubr.bf16.mxu0 0
    %699 = vmatmul.mubr.bf16.gmra.mxu0 %v661
    %v700 = vpop.f32.mrf.mxu0
    %v701 = vadd.f32 %v75, %v700
    %v702 = vpop.f32.mrf.mxu0
    %v703 = vpop.f32.mrf.mxu0
    %v704 = vpop.f32.mrf.mxu0
    %705 = vdwg.mxu0
    %v706 = vmul.f32 %v651, 1.442695
    %v707 = vpow.pop %v706
    %v708 = vmul.f32 %v701, 1.442695
    %v709 = vpow.pop %v708
    %v710 = vsel %vm181, %v707, 0.0
    %711 = vadd.xlane.f32.xlu0 %v710
    %v712 = vpop.xlane.xlu0 %711
    %v713 = vsel %vm181, %v709, 0.0
    %714 = vadd.xlane.f32.xlu0 %v713
    %v715 = vpop.xlane.xlu0 %714
    %v716 = vrcp.pop %v712
    %v717 = vrcp.pop %v715
    %v718 = vmul.f32 %v707, %v716
    %v719 = vmul.f32 %v709, %v717
    %v720 = vpack.c.bf16 %v718, %v718
    %v721 = vpack.c.bf16 %v719, %v719
    %722 = vrot.lane.b32.xlu0 %v176, 48
    %v723 = vpop.permute.xlu0 %722
    %v725 = vsel %vm181, %v720, 0
    %v728 = vsel %vm299, %v723, 0
    %730 = vmatprep.subr.bf16.mxu0 0
    %731 = vmatpush1.bf16.msra.mxu0 0
    %732 = vmatprep.subr.bf16.mxu0 0
    %733 = vmatpush1.bf16.msra.mxu0 0
    %734 = vmatprep.subr.bf16.mxu0 0
    %735 = vmatpush1.bf16.msra.mxu0 0
    %736 = vmatprep.subr.bf16.mxu0 0
    %737 = vmatpush1.bf16.msra.mxu0 0
    %738 = vmatprep.subr.bf16.mxu0 0
    %739 = vmatpush1.bf16.msra.mxu0 0
    %740 = vmatprep.subr.bf16.mxu0 0
    %741 = vmatpush1.bf16.msra.mxu0 0
    %742 = vmatprep.subr.bf16.mxu0 0
    %743 = vmatpush1.bf16.msra.mxu0 0
    %744 = vmatprep.subr.bf16.mxu0 0
    %745 = vmatpush1.bf16.msra.mxu0 %v728
    %746 = vmatprep.subr.bf16.mxu0 0
    %747 = vmatpush2.bf16.msra.mxu0 0
    %748 = vmatprep.subr.bf16.mxu0 0
    %749 = vmatpush2.bf16.msra.mxu0 0
    %750 = vmatprep.subr.bf16.mxu0 0
    %751 = vmatpush2.bf16.msra.mxu0 0
    %752 = vmatprep.subr.bf16.mxu0 0
    %753 = vmatpush2.bf16.msra.mxu0 0
    %754 = vmatprep.subr.bf16.mxu0 0
    %755 = vmatpush2.bf16.msra.mxu0 0
    %756 = vmatprep.subr.bf16.mxu0 0
    %757 = vmatpush2.bf16.msra.mxu0 0
    %758 = vmatprep.subr.bf16.mxu0 0
    %759 = vmatpush2.bf16.msra.mxu0 0
    %760 = vmatprep.subr.bf16.mxu0 0
    %761 = vmatpush2.bf16.msra.mxu0 0
    %762 = vmatprep.mubr.bf16.mxu0 0
    %763 = vmatmul.mubr.bf16.gmra.mxu0 %v725
    %v764 = vpop.f32.mrf.mxu0
    %v765 = vadd.f32 0.0, %v764
    %v766 = vpop.f32.mrf.mxu0
    %v767 = vpop.f32.mrf.mxu0
    %v768 = vpop.f32.mrf.mxu0
    %769 = vdwg.mxu0
    %770 = vrot.lane.b32.xlu0 %v177, 48
    %v771 = vpop.permute.xlu0 %770
    %v773 = vsel %vm181, %v721, 0
    %v776 = vsel %vm299, %v771, 0
    %778 = vmatprep.subr.bf16.mxu0 0
    %779 = vmatpush1.bf16.msra.mxu0 0
    %780 = vmatprep.subr.bf16.mxu0 0
    %781 = vmatpush1.bf16.msra.mxu0 0
    %782 = vmatprep.subr.bf16.mxu0 0
    %783 = vmatpush1.bf16.msra.mxu0 0
    %784 = vmatprep.subr.bf16.mxu0 0
    %785 = vmatpush1.bf16.msra.mxu0 0
    %786 = vmatprep.subr.bf16.mxu0 0
    %787 = vmatpush1.bf16.msra.mxu0 0
    %788 = vmatprep.subr.bf16.mxu0 0
    %789 = vmatpush1.bf16.msra.mxu0 0
    %790 = vmatprep.subr.bf16.mxu0 0
    %791 = vmatpush1.bf16.msra.mxu0 0
    %792 = vmatprep.subr.bf16.mxu0 0
    %793 = vmatpush1.bf16.msra.mxu0 %v776
    %794 = vmatprep.subr.bf16.mxu0 0
    %795 = vmatpush2.bf16.msra.mxu0 0
    %796 = vmatprep.subr.bf16.mxu0 0
    %797 = vmatpush2.bf16.msra.mxu0 0
    %798 = vmatprep.subr.bf16.mxu0 0
    %799 = vmatpush2.bf16.msra.mxu0 0
    %800 = vmatprep.subr.bf16.mxu0 0
    %801 = vmatpush2.bf16.msra.mxu0 0
    %802 = vmatprep.subr.bf16.mxu0 0
    %803 = vmatpush2.bf16.msra.mxu0 0
    %804 = vmatprep.subr.bf16.mxu0 0
    %805 = vmatpush2.bf16.msra.mxu0 0
    %806 = vmatprep.subr.bf16.mxu0 0
    %807 = vmatpush2.bf16.msra.mxu0 0
    %808 = vmatprep.subr.bf16.mxu0 0
    %809 = vmatpush2.bf16.msra.mxu0 0
    %810 = vmatprep.mubr.bf16.mxu0 0
    %811 = vmatmul.mubr.bf16.gmra.mxu0 %v773
    %v812 = vpop.f32.mrf.mxu0
    %v813 = vadd.f32 0.0, %v812
    %v814 = vpop.f32.mrf.mxu0
    %v815 = vpop.f32.mrf.mxu0
    %v816 = vpop.f32.mrf.mxu0
    %817 = vdwg.mxu0
    %818 = vrot.lane.b32.xlu0 %v172, 104
    %v819 = vpop.permute.xlu0 %818
    %820 = vrot.lane.b32.xlu0 %v174, 72
    %v821 = vpop.permute.xlu0 %820
    %v823 = vsel %vm181, %v819, 0
    %v826 = vsel %vm181, %v821, 0
    %828 = vmatprep.subr.bf16.mxu0 0
    %829 = vmatpush1.bf16.xpose.msra.mxu0 0
    %830 = vmatprep.subr.bf16.mxu0 0
    %831 = vmatpush1.bf16.xpose.msra.mxu0 0
    %832 = vmatprep.subr.bf16.mxu0 0
    %833 = vmatpush1.bf16.xpose.msra.mxu0 0
    %834 = vmatprep.subr.bf16.mxu0 0
    %835 = vmatpush1.bf16.xpose.msra.mxu0 0
    %836 = vmatprep.subr.bf16.mxu0 0
    %837 = vmatpush1.bf16.xpose.msra.mxu0 0
    %838 = vmatprep.subr.bf16.mxu0 0
    %839 = vmatpush1.bf16.xpose.msra.mxu0 0
    %840 = vmatprep.subr.bf16.mxu0 0
    %841 = vmatpush1.bf16.xpose.msra.mxu0 0
    %842 = vmatprep.subr.bf16.mxu0 0
    %843 = vmatpush1.bf16.xpose.msra.mxu0 %v826
    %844 = vmatprep.subr.bf16.mxu0 0
    %845 = vmatpush2.bf16.xpose.msra.mxu0 0
    %846 = vmatprep.subr.bf16.mxu0 0
    %847 = vmatpush2.bf16.xpose.msra.mxu0 0
    %848 = vmatprep.subr.bf16.mxu0 0
    %849 = vmatpush2.bf16.xpose.msra.mxu0 0
    %850 = vmatprep.subr.bf16.mxu0 0
    %851 = vmatpush2.bf16.xpose.msra.mxu0 0
    %852 = vmatprep.subr.bf16.mxu0 0
    %853 = vmatpush2.bf16.xpose.msra.mxu0 0
    %854 = vmatprep.subr.bf16.mxu0 0
    %855 = vmatpush2.bf16.xpose.msra.mxu0 0
    %856 = vmatprep.subr.bf16.mxu0 0
    %857 = vmatpush2.bf16.xpose.msra.mxu0 0
    %858 = vmatprep.subr.bf16.mxu0 0
    %859 = vmatpush2.bf16.xpose.msra.mxu0 0
    %860 = vmatprep.mubr.bf16.mxu0 0
    %861 = vmatmul.mubr.bf16.gmra.mxu0 %v823
    %v862 = vpop.f32.mrf.mxu0
    %v863 = vadd.f32 %v74, %v862
    %v864 = vpop.f32.mrf.mxu0
    %v865 = vpop.f32.mrf.mxu0
    %v866 = vpop.f32.mrf.mxu0
    %867 = vdwg.mxu0
    %868 = vrot.lane.b32.xlu0 %v173, 104
    %v869 = vpop.permute.xlu0 %868
    %870 = vrot.lane.b32.xlu0 %v175, 72
    %v871 = vpop.permute.xlu0 %870
    %v873 = vsel %vm181, %v869, 0
    %v876 = vsel %vm181, %v871, 0
    %878 = vmatprep.subr.bf16.mxu0 0
    %879 = vmatpush1.bf16.xpose.msra.mxu0 0
    %880 = vmatprep.subr.bf16.mxu0 0
    %881 = vmatpush1.bf16.xpose.msra.mxu0 0
    %882 = vmatprep.subr.bf16.mxu0 0
    %883 = vmatpush1.bf16.xpose.msra.mxu0 0
    %884 = vmatprep.subr.bf16.mxu0 0
    %885 = vmatpush1.bf16.xpose.msra.mxu0 0
    %886 = vmatprep.subr.bf16.mxu0 0
    %887 = vmatpush1.bf16.xpose.msra.mxu0 0
    %888 = vmatprep.subr.bf16.mxu0 0
    %889 = vmatpush1.bf16.xpose.msra.mxu0 0
    %890 = vmatprep.subr.bf16.mxu0 0
    %891 = vmatpush1.bf16.xpose.msra.mxu0 0
    %892 = vmatprep.subr.bf16.mxu0 0
    %893 = vmatpush1.bf16.xpose.msra.mxu0 %v876
    %894 = vmatprep.subr.bf16.mxu0 0
    %895 = vmatpush2.bf16.xpose.msra.mxu0 0
    %896 = vmatprep.subr.bf16.mxu0 0
    %897 = vmatpush2.bf16.xpose.msra.mxu0 0
    %898 = vmatprep.subr.bf16.mxu0 0
    %899 = vmatpush2.bf16.xpose.msra.mxu0 0
    %900 = vmatprep.subr.bf16.mxu0 0
    %901 = vmatpush2.bf16.xpose.msra.mxu0 0
    %902 = vmatprep.subr.bf16.mxu0 0
    %903 = vmatpush2.bf16.xpose.msra.mxu0 0
    %904 = vmatprep.subr.bf16.mxu0 0
    %905 = vmatpush2.bf16.xpose.msra.mxu0 0
    %906 = vmatprep.subr.bf16.mxu0 0
    %907 = vmatpush2.bf16.xpose.msra.mxu0 0
    %908 = vmatprep.subr.bf16.mxu0 0
    %909 = vmatpush2.bf16.xpose.msra.mxu0 0
    %910 = vmatprep.mubr.bf16.mxu0 0
    %911 = vmatmul.mubr.bf16.gmra.mxu0 %v873
    %v912 = vpop.f32.mrf.mxu0
    %v913 = vadd.f32 %v75, %v912
    %v914 = vpop.f32.mrf.mxu0
    %v915 = vpop.f32.mrf.mxu0
    %v916 = vpop.f32.mrf.mxu0
    %917 = vdwg.mxu0
    %v918 = vmul.f32 %v863, 1.442695
    %v919 = vpow.pop %v918
    %v920 = vmul.f32 %v913, 1.442695
    %v921 = vpow.pop %v920
    %v922 = vsel %vm181, %v919, 0.0
    %923 = vadd.xlane.f32.xlu0 %v922
    %v924 = vpop.xlane.xlu0 %923
    %v925 = vsel %vm181, %v921, 0.0
    %926 = vadd.xlane.f32.xlu0 %v925
    %v927 = vpop.xlane.xlu0 %926
    %v928 = vrcp.pop %v924
    %v929 = vrcp.pop %v927
    %v930 = vmul.f32 %v919, %v928
    %v931 = vmul.f32 %v921, %v929
    %v932 = vpack.c.bf16 %v930, %v930
    %v933 = vpack.c.bf16 %v931, %v931
    %934 = vrot.lane.b32.xlu0 %v176, 40
    %v935 = vpop.permute.xlu0 %934
    %v937 = vsel %vm181, %v932, 0
    %v940 = vsel %vm299, %v935, 0
    %942 = vmatprep.subr.bf16.mxu0 0
    %943 = vmatpush1.bf16.msra.mxu0 0
    %944 = vmatprep.subr.bf16.mxu0 0
    %945 = vmatpush1.bf16.msra.mxu0 0
    %946 = vmatprep.subr.bf16.mxu0 0
    %947 = vmatpush1.bf16.msra.mxu0 0
    %948 = vmatprep.subr.bf16.mxu0 0
    %949 = vmatpush1.bf16.msra.mxu0 0
    %950 = vmatprep.subr.bf16.mxu0 0
    %951 = vmatpush1.bf16.msra.mxu0 0
    %952 = vmatprep.subr.bf16.mxu0 0
    %953 = vmatpush1.bf16.msra.mxu0 0
    %954 = vmatprep.subr.bf16.mxu0 0
    %955 = vmatpush1.bf16.msra.mxu0 0
    %956 = vmatprep.subr.bf16.mxu0 0
    %957 = vmatpush1.bf16.msra.mxu0 %v940
    %958 = vmatprep.subr.bf16.mxu0 0
    %959 = vmatpush2.bf16.msra.mxu0 0
    %960 = vmatprep.subr.bf16.mxu0 0
    %961 = vmatpush2.bf16.msra.mxu0 0
    %962 = vmatprep.subr.bf16.mxu0 0
    %963 = vmatpush2.bf16.msra.mxu0 0
    %964 = vmatprep.subr.bf16.mxu0 0
    %965 = vmatpush2.bf16.msra.mxu0 0
    %966 = vmatprep.subr.bf16.mxu0 0
    %967 = vmatpush2.bf16.msra.mxu0 0
    %968 = vmatprep.subr.bf16.mxu0 0
    %969 = vmatpush2.bf16.msra.mxu0 0
    %970 = vmatprep.subr.bf16.mxu0 0
    %971 = vmatpush2.bf16.msra.mxu0 0
    %972 = vmatprep.subr.bf16.mxu0 0
    %973 = vmatpush2.bf16.msra.mxu0 0
    %974 = vmatprep.mubr.bf16.mxu0 0
    %975 = vmatmul.mubr.bf16.gmra.mxu0 %v937
    %v976 = vpop.f32.mrf.mxu0
    %v977 = vadd.f32 0.0, %v976
    %v978 = vpop.f32.mrf.mxu0
    %v979 = vpop.f32.mrf.mxu0
    %v980 = vpop.f32.mrf.mxu0
    %981 = vdwg.mxu0
    %982 = vrot.lane.b32.xlu0 %v177, 40
    %v983 = vpop.permute.xlu0 %982
    %v985 = vsel %vm181, %v933, 0
    %v988 = vsel %vm299, %v983, 0
    %990 = vmatprep.subr.bf16.mxu0 0
    %991 = vmatpush1.bf16.msra.mxu0 0
    %992 = vmatprep.subr.bf16.mxu0 0
    %993 = vmatpush1.bf16.msra.mxu0 0
    %994 = vmatprep.subr.bf16.mxu0 0
    %995 = vmatpush1.bf16.msra.mxu0 0
    %996 = vmatprep.subr.bf16.mxu0 0
    %997 = vmatpush1.bf16.msra.mxu0 0
    %998 = vmatprep.subr.bf16.mxu0 0
    %999 = vmatpush1.bf16.msra.mxu0 0
    %1000 = vmatprep.subr.bf16.mxu0 0
    %1001 = vmatpush1.bf16.msra.mxu0 0
    %1002 = vmatprep.subr.bf16.mxu0 0
    %1003 = vmatpush1.bf16.msra.mxu0 0
    %1004 = vmatprep.subr.bf16.mxu0 0
    %1005 = vmatpush1.bf16.msra.mxu0 %v988
    %1006 = vmatprep.subr.bf16.mxu0 0
    %1007 = vmatpush2.bf16.msra.mxu0 0
    %1008 = vmatprep.subr.bf16.mxu0 0
    %1009 = vmatpush2.bf16.msra.mxu0 0
    %1010 = vmatprep.subr.bf16.mxu0 0
    %1011 = vmatpush2.bf16.msra.mxu0 0
    %1012 = vmatprep.subr.bf16.mxu0 0
    %1013 = vmatpush2.bf16.msra.mxu0 0
    %1014 = vmatprep.subr.bf16.mxu0 0
    %1015 = vmatpush2.bf16.msra.mxu0 0
    %1016 = vmatprep.subr.bf16.mxu0 0
    %1017 = vmatpush2.bf16.msra.mxu0 0
    %1018 = vmatprep.subr.bf16.mxu0 0
    %1019 = vmatpush2.bf16.msra.mxu0 0
    %1020 = vmatprep.subr.bf16.mxu0 0
    %1021 = vmatpush2.bf16.msra.mxu0 0
    %1022 = vmatprep.mubr.bf16.mxu0 0
    %1023 = vmatmul.mubr.bf16.gmra.mxu0 %v985
    %v1024 = vpop.f32.mrf.mxu0
    %v1025 = vadd.f32 0.0, %v1024
    %v1026 = vpop.f32.mrf.mxu0
    %v1027 = vpop.f32.mrf.mxu0
    %v1028 = vpop.f32.mrf.mxu0
    %1029 = vdwg.mxu0
    %1032 = vrot.lane.b32.xlu0 %v553, 8
    %v1033 = vpop.permute.xlu0 %1032
    %1034 = vrot.lane.b32.xlu0 %v601, 8
    %v1035 = vpop.permute.xlu0 %1034
    %1040 = vrot.lane.b32.xlu0 %v765, 16
    %v1041 = vpop.permute.xlu0 %1040
    %1042 = vrot.lane.b32.xlu0 %v813, 16
    %v1043 = vpop.permute.xlu0 %1042
    %1048 = vrot.lane.b32.xlu0 %v977, 24
    %v1049 = vpop.permute.xlu0 %1048
    %1050 = vrot.lane.b32.xlu0 %v1025, 24
    %v1051 = vpop.permute.xlu0 %1050
    %v1054 = vsel %vm181, %v338, %v1033
    %v1055 = vsel %vm181, %v387, %v1035
    %vm1056 = vcmask 130048
    %v1057 = vsel %vm1056, %v1054, %v1041
    %v1058 = vsel %vm1056, %v1055, %v1043
    %vm1059 = vcmask 195584
    %v1060 = vsel %vm1059, %v1057, %v1049
    %v1061 = vsel %vm1059, %v1058, %v1051
    %v1062 = vpack.c.bf16 %v1061, %v1060
    %v1063 = vlaneseq
    %v1064 = vshrl.u32 %v1063, 7
    %v1065 = vsub.s32 3, %v1064
    %v1066 = vrot.slane %v76, %v1065
    %v1071 = vunpack.c.l.b16 %v168
    %v1072 = vunpack.c.l.b16 %v169
    %v1073 = vunpack.c.l.b16 %v170
    %v1074 = vunpack.c.l.b16 %v171
    %v1075 = vpack.c.b16 %v1072, %v1071
    %v1076 = vpack.c.b16 %v1074, %v1073
    %v1080 = vsel %vm97, %v1062, 0
    %1082 = vmatprep.subr.bf16.mxu0 0
    %1083 = vmatpush1.bf16.msra.mxu0 0
    %1084 = vmatprep.subr.bf16.mxu0 0
    %1085 = vmatpush1.bf16.msra.mxu0 0
    %1086 = vmatprep.subr.bf16.mxu0 0
    %1087 = vmatpush1.bf16.msra.mxu0 0
    %1088 = vmatprep.subr.bf16.mxu0 0
    %1089 = vmatpush1.bf16.msra.mxu0 0
    %1090 = vmatprep.subr.bf16.mxu0 0
    %1091 = vmatpush1.bf16.msra.mxu0 0
    %1092 = vmatprep.subr.bf16.mxu0 0
    %1093 = vmatpush1.bf16.msra.mxu0 0
    %1094 = vmatprep.subr.bf16.mxu0 0
    %1095 = vmatpush1.bf16.msra.mxu0 %v1076
    %1096 = vmatprep.subr.bf16.mxu0 0
    %1097 = vmatpush1.bf16.msra.mxu0 %v1075
    %1098 = vmatprep.subr.bf16.mxu0 0
    %1099 = vmatpush2.bf16.msra.mxu0 0
    %1100 = vmatprep.subr.bf16.mxu0 0
    %1101 = vmatpush2.bf16.msra.mxu0 0
    %1102 = vmatprep.subr.bf16.mxu0 0
    %1103 = vmatpush2.bf16.msra.mxu0 0
    %1104 = vmatprep.subr.bf16.mxu0 0
    %1105 = vmatpush2.bf16.msra.mxu0 0
    %1106 = vmatprep.subr.bf16.mxu0 0
    %1107 = vmatpush2.bf16.msra.mxu0 0
    %1108 = vmatprep.subr.bf16.mxu0 0
    %1109 = vmatpush2.bf16.msra.mxu0 0
    %1110 = vmatprep.subr.bf16.mxu0 0
    %1111 = vmatpush2.bf16.msra.mxu0 0
    %1112 = vmatprep.subr.bf16.mxu0 0
    %1113 = vmatpush2.bf16.msra.mxu0 0
    %1114 = vmatprep.mubr.bf16.mxu0 0
    %1115 = vmatmul.mubr.bf16.gmra.mxu0 %v1080
    %v1116 = vpop.f32.mrf.mxu0
    %v1117 = vadd.f32 %v1066, %v1116
    %v1118 = vpop.f32.mrf.mxu0
    %v1119 = vpop.f32.mrf.mxu0
    %v1120 = vadd.f32 %v1066, %v1119
    %v1121 = vpop.f32.mrf.mxu0
    %1122 = vdwg.mxu0
    %v1123 = vadd.f32 %v78, %v1117
    %v1124 = vadd.f32 %v79, %v1120
    %v1125 = vsel %vm97, %v1123, 0.0
    %1126 = vadd.xlane.f32.xlu0 %v1125
    %v1127 = vpop.xlane.xlu0 %1126
    %v1128 = vsel %vm97, %v1124, 0.0
    %1129 = vadd.xlane.f32.xlu0 %v1128
    %v1130 = vpop.xlane.xlu0 %1129
    %v1131 = vrcp.pop 32.0
    %v1132 = vmul.f32 %v1127, %v1131
    %v1133 = vmul.f32 %v1130, %v1131
    %v1134 = vsub.f32 %v1123, %v1132
    %v1135 = vsub.f32 %v1124, %v1133
    %v1136 = vmul.f32 %v1134, %v1134
    %v1137 = vmul.f32 %v1135, %v1135
    %v1138 = vsel %vm97, %v1136, 0.0
    %1139 = vadd.xlane.f32.xlu0 %v1138
    %v1140 = vpop.xlane.xlu0 %1139
    %v1141 = vsel %vm97, %v1137, 0.0
    %1142 = vadd.xlane.f32.xlu0 %v1141
    %v1143 = vpop.xlane.xlu0 %1142
    %v1144 = vmul.f32 %v1140, %v1131
    %v1145 = vmul.f32 %v1143, %v1131
    %v1146 = vadd.f32 %v1144, 1e-05
    %v1147 = vadd.f32 %v1145, 1e-05
    %v1148 = vrsqrt.pop %v1146
    %v1149 = vrsqrt.pop %v1147
    %v1150 = vmul.f32 %v1134, %v1148
    %v1151 = vmul.f32 %v1135, %v1149
    %v1152 = vlaneseq
    %v1153 = vshrl.u32 %v1152, 7
    %v1154 = vsub.s32 2, %v1153
    %v1155 = vrot.slane %v77, %v1154
    %v1156 = vmul.f32 %v1150, %v1155
    %v1157 = vmul.f32 %v1151, %v1155
    %v1158 = vlaneseq
    %v1159 = vshrl.u32 %v1158, 7
    %v1160 = vsub.s32 5, %v1159
    %v1161 = vrot.slane %v77, %v1160
    %v1162 = vadd.f32 %v1156, %v1161
    %v1163 = vadd.f32 %v1157, %v1161
    %v1164 = vld [vmem:[#allocation5] sm:$0xff]
    %v1165 = vld [vmem:[#allocation5 + $0x8] sm:$0xff]
    %v1166 = vpack.c.bf16 %v1163, %v1162
    %v1167 = vld [vmem:[#allocation7 + $0x10] sm:$0xf]
    %v1168 = vld [vmem:[#allocation7 + $0x14] sm:$0xf]
    %v1169 = vld [vmem:[#allocation7 + $0x18] sm:$0xf]
    %v1170 = vld [vmem:[#allocation7 + $0x1c] sm:$0xf]
    %v1171 = vpack.c.bf16 %v1165, %v1164
    %v1176 = vunpack.c.l.b16 %v1167
    %v1177 = vunpack.c.l.b16 %v1168
    %v1178 = vunpack.c.l.b16 %v1169
    %v1179 = vunpack.c.l.b16 %v1170
    %v1180 = vpack.c.b16 %v1177, %v1176
    %v1181 = vpack.c.b16 %v1179, %v1178
    %1182 = vrot.lane.b32.xlu0 %v1180, 96
    %v1183 = vpop.permute.xlu0 %1182
    %1184 = vrot.lane.b32.xlu0 %v1181, 96
    %v1185 = vpop.permute.xlu0 %1184
    %v1189 = vsel %vm97, %v1171, 0
    %1191 = vmatprep.subr.bf16.mxu0 0
    %1192 = vmatpush1.bf16.msra.mxu0 0
    %1193 = vmatprep.subr.bf16.mxu0 0
    %1194 = vmatpush1.bf16.msra.mxu0 0
    %1195 = vmatprep.subr.bf16.mxu0 0
    %1196 = vmatpush1.bf16.msra.mxu0 0
    %1197 = vmatprep.subr.bf16.mxu0 0
    %1198 = vmatpush1.bf16.msra.mxu0 0
    %1199 = vmatprep.subr.bf16.mxu0 0
    %1200 = vmatpush1.bf16.msra.mxu0 0
    %1201 = vmatprep.subr.bf16.mxu0 0
    %1202 = vmatpush1.bf16.msra.mxu0 0
    %1203 = vmatprep.subr.bf16.mxu0 0
    %1204 = vmatpush1.bf16.msra.mxu0 %v1185
    %1205 = vmatprep.subr.bf16.mxu0 0
    %1206 = vmatpush1.bf16.msra.mxu0 %v1183
    %1207 = vmatprep.subr.bf16.mxu0 0
    %1208 = vmatpush2.bf16.msra.mxu0 0
    %1209 = vmatprep.subr.bf16.mxu0 0
    %1210 = vmatpush2.bf16.msra.mxu0 0
    %1211 = vmatprep.subr.bf16.mxu0 0
    %1212 = vmatpush2.bf16.msra.mxu0 0
    %1213 = vmatprep.subr.bf16.mxu0 0
    %1214 = vmatpush2.bf16.msra.mxu0 0
    %1215 = vmatprep.subr.bf16.mxu0 0
    %1216 = vmatpush2.bf16.msra.mxu0 0
    %1217 = vmatprep.subr.bf16.mxu0 0
    %1218 = vmatpush2.bf16.msra.mxu0 0
    %1219 = vmatprep.subr.bf16.mxu0 0
    %1220 = vmatpush2.bf16.msra.mxu0 0
    %1221 = vmatprep.subr.bf16.mxu0 0
    %1222 = vmatpush2.bf16.msra.mxu0 0
    %1223 = vmatprep.mubr.bf16.mxu0 0
    %1224 = vmatmul.mubr.bf16.gmra.mxu0 %v1189
    %v1225 = vpop.f32.mrf.mxu0
    %v1226 = vadd.f32 0.0, %v1225
    %v1227 = vpop.f32.mrf.mxu0
    %v1228 = vpop.f32.mrf.mxu0
    %v1229 = vadd.f32 0.0, %v1228
    %v1230 = vpop.f32.mrf.mxu0
    %1231 = vdwg.mxu0
    %v1232 = vlaneseq
    %v1233 = vshrl.u32 %v1232, 7
    %v1234 = vsub.s32 4, %v1233
    %v1235 = vrot.slane %v76, %v1234
    %v1239 = vsel %vm97, %v1166, 0
    %1241 = vmatprep.subr.bf16.mxu0 0
    %1242 = vmatpush1.bf16.msra.mxu0 0
    %1243 = vmatprep.subr.bf16.mxu0 0
    %1244 = vmatpush1.bf16.msra.mxu0 0
    %1245 = vmatprep.subr.bf16.mxu0 0
    %1246 = vmatpush1.bf16.msra.mxu0 0
    %1247 = vmatprep.subr.bf16.mxu0 0
    %1248 = vmatpush1.bf16.msra.mxu0 0
    %1249 = vmatprep.subr.bf16.mxu0 0
    %1250 = vmatpush1.bf16.msra.mxu0 0
    %1251 = vmatprep.subr.bf16.mxu0 0
    %1252 = vmatpush1.bf16.msra.mxu0 0
    %1253 = vmatprep.subr.bf16.mxu0 0
    %1254 = vmatpush1.bf16.msra.mxu0 %v1181
    %1255 = vmatprep.subr.bf16.mxu0 0
    %1256 = vmatpush1.bf16.msra.mxu0 %v1180
    %1257 = vmatprep.subr.bf16.mxu0 0
    %1258 = vmatpush2.bf16.msra.mxu0 0
    %1259 = vmatprep.subr.bf16.mxu0 0
    %1260 = vmatpush2.bf16.msra.mxu0 0
    %1261 = vmatprep.subr.bf16.mxu0 0
    %1262 = vmatpush2.bf16.msra.mxu0 0
    %1263 = vmatprep.subr.bf16.mxu0 0
    %1264 = vmatpush2.bf16.msra.mxu0 0
    %1265 = vmatprep.subr.bf16.mxu0 0
    %1266 = vmatpush2.bf16.msra.mxu0 0
    %1267 = vmatprep.subr.bf16.mxu0 0
    %1268 = vmatpush2.bf16.msra.mxu0 0
    %1269 = vmatprep.subr.bf16.mxu0 0
    %1270 = vmatpush2.bf16.msra.mxu0 0
    %1271 = vmatprep.subr.bf16.mxu0 0
    %1272 = vmatpush2.bf16.msra.mxu0 0
    %1273 = vmatprep.mubr.bf16.mxu0 0
    %1274 = vmatmul.mubr.bf16.gmra.mxu0 %v1239
    %v1275 = vpop.f32.mrf.mxu0
    %v1276 = vadd.f32 %v1235, %v1275
    %v1277 = vpop.f32.mrf.mxu0
    %v1278 = vpop.f32.mrf.mxu0
    %v1279 = vadd.f32 %v1235, %v1278
    %v1280 = vpop.f32.mrf.mxu0
    %1281 = vdwg.mxu0
    %v1282 = vlaneseq
    %v1283 = vshrl.u32 %v1282, 7
    %v1284 = vsub.s32 5, %v1283
    %v1285 = vrot.slane %v76, %v1284
    %v1286 = vadd.f32 %v1226, %v1285
    %v1287 = vadd.f32 %v1229, %v1285
    %v1288 = vlaneseq
    %v1289 = vshrl.u32 %v1288, 7
    %v1290 = vsub.s32 6, %v1289
    %v1291 = vrot.slane %v76, %v1290
    %1293 = vrot.lane.b32.xlu0 %v1291, 32
    %v1294 = vpop.permute.xlu0 %1293
    %v1296 = vadd.f32 %v1226, %v1294
    %v1297 = vadd.f32 %v1229, %v1294
    %v1298 = vld [vmem:[#allocation7 + $0x20] sm:$0xf]
    %v1299 = vld [vmem:[#allocation7 + $0x24] sm:$0xf]
    %v1300 = vld [vmem:[#allocation7 + $0x28] sm:$0xf]
    %v1301 = vld [vmem:[#allocation7 + $0x2c] sm:$0xf]
    %v1302 = vpack.c.bf16 %v1276, %v1276
    %v1303 = vpack.c.bf16 %v1279, %v1279
    %v1304 = vpack.c.bf16 %v1286, %v1286
    %v1305 = vpack.c.bf16 %v1287, %v1287
    %v1306 = vpack.c.bf16 %v1296, %v1296
    %v1307 = vpack.c.bf16 %v1297, %v1297
    %1309 = vrot.lane.b32.xlu0 %v74, 120
    %v1310 = vpop.permute.xlu0 %1309
    %v1313 = vsel %vm181, %v1302, 0
    %v1316 = vsel %vm181, %v1304, 0
    %1318 = vmatprep.subr.bf16.mxu0 0
    %1319 = vmatpush1.bf16.xpose.msra.mxu0 0
    %1320 = vmatprep.subr.bf16.mxu0 0
    %1321 = vmatpush1.bf16.xpose.msra.mxu0 0
    %1322 = vmatprep.subr.bf16.mxu0 0
    %1323 = vmatpush1.bf16.xpose.msra.mxu0 0
    %1324 = vmatprep.subr.bf16.mxu0 0
    %1325 = vmatpush1.bf16.xpose.msra.mxu0 0
    %1326 = vmatprep.subr.bf16.mxu0 0
    %1327 = vmatpush1.bf16.xpose.msra.mxu0 0
    %1328 = vmatprep.subr.bf16.mxu0 0
    %1329 = vmatpush1.bf16.xpose.msra.mxu0 0
    %1330 = vmatprep.subr.bf16.mxu0 0
    %1331 = vmatpush1.bf16.xpose.msra.mxu0 0
    %1332 = vmatprep.subr.bf16.mxu0 0
    %1333 = vmatpush1.bf16.xpose.msra.mxu0 %v1316
    %1334 = vmatprep.subr.bf16.mxu0 0
    %1335 = vmatpush2.bf16.xpose.msra.mxu0 0
    %1336 = vmatprep.subr.bf16.mxu0 0
    %1337 = vmatpush2.bf16.xpose.msra.mxu0 0
    %1338 = vmatprep.subr.bf16.mxu0 0
    %1339 = vmatpush2.bf16.xpose.msra.mxu0 0
    %1340 = vmatprep.subr.bf16.mxu0 0
    %1341 = vmatpush2.bf16.xpose.msra.mxu0 0
    %1342 = vmatprep.subr.bf16.mxu0 0
    %1343 = vmatpush2.bf16.xpose.msra.mxu0 0
    %1344 = vmatprep.subr.bf16.mxu0 0
    %1345 = vmatpush2.bf16.xpose.msra.mxu0 0
    %1346 = vmatprep.subr.bf16.mxu0 0
    %1347 = vmatpush2.bf16.xpose.msra.mxu0 0
    %1348 = vmatprep.subr.bf16.mxu0 0
    %1349 = vmatpush2.bf16.xpose.msra.mxu0 0
    %1350 = vmatprep.mubr.bf16.mxu0 0
    %1351 = vmatmul.mubr.bf16.gmra.mxu0 %v1313
    %v1352 = vpop.f32.mrf.mxu0
    %v1353 = vadd.f32 %v1310, %v1352
    %v1354 = vpop.f32.mrf.mxu0
    %v1355 = vpop.f32.mrf.mxu0
    %v1356 = vpop.f32.mrf.mxu0
    %1357 = vdwg.mxu0
    %1359 = vrot.lane.b32.xlu0 %v75, 120
    %v1360 = vpop.permute.xlu0 %1359
    %v1363 = vsel %vm181, %v1303, 0
    %v1366 = vsel %vm181, %v1305, 0
    %1368 = vmatprep.subr.bf16.mxu0 0
    %1369 = vmatpush1.bf16.xpose.msra.mxu0 0
    %1370 = vmatprep.subr.bf16.mxu0 0
    %1371 = vmatpush1.bf16.xpose.msra.mxu0 0
    %1372 = vmatprep.subr.bf16.mxu0 0
    %1373 = vmatpush1.bf16.xpose.msra.mxu0 0
    %1374 = vmatprep.subr.bf16.mxu0 0
    %1375 = vmatpush1.bf16.xpose.msra.mxu0 0
    %1376 = vmatprep.subr.bf16.mxu0 0
    %1377 = vmatpush1.bf16.xpose.msra.mxu0 0
    %1378 = vmatprep.subr.bf16.mxu0 0
    %1379 = vmatpush1.bf16.xpose.msra.mxu0 0
    %1380 = vmatprep.subr.bf16.mxu0 0
    %1381 = vmatpush1.bf16.xpose.msra.mxu0 0
    %1382 = vmatprep.subr.bf16.mxu0 0
    %1383 = vmatpush1.bf16.xpose.msra.mxu0 %v1366
    %1384 = vmatprep.subr.bf16.mxu0 0
    %1385 = vmatpush2.bf16.xpose.msra.mxu0 0
    %1386 = vmatprep.subr.bf16.mxu0 0
    %1387 = vmatpush2.bf16.xpose.msra.mxu0 0
    %1388 = vmatprep.subr.bf16.mxu0 0
    %1389 = vmatpush2.bf16.xpose.msra.mxu0 0
    %1390 = vmatprep.subr.bf16.mxu0 0
    %1391 = vmatpush2.bf16.xpose.msra.mxu0 0
    %1392 = vmatprep.subr.bf16.mxu0 0
    %1393 = vmatpush2.bf16.xpose.msra.mxu0 0
    %1394 = vmatprep.subr.bf16.mxu0 0
    %1395 = vmatpush2.bf16.xpose.msra.mxu0 0
    %1396 = vmatprep.subr.bf16.mxu0 0
    %1397 = vmatpush2.bf16.xpose.msra.mxu0 0
    %1398 = vmatprep.subr.bf16.mxu0 0
    %1399 = vmatpush2.bf16.xpose.msra.mxu0 0
    %1400 = vmatprep.mubr.bf16.mxu0 0
    %1401 = vmatmul.mubr.bf16.gmra.mxu0 %v1363
    %v1402 = vpop.f32.mrf.mxu0
    %v1403 = vadd.f32 %v1360, %v1402
    %v1404 = vpop.f32.mrf.mxu0
    %v1405 = vpop.f32.mrf.mxu0
    %v1406 = vpop.f32.mrf.mxu0
    %1407 = vdwg.mxu0
    %v1408 = vmul.f32 %v1353, 1.442695
    %v1409 = vpow.pop %v1408
    %v1410 = vmul.f32 %v1403, 1.442695
    %v1411 = vpow.pop %v1410
    %v1412 = vsel %vm181, %v1409, 0.0
    %1413 = vadd.xlane.f32.xlu0 %v1412
    %v1414 = vpop.xlane.xlu0 %1413
    %v1415 = vsel %vm181, %v1411, 0.0
    %1416 = vadd.xlane.f32.xlu0 %v1415
    %v1417 = vpop.xlane.xlu0 %1416
    %v1418 = vrcp.pop %v1414
    %v1419 = vrcp.pop %v1417
    %v1420 = vmul.f32 %v1409, %v1418
    %v1421 = vmul.f32 %v1411, %v1419
    %v1422 = vpack.c.bf16 %v1420, %v1420
    %v1423 = vpack.c.bf16 %v1421, %v1421
    %1425 = vrot.lane.b32.xlu0 %v1306, 96
    %v1426 = vpop.permute.xlu0 %1425
    %v1428 = vsel %vm181, %v1422, 0
    %v1431 = vsel %vm299, %v1426, 0
    %1433 = vmatprep.subr.bf16.mxu0 0
    %1434 = vmatpush1.bf16.msra.mxu0 0
    %1435 = vmatprep.subr.bf16.mxu0 0
    %1436 = vmatpush1.bf16.msra.mxu0 0
    %1437 = vmatprep.subr.bf16.mxu0 0
    %1438 = vmatpush1.bf16.msra.mxu0 0
    %1439 = vmatprep.subr.bf16.mxu0 0
    %1440 = vmatpush1.bf16.msra.mxu0 0
    %1441 = vmatprep.subr.bf16.mxu0 0
    %1442 = vmatpush1.bf16.msra.mxu0 0
    %1443 = vmatprep.subr.bf16.mxu0 0
    %1444 = vmatpush1.bf16.msra.mxu0 0
    %1445 = vmatprep.subr.bf16.mxu0 0
    %1446 = vmatpush1.bf16.msra.mxu0 0
    %1447 = vmatprep.subr.bf16.mxu0 0
    %1448 = vmatpush1.bf16.msra.mxu0 %v1431
    %1449 = vmatprep.subr.bf16.mxu0 0
    %1450 = vmatpush2.bf16.msra.mxu0 0
    %1451 = vmatprep.subr.bf16.mxu0 0
    %1452 = vmatpush2.bf16.msra.mxu0 0
    %1453 = vmatprep.subr.bf16.mxu0 0
    %1454 = vmatpush2.bf16.msra.mxu0 0
    %1455 = vmatprep.subr.bf16.mxu0 0
    %1456 = vmatpush2.bf16.msra.mxu0 0
    %1457 = vmatprep.subr.bf16.mxu0 0
    %1458 = vmatpush2.bf16.msra.mxu0 0
    %1459 = vmatprep.subr.bf16.mxu0 0
    %1460 = vmatpush2.bf16.msra.mxu0 0
    %1461 = vmatprep.subr.bf16.mxu0 0
    %1462 = vmatpush2.bf16.msra.mxu0 0
    %1463 = vmatprep.subr.bf16.mxu0 0
    %1464 = vmatpush2.bf16.msra.mxu0 0
    %1465 = vmatprep.mubr.bf16.mxu0 0
    %1466 = vmatmul.mubr.bf16.gmra.mxu0 %v1428
    %v1467 = vpop.f32.mrf.mxu0
    %v1468 = vadd.f32 0.0, %v1467
    %v1469 = vpop.f32.mrf.mxu0
    %v1470 = vpop.f32.mrf.mxu0
    %v1471 = vpop.f32.mrf.mxu0
    %1472 = vdwg.mxu0
    %1474 = vrot.lane.b32.xlu0 %v1307, 96
    %v1475 = vpop.permute.xlu0 %1474
    %v1477 = vsel %vm181, %v1423, 0
    %v1480 = vsel %vm299, %v1475, 0
    %1482 = vmatprep.subr.bf16.mxu0 0
    %1483 = vmatpush1.bf16.msra.mxu0 0
    %1484 = vmatprep.subr.bf16.mxu0 0
    %1485 = vmatpush1.bf16.msra.mxu0 0
    %1486 = vmatprep.subr.bf16.mxu0 0
    %1487 = vmatpush1.bf16.msra.mxu0 0
    %1488 = vmatprep.subr.bf16.mxu0 0
    %1489 = vmatpush1.bf16.msra.mxu0 0
    %1490 = vmatprep.subr.bf16.mxu0 0
    %1491 = vmatpush1.bf16.msra.mxu0 0
    %1492 = vmatprep.subr.bf16.mxu0 0
    %1493 = vmatpush1.bf16.msra.mxu0 0
    %1494 = vmatprep.subr.bf16.mxu0 0
    %1495 = vmatpush1.bf16.msra.mxu0 0
    %1496 = vmatprep.subr.bf16.mxu0 0
    %1497 = vmatpush1.bf16.msra.mxu0 %v1480
    %1498 = vmatprep.subr.bf16.mxu0 0
    %1499 = vmatpush2.bf16.msra.mxu0 0
    %1500 = vmatprep.subr.bf16.mxu0 0
    %1501 = vmatpush2.bf16.msra.mxu0 0
    %1502 = vmatprep.subr.bf16.mxu0 0
    %1503 = vmatpush2.bf16.msra.mxu0 0
    %1504 = vmatprep.subr.bf16.mxu0 0
    %1505 = vmatpush2.bf16.msra.mxu0 0
    %1506 = vmatprep.subr.bf16.mxu0 0
    %1507 = vmatpush2.bf16.msra.mxu0 0
    %1508 = vmatprep.subr.bf16.mxu0 0
    %1509 = vmatpush2.bf16.msra.mxu0 0
    %1510 = vmatprep.subr.bf16.mxu0 0
    %1511 = vmatpush2.bf16.msra.mxu0 0
    %1512 = vmatprep.subr.bf16.mxu0 0
    %1513 = vmatpush2.bf16.msra.mxu0 0
    %1514 = vmatprep.mubr.bf16.mxu0 0
    %1515 = vmatmul.mubr.bf16.gmra.mxu0 %v1477
    %v1516 = vpop.f32.mrf.mxu0
    %v1517 = vadd.f32 0.0, %v1516
    %v1518 = vpop.f32.mrf.mxu0
    %v1519 = vpop.f32.mrf.mxu0
    %v1520 = vpop.f32.mrf.mxu0
    %1521 = vdwg.mxu0
    %1523 = vrot.lane.b32.xlu0 %v1302, 120
    %v1524 = vpop.permute.xlu0 %1523
    %1526 = vrot.lane.b32.xlu0 %v1304, 120
    %v1527 = vpop.permute.xlu0 %1526
    %v1529 = vsel %vm181, %v1524, 0
    %v1532 = vsel %vm181, %v1527, 0
    %1534 = vmatprep.subr.bf16.mxu0 0
    %1535 = vmatpush1.bf16.xpose.msra.mxu0 0
    %1536 = vmatprep.subr.bf16.mxu0 0
    %1537 = vmatpush1.bf16.xpose.msra.mxu0 0
    %1538 = vmatprep.subr.bf16.mxu0 0
    %1539 = vmatpush1.bf16.xpose.msra.mxu0 0
    %1540 = vmatprep.subr.bf16.mxu0 0
    %1541 = vmatpush1.bf16.xpose.msra.mxu0 0
    %1542 = vmatprep.subr.bf16.mxu0 0
    %1543 = vmatpush1.bf16.xpose.msra.mxu0 0
    %1544 = vmatprep.subr.bf16.mxu0 0
    %1545 = vmatpush1.bf16.xpose.msra.mxu0 0
    %1546 = vmatprep.subr.bf16.mxu0 0
    %1547 = vmatpush1.bf16.xpose.msra.mxu0 0
    %1548 = vmatprep.subr.bf16.mxu0 0
    %1549 = vmatpush1.bf16.xpose.msra.mxu0 %v1532
    %1550 = vmatprep.subr.bf16.mxu0 0
    %1551 = vmatpush2.bf16.xpose.msra.mxu0 0
    %1552 = vmatprep.subr.bf16.mxu0 0
    %1553 = vmatpush2.bf16.xpose.msra.mxu0 0
    %1554 = vmatprep.subr.bf16.mxu0 0
    %1555 = vmatpush2.bf16.xpose.msra.mxu0 0
    %1556 = vmatprep.subr.bf16.mxu0 0
    %1557 = vmatpush2.bf16.xpose.msra.mxu0 0
    %1558 = vmatprep.subr.bf16.mxu0 0
    %1559 = vmatpush2.bf16.xpose.msra.mxu0 0
    %1560 = vmatprep.subr.bf16.mxu0 0
    %1561 = vmatpush2.bf16.xpose.msra.mxu0 0
    %1562 = vmatprep.subr.bf16.mxu0 0
    %1563 = vmatpush2.bf16.xpose.msra.mxu0 0
    %1564 = vmatprep.subr.bf16.mxu0 0
    %1565 = vmatpush2.bf16.xpose.msra.mxu0 0
    %1566 = vmatprep.mubr.bf16.mxu0 0
    %1567 = vmatmul.mubr.bf16.gmra.mxu0 %v1529
    %v1568 = vpop.f32.mrf.mxu0
    %v1569 = vadd.f32 %v1310, %v1568
    %v1570 = vpop.f32.mrf.mxu0
    %v1571 = vpop.f32.mrf.mxu0
    %v1572 = vpop.f32.mrf.mxu0
    %1573 = vdwg.mxu0
    %1575 = vrot.lane.b32.xlu0 %v1303, 120
    %v1576 = vpop.permute.xlu0 %1575
    %1578 = vrot.lane.b32.xlu0 %v1305, 120
    %v1579 = vpop.permute.xlu0 %1578
    %v1581 = vsel %vm181, %v1576, 0
    %v1584 = vsel %vm181, %v1579, 0
    %1586 = vmatprep.subr.bf16.mxu0 0
    %1587 = vmatpush1.bf16.xpose.msra.mxu0 0
    %1588 = vmatprep.subr.bf16.mxu0 0
    %1589 = vmatpush1.bf16.xpose.msra.mxu0 0
    %1590 = vmatprep.subr.bf16.mxu0 0
    %1591 = vmatpush1.bf16.xpose.msra.mxu0 0
    %1592 = vmatprep.subr.bf16.mxu0 0
    %1593 = vmatpush1.bf16.xpose.msra.mxu0 0
    %1594 = vmatprep.subr.bf16.mxu0 0
    %1595 = vmatpush1.bf16.xpose.msra.mxu0 0
    %1596 = vmatprep.subr.bf16.mxu0 0
    %1597 = vmatpush1.bf16.xpose.msra.mxu0 0
    %1598 = vmatprep.subr.bf16.mxu0 0
    %1599 = vmatpush1.bf16.xpose.msra.mxu0 0
    %1600 = vmatprep.subr.bf16.mxu0 0
    %1601 = vmatpush1.bf16.xpose.msra.mxu0 %v1584
    %1602 = vmatprep.subr.bf16.mxu0 0
    %1603 = vmatpush2.bf16.xpose.msra.mxu0 0
    %1604 = vmatprep.subr.bf16.mxu0 0
    %1605 = vmatpush2.bf16.xpose.msra.mxu0 0
    %1606 = vmatprep.subr.bf16.mxu0 0
    %1607 = vmatpush2.bf16.xpose.msra.mxu0 0
    %1608 = vmatprep.subr.bf16.mxu0 0
    %1609 = vmatpush2.bf16.xpose.msra.mxu0 0
    %1610 = vmatprep.subr.bf16.mxu0 0
    %1611 = vmatpush2.bf16.xpose.msra.mxu0 0
    %1612 = vmatprep.subr.bf16.mxu0 0
    %1613 = vmatpush2.bf16.xpose.msra.mxu0 0
    %1614 = vmatprep.subr.bf16.mxu0 0
    %1615 = vmatpush2.bf16.xpose.msra.mxu0 0
    %1616 = vmatprep.subr.bf16.mxu0 0
    %1617 = vmatpush2.bf16.xpose.msra.mxu0 0
    %1618 = vmatprep.mubr.bf16.mxu0 0
    %1619 = vmatmul.mubr.bf16.gmra.mxu0 %v1581
    %v1620 = vpop.f32.mrf.mxu0
    %v1621 = vadd.f32 %v1360, %v1620
    %v1622 = vpop.f32.mrf.mxu0
    %v1623 = vpop.f32.mrf.mxu0
    %v1624 = vpop.f32.mrf.mxu0
    %1625 = vdwg.mxu0
    %v1626 = vmul.f32 %v1569, 1.442695
    %v1627 = vpow.pop %v1626
    %v1628 = vmul.f32 %v1621, 1.442695
    %v1629 = vpow.pop %v1628
    %v1630 = vsel %vm181, %v1627, 0.0
    %1631 = vadd.xlane.f32.xlu0 %v1630
    %v1632 = vpop.xlane.xlu0 %1631
    %v1633 = vsel %vm181, %v1629, 0.0
    %1634 = vadd.xlane.f32.xlu0 %v1633
    %v1635 = vpop.xlane.xlu0 %1634
    %v1636 = vrcp.pop %v1632
    %v1637 = vrcp.pop %v1635
    %v1638 = vmul.f32 %v1627, %v1636
    %v1639 = vmul.f32 %v1629, %v1637
    %v1640 = vpack.c.bf16 %v1638, %v1638
    %v1641 = vpack.c.bf16 %v1639, %v1639
    %1642 = vrot.lane.b32.xlu0 %v1306, 88
    %v1643 = vpop.permute.xlu0 %1642
    %v1645 = vsel %vm181, %v1640, 0
    %v1648 = vsel %vm299, %v1643, 0
    %1650 = vmatprep.subr.bf16.mxu0 0
    %1651 = vmatpush1.bf16.msra.mxu0 0
    %1652 = vmatprep.subr.bf16.mxu0 0
    %1653 = vmatpush1.bf16.msra.mxu0 0
    %1654 = vmatprep.subr.bf16.mxu0 0
    %1655 = vmatpush1.bf16.msra.mxu0 0
    %1656 = vmatprep.subr.bf16.mxu0 0
    %1657 = vmatpush1.bf16.msra.mxu0 0
    %1658 = vmatprep.subr.bf16.mxu0 0
    %1659 = vmatpush1.bf16.msra.mxu0 0
    %1660 = vmatprep.subr.bf16.mxu0 0
    %1661 = vmatpush1.bf16.msra.mxu0 0
    %1662 = vmatprep.subr.bf16.mxu0 0
    %1663 = vmatpush1.bf16.msra.mxu0 0
    %1664 = vmatprep.subr.bf16.mxu0 0
    %1665 = vmatpush1.bf16.msra.mxu0 %v1648
    %1666 = vmatprep.subr.bf16.mxu0 0
    %1667 = vmatpush2.bf16.msra.mxu0 0
    %1668 = vmatprep.subr.bf16.mxu0 0
    %1669 = vmatpush2.bf16.msra.mxu0 0
    %1670 = vmatprep.subr.bf16.mxu0 0
    %1671 = vmatpush2.bf16.msra.mxu0 0
    %1672 = vmatprep.subr.bf16.mxu0 0
    %1673 = vmatpush2.bf16.msra.mxu0 0
    %1674 = vmatprep.subr.bf16.mxu0 0
    %1675 = vmatpush2.bf16.msra.mxu0 0
    %1676 = vmatprep.subr.bf16.mxu0 0
    %1677 = vmatpush2.bf16.msra.mxu0 0
    %1678 = vmatprep.subr.bf16.mxu0 0
    %1679 = vmatpush2.bf16.msra.mxu0 0
    %1680 = vmatprep.subr.bf16.mxu0 0
    %1681 = vmatpush2.bf16.msra.mxu0 0
    %1682 = vmatprep.mubr.bf16.mxu0 0
    %1683 = vmatmul.mubr.bf16.gmra.mxu0 %v1645
    %v1684 = vpop.f32.mrf.mxu0
    %v1685 = vadd.f32 0.0, %v1684
    %v1686 = vpop.f32.mrf.mxu0
    %v1687 = vpop.f32.mrf.mxu0
    %v1688 = vpop.f32.mrf.mxu0
    %1689 = vdwg.mxu0
    %1690 = vrot.lane.b32.xlu0 %v1307, 88
    %v1691 = vpop.permute.xlu0 %1690
    %v1693 = vsel %vm181, %v1641, 0
    %v1696 = vsel %vm299, %v1691, 0
    %1698 = vmatprep.subr.bf16.mxu0 0
    %1699 = vmatpush1.bf16.msra.mxu0 0
    %1700 = vmatprep.subr.bf16.mxu0 0
    %1701 = vmatpush1.bf16.msra.mxu0 0
    %1702 = vmatprep.subr.bf16.mxu0 0
    %1703 = vmatpush1.bf16.msra.mxu0 0
    %1704 = vmatprep.subr.bf16.mxu0 0
    %1705 = vmatpush1.bf16.msra.mxu0 0
    %1706 = vmatprep.subr.bf16.mxu0 0
    %1707 = vmatpush1.bf16.msra.mxu0 0
    %1708 = vmatprep.subr.bf16.mxu0 0
    %1709 = vmatpush1.bf16.msra.mxu0 0
    %1710 = vmatprep.subr.bf16.mxu0 0
    %1711 = vmatpush1.bf16.msra.mxu0 0
    %1712 = vmatprep.subr.bf16.mxu0 0
    %1713 = vmatpush1.bf16.msra.mxu0 %v1696
    %1714 = vmatprep.subr.bf16.mxu0 0
    %1715 = vmatpush2.bf16.msra.mxu0 0
    %1716 = vmatprep.subr.bf16.mxu0 0
    %1717 = vmatpush2.bf16.msra.mxu0 0
    %1718 = vmatprep.subr.bf16.mxu0 0
    %1719 = vmatpush2.bf16.msra.mxu0 0
    %1720 = vmatprep.subr.bf16.mxu0 0
    %1721 = vmatpush2.bf16.msra.mxu0 0
    %1722 = vmatprep.subr.bf16.mxu0 0
    %1723 = vmatpush2.bf16.msra.mxu0 0
    %1724 = vmatprep.subr.bf16.mxu0 0
    %1725 = vmatpush2.bf16.msra.mxu0 0
    %1726 = vmatprep.subr.bf16.mxu0 0
    %1727 = vmatpush2.bf16.msra.mxu0 0
    %1728 = vmatprep.subr.bf16.mxu0 0
    %1729 = vmatpush2.bf16.msra.mxu0 0
    %1730 = vmatprep.mubr.bf16.mxu0 0
    %1731 = vmatmul.mubr.bf16.gmra.mxu0 %v1693
    %v1732 = vpop.f32.mrf.mxu0
    %v1733 = vadd.f32 0.0, %v1732
    %v1734 = vpop.f32.mrf.mxu0
    %v1735 = vpop.f32.mrf.mxu0
    %v1736 = vpop.f32.mrf.mxu0
    %1737 = vdwg.mxu0
    %1738 = vrot.lane.b32.xlu0 %v1302, 112
    %v1739 = vpop.permute.xlu0 %1738
    %1740 = vrot.lane.b32.xlu0 %v1304, 112
    %v1741 = vpop.permute.xlu0 %1740
    %v1743 = vsel %vm181, %v1739, 0
    %v1746 = vsel %vm181, %v1741, 0
    %1748 = vmatprep.subr.bf16.mxu0 0
    %1749 = vmatpush1.bf16.xpose.msra.mxu0 0
    %1750 = vmatprep.subr.bf16.mxu0 0
    %1751 = vmatpush1.bf16.xpose.msra.mxu0 0
    %1752 = vmatprep.subr.bf16.mxu0 0
    %1753 = vmatpush1.bf16.xpose.msra.mxu0 0
    %1754 = vmatprep.subr.bf16.mxu0 0
    %1755 = vmatpush1.bf16.xpose.msra.mxu0 0
    %1756 = vmatprep.subr.bf16.mxu0 0
    %1757 = vmatpush1.bf16.xpose.msra.mxu0 0
    %1758 = vmatprep.subr.bf16.mxu0 0
    %1759 = vmatpush1.bf16.xpose.msra.mxu0 0
    %1760 = vmatprep.subr.bf16.mxu0 0
    %1761 = vmatpush1.bf16.xpose.msra.mxu0 0
    %1762 = vmatprep.subr.bf16.mxu0 0
    %1763 = vmatpush1.bf16.xpose.msra.mxu0 %v1746
    %1764 = vmatprep.subr.bf16.mxu0 0
    %1765 = vmatpush2.bf16.xpose.msra.mxu0 0
    %1766 = vmatprep.subr.bf16.mxu0 0
    %1767 = vmatpush2.bf16.xpose.msra.mxu0 0
    %1768 = vmatprep.subr.bf16.mxu0 0
    %1769 = vmatpush2.bf16.xpose.msra.mxu0 0
    %1770 = vmatprep.subr.bf16.mxu0 0
    %1771 = vmatpush2.bf16.xpose.msra.mxu0 0
    %1772 = vmatprep.subr.bf16.mxu0 0
    %1773 = vmatpush2.bf16.xpose.msra.mxu0 0
    %1774 = vmatprep.subr.bf16.mxu0 0
    %1775 = vmatpush2.bf16.xpose.msra.mxu0 0
    %1776 = vmatprep.subr.bf16.mxu0 0
    %1777 = vmatpush2.bf16.xpose.msra.mxu0 0
    %1778 = vmatprep.subr.bf16.mxu0 0
    %1779 = vmatpush2.bf16.xpose.msra.mxu0 0
    %1780 = vmatprep.mubr.bf16.mxu0 0
    %1781 = vmatmul.mubr.bf16.gmra.mxu0 %v1743
    %v1782 = vpop.f32.mrf.mxu0
    %v1783 = vadd.f32 %v1310, %v1782
    %v1784 = vpop.f32.mrf.mxu0
    %v1785 = vpop.f32.mrf.mxu0
    %v1786 = vpop.f32.mrf.mxu0
    %1787 = vdwg.mxu0
    %1788 = vrot.lane.b32.xlu0 %v1303, 112
    %v1789 = vpop.permute.xlu0 %1788
    %1790 = vrot.lane.b32.xlu0 %v1305, 112
    %v1791 = vpop.permute.xlu0 %1790
    %v1793 = vsel %vm181, %v1789, 0
    %v1796 = vsel %vm181, %v1791, 0
    %1798 = vmatprep.subr.bf16.mxu0 0
    %1799 = vmatpush1.bf16.xpose.msra.mxu0 0
    %1800 = vmatprep.subr.bf16.mxu0 0
    %1801 = vmatpush1.bf16.xpose.msra.mxu0 0
    %1802 = vmatprep.subr.bf16.mxu0 0
    %1803 = vmatpush1.bf16.xpose.msra.mxu0 0
    %1804 = vmatprep.subr.bf16.mxu0 0
    %1805 = vmatpush1.bf16.xpose.msra.mxu0 0
    %1806 = vmatprep.subr.bf16.mxu0 0
    %1807 = vmatpush1.bf16.xpose.msra.mxu0 0
    %1808 = vmatprep.subr.bf16.mxu0 0
    %1809 = vmatpush1.bf16.xpose.msra.mxu0 0
    %1810 = vmatprep.subr.bf16.mxu0 0
    %1811 = vmatpush1.bf16.xpose.msra.mxu0 0
    %1812 = vmatprep.subr.bf16.mxu0 0
    %1813 = vmatpush1.bf16.xpose.msra.mxu0 %v1796
    %1814 = vmatprep.subr.bf16.mxu0 0
    %1815 = vmatpush2.bf16.xpose.msra.mxu0 0
    %1816 = vmatprep.subr.bf16.mxu0 0
    %1817 = vmatpush2.bf16.xpose.msra.mxu0 0
    %1818 = vmatprep.subr.bf16.mxu0 0
    %1819 = vmatpush2.bf16.xpose.msra.mxu0 0
    %1820 = vmatprep.subr.bf16.mxu0 0
    %1821 = vmatpush2.bf16.xpose.msra.mxu0 0
    %1822 = vmatprep.subr.bf16.mxu0 0
    %1823 = vmatpush2.bf16.xpose.msra.mxu0 0
    %1824 = vmatprep.subr.bf16.mxu0 0
    %1825 = vmatpush2.bf16.xpose.msra.mxu0 0
    %1826 = vmatprep.subr.bf16.mxu0 0
    %1827 = vmatpush2.bf16.xpose.msra.mxu0 0
    %1828 = vmatprep.subr.bf16.mxu0 0
    %1829 = vmatpush2.bf16.xpose.msra.mxu0 0
    %1830 = vmatprep.mubr.bf16.mxu0 0
    %1831 = vmatmul.mubr.bf16.gmra.mxu0 %v1793
    %v1832 = vpop.f32.mrf.mxu0
    %v1833 = vadd.f32 %v1360, %v1832
    %v1834 = vpop.f32.mrf.mxu0
    %v1835 = vpop.f32.mrf.mxu0
    %v1836 = vpop.f32.mrf.mxu0
    %1837 = vdwg.mxu0
    %v1838 = vmul.f32 %v1783, 1.442695
    %v1839 = vpow.pop %v1838
    %v1840 = vmul.f32 %v1833, 1.442695
    %v1841 = vpow.pop %v1840
    %v1842 = vsel %vm181, %v1839, 0.0
    %1843 = vadd.xlane.f32.xlu0 %v1842
    %v1844 = vpop.xlane.xlu0 %1843
    %v1845 = vsel %vm181, %v1841, 0.0
    %1846 = vadd.xlane.f32.xlu0 %v1845
    %v1847 = vpop.xlane.xlu0 %1846
    %v1848 = vrcp.pop %v1844
    %v1849 = vrcp.pop %v1847
    %v1850 = vmul.f32 %v1839, %v1848
    %v1851 = vmul.f32 %v1841, %v1849
    %v1852 = vpack.c.bf16 %v1850, %v1850
    %v1853 = vpack.c.bf16 %v1851, %v1851
    %1854 = vrot.lane.b32.xlu0 %v1306, 80
    %v1855 = vpop.permute.xlu0 %1854
    %v1857 = vsel %vm181, %v1852, 0
    %v1860 = vsel %vm299, %v1855, 0
    %1862 = vmatprep.subr.bf16.mxu0 0
    %1863 = vmatpush1.bf16.msra.mxu0 0
    %1864 = vmatprep.subr.bf16.mxu0 0
    %1865 = vmatpush1.bf16.msra.mxu0 0
    %1866 = vmatprep.subr.bf16.mxu0 0
    %1867 = vmatpush1.bf16.msra.mxu0 0
    %1868 = vmatprep.subr.bf16.mxu0 0
    %1869 = vmatpush1.bf16.msra.mxu0 0
    %1870 = vmatprep.subr.bf16.mxu0 0
    %1871 = vmatpush1.bf16.msra.mxu0 0
    %1872 = vmatprep.subr.bf16.mxu0 0
    %1873 = vmatpush1.bf16.msra.mxu0 0
    %1874 = vmatprep.subr.bf16.mxu0 0
    %1875 = vmatpush1.bf16.msra.mxu0 0
    %1876 = vmatprep.subr.bf16.mxu0 0
    %1877 = vmatpush1.bf16.msra.mxu0 %v1860
    %1878 = vmatprep.subr.bf16.mxu0 0
    %1879 = vmatpush2.bf16.msra.mxu0 0
    %1880 = vmatprep.subr.bf16.mxu0 0
    %1881 = vmatpush2.bf16.msra.mxu0 0
    %1882 = vmatprep.subr.bf16.mxu0 0
    %1883 = vmatpush2.bf16.msra.mxu0 0
    %1884 = vmatprep.subr.bf16.mxu0 0
    %1885 = vmatpush2.bf16.msra.mxu0 0
    %1886 = vmatprep.subr.bf16.mxu0 0
    %1887 = vmatpush2.bf16.msra.mxu0 0
    %1888 = vmatprep.subr.bf16.mxu0 0
    %1889 = vmatpush2.bf16.msra.mxu0 0
    %1890 = vmatprep.subr.bf16.mxu0 0
    %1891 = vmatpush2.bf16.msra.mxu0 0
    %1892 = vmatprep.subr.bf16.mxu0 0
    %1893 = vmatpush2.bf16.msra.mxu0 0
    %1894 = vmatprep.mubr.bf16.mxu0 0
    %1895 = vmatmul.mubr.bf16.gmra.mxu0 %v1857
    %v1896 = vpop.f32.mrf.mxu0
    %v1897 = vadd.f32 0.0, %v1896
    %v1898 = vpop.f32.mrf.mxu0
    %v1899 = vpop.f32.mrf.mxu0
    %v1900 = vpop.f32.mrf.mxu0
    %1901 = vdwg.mxu0
    %1902 = vrot.lane.b32.xlu0 %v1307, 80
    %v1903 = vpop.permute.xlu0 %1902
    %v1905 = vsel %vm181, %v1853, 0
    %v1908 = vsel %vm299, %v1903, 0
    %1910 = vmatprep.subr.bf16.mxu0 0
    %1911 = vmatpush1.bf16.msra.mxu0 0
    %1912 = vmatprep.subr.bf16.mxu0 0
    %1913 = vmatpush1.bf16.msra.mxu0 0
    %1914 = vmatprep.subr.bf16.mxu0 0
    %1915 = vmatpush1.bf16.msra.mxu0 0
    %1916 = vmatprep.subr.bf16.mxu0 0
    %1917 = vmatpush1.bf16.msra.mxu0 0
    %1918 = vmatprep.subr.bf16.mxu0 0
    %1919 = vmatpush1.bf16.msra.mxu0 0
    %1920 = vmatprep.subr.bf16.mxu0 0
    %1921 = vmatpush1.bf16.msra.mxu0 0
    %1922 = vmatprep.subr.bf16.mxu0 0
    %1923 = vmatpush1.bf16.msra.mxu0 0
    %1924 = vmatprep.subr.bf16.mxu0 0
    %1925 = vmatpush1.bf16.msra.mxu0 %v1908
    %1926 = vmatprep.subr.bf16.mxu0 0
    %1927 = vmatpush2.bf16.msra.mxu0 0
    %1928 = vmatprep.subr.bf16.mxu0 0
    %1929 = vmatpush2.bf16.msra.mxu0 0
    %1930 = vmatprep.subr.bf16.mxu0 0
    %1931 = vmatpush2.bf16.msra.mxu0 0
    %1932 = vmatprep.subr.bf16.mxu0 0
    %1933 = vmatpush2.bf16.msra.mxu0 0
    %1934 = vmatprep.subr.bf16.mxu0 0
    %1935 = vmatpush2.bf16.msra.mxu0 0
    %1936 = vmatprep.subr.bf16.mxu0 0
    %1937 = vmatpush2.bf16.msra.mxu0 0
    %1938 = vmatprep.subr.bf16.mxu0 0
    %1939 = vmatpush2.bf16.msra.mxu0 0
    %1940 = vmatprep.subr.bf16.mxu0 0
    %1941 = vmatpush2.bf16.msra.mxu0 0
    %1942 = vmatprep.mubr.bf16.mxu0 0
    %1943 = vmatmul.mubr.bf16.gmra.mxu0 %v1905
    %v1944 = vpop.f32.mrf.mxu0
    %v1945 = vadd.f32 0.0, %v1944
    %v1946 = vpop.f32.mrf.mxu0
    %v1947 = vpop.f32.mrf.mxu0
    %v1948 = vpop.f32.mrf.mxu0
    %1949 = vdwg.mxu0
    %1950 = vrot.lane.b32.xlu0 %v1302, 104
    %v1951 = vpop.permute.xlu0 %1950
    %1952 = vrot.lane.b32.xlu0 %v1304, 104
    %v1953 = vpop.permute.xlu0 %1952
    %v1955 = vsel %vm181, %v1951, 0
    %v1958 = vsel %vm181, %v1953, 0
    %1960 = vmatprep.subr.bf16.mxu0 0
    %1961 = vmatpush1.bf16.xpose.msra.mxu0 0
    %1962 = vmatprep.subr.bf16.mxu0 0
    %1963 = vmatpush1.bf16.xpose.msra.mxu0 0
    %1964 = vmatprep.subr.bf16.mxu0 0
    %1965 = vmatpush1.bf16.xpose.msra.mxu0 0
    %1966 = vmatprep.subr.bf16.mxu0 0
    %1967 = vmatpush1.bf16.xpose.msra.mxu0 0
    %1968 = vmatprep.subr.bf16.mxu0 0
    %1969 = vmatpush1.bf16.xpose.msra.mxu0 0
    %1970 = vmatprep.subr.bf16.mxu0 0
    %1971 = vmatpush1.bf16.xpose.msra.mxu0 0
    %1972 = vmatprep.subr.bf16.mxu0 0
    %1973 = vmatpush1.bf16.xpose.msra.mxu0 0
    %1974 = vmatprep.subr.bf16.mxu0 0
    %1975 = vmatpush1.bf16.xpose.msra.mxu0 %v1958
    %1976 = vmatprep.subr.bf16.mxu0 0
    %1977 = vmatpush2.bf16.xpose.msra.mxu0 0
    %1978 = vmatprep.subr.bf16.mxu0 0
    %1979 = vmatpush2.bf16.xpose.msra.mxu0 0
    %1980 = vmatprep.subr.bf16.mxu0 0
    %1981 = vmatpush2.bf16.xpose.msra.mxu0 0
    %1982 = vmatprep.subr.bf16.mxu0 0
    %1983 = vmatpush2.bf16.xpose.msra.mxu0 0
    %1984 = vmatprep.subr.bf16.mxu0 0
    %1985 = vmatpush2.bf16.xpose.msra.mxu0 0
    %1986 = vmatprep.subr.bf16.mxu0 0
    %1987 = vmatpush2.bf16.xpose.msra.mxu0 0
    %1988 = vmatprep.subr.bf16.mxu0 0
    %1989 = vmatpush2.bf16.xpose.msra.mxu0 0
    %1990 = vmatprep.subr.bf16.mxu0 0
    %1991 = vmatpush2.bf16.xpose.msra.mxu0 0
    %1992 = vmatprep.mubr.bf16.mxu0 0
    %1993 = vmatmul.mubr.bf16.gmra.mxu0 %v1955
    %v1994 = vpop.f32.mrf.mxu0
    %v1995 = vadd.f32 %v1310, %v1994
    %v1996 = vpop.f32.mrf.mxu0
    %v1997 = vpop.f32.mrf.mxu0
    %v1998 = vpop.f32.mrf.mxu0
    %1999 = vdwg.mxu0
    %2000 = vrot.lane.b32.xlu0 %v1303, 104
    %v2001 = vpop.permute.xlu0 %2000
    %2002 = vrot.lane.b32.xlu0 %v1305, 104
    %v2003 = vpop.permute.xlu0 %2002
    %v2005 = vsel %vm181, %v2001, 0
    %v2008 = vsel %vm181, %v2003, 0
    %2010 = vmatprep.subr.bf16.mxu0 0
    %2011 = vmatpush1.bf16.xpose.msra.mxu0 0
    %2012 = vmatprep.subr.bf16.mxu0 0
    %2013 = vmatpush1.bf16.xpose.msra.mxu0 0
    %2014 = vmatprep.subr.bf16.mxu0 0
    %2015 = vmatpush1.bf16.xpose.msra.mxu0 0
    %2016 = vmatprep.subr.bf16.mxu0 0
    %2017 = vmatpush1.bf16.xpose.msra.mxu0 0
    %2018 = vmatprep.subr.bf16.mxu0 0
    %2019 = vmatpush1.bf16.xpose.msra.mxu0 0
    %2020 = vmatprep.subr.bf16.mxu0 0
    %2021 = vmatpush1.bf16.xpose.msra.mxu0 0
    %2022 = vmatprep.subr.bf16.mxu0 0
    %2023 = vmatpush1.bf16.xpose.msra.mxu0 0
    %2024 = vmatprep.subr.bf16.mxu0 0
    %2025 = vmatpush1.bf16.xpose.msra.mxu0 %v2008
    %2026 = vmatprep.subr.bf16.mxu0 0
    %2027 = vmatpush2.bf16.xpose.msra.mxu0 0
    %2028 = vmatprep.subr.bf16.mxu0 0
    %2029 = vmatpush2.bf16.xpose.msra.mxu0 0
    %2030 = vmatprep.subr.bf16.mxu0 0
    %2031 = vmatpush2.bf16.xpose.msra.mxu0 0
    %2032 = vmatprep.subr.bf16.mxu0 0
    %2033 = vmatpush2.bf16.xpose.msra.mxu0 0
    %2034 = vmatprep.subr.bf16.mxu0 0
    %2035 = vmatpush2.bf16.xpose.msra.mxu0 0
    %2036 = vmatprep.subr.bf16.mxu0 0
    %2037 = vmatpush2.bf16.xpose.msra.mxu0 0
    %2038 = vmatprep.subr.bf16.mxu0 0
    %2039 = vmatpush2.bf16.xpose.msra.mxu0 0
    %2040 = vmatprep.subr.bf16.mxu0 0
    %2041 = vmatpush2.bf16.xpose.msra.mxu0 0
    %2042 = vmatprep.mubr.bf16.mxu0 0
    %2043 = vmatmul.mubr.bf16.gmra.mxu0 %v2005
    %v2044 = vpop.f32.mrf.mxu0
    %v2045 = vadd.f32 %v1360, %v2044
    %v2046 = vpop.f32.mrf.mxu0
    %v2047 = vpop.f32.mrf.mxu0
    %v2048 = vpop.f32.mrf.mxu0
    %2049 = vdwg.mxu0
    %v2050 = vmul.f32 %v1995, 1.442695
    %v2051 = vpow.pop %v2050
    %v2052 = vmul.f32 %v2045, 1.442695
    %v2053 = vpow.pop %v2052
    %v2054 = vsel %vm181, %v2051, 0.0
    %2055 = vadd.xlane.f32.xlu0 %v2054
    %v2056 = vpop.xlane.xlu0 %2055
    %v2057 = vsel %vm181, %v2053, 0.0
    %2058 = vadd.xlane.f32.xlu0 %v2057
    %v2059 = vpop.xlane.xlu0 %2058
    %v2060 = vrcp.pop %v2056
    %v2061 = vrcp.pop %v2059
    %v2062 = vmul.f32 %v2051, %v2060
    %v2063 = vmul.f32 %v2053, %v2061
    %v2064 = vpack.c.bf16 %v2062, %v2062
    %v2065 = vpack.c.bf16 %v2063, %v2063
    %2066 = vrot.lane.b32.xlu0 %v1306, 72
    %v2067 = vpop.permute.xlu0 %2066
    %v2069 = vsel %vm181, %v2064, 0
    %v2072 = vsel %vm299, %v2067, 0
    %2074 = vmatprep.subr.bf16.mxu0 0
    %2075 = vmatpush1.bf16.msra.mxu0 0
    %2076 = vmatprep.subr.bf16.mxu0 0
    %2077 = vmatpush1.bf16.msra.mxu0 0
    %2078 = vmatprep.subr.bf16.mxu0 0
    %2079 = vmatpush1.bf16.msra.mxu0 0
    %2080 = vmatprep.subr.bf16.mxu0 0
    %2081 = vmatpush1.bf16.msra.mxu0 0
    %2082 = vmatprep.subr.bf16.mxu0 0
    %2083 = vmatpush1.bf16.msra.mxu0 0
    %2084 = vmatprep.subr.bf16.mxu0 0
    %2085 = vmatpush1.bf16.msra.mxu0 0
    %2086 = vmatprep.subr.bf16.mxu0 0
    %2087 = vmatpush1.bf16.msra.mxu0 0
    %2088 = vmatprep.subr.bf16.mxu0 0
    %2089 = vmatpush1.bf16.msra.mxu0 %v2072
    %2090 = vmatprep.subr.bf16.mxu0 0
    %2091 = vmatpush2.bf16.msra.mxu0 0
    %2092 = vmatprep.subr.bf16.mxu0 0
    %2093 = vmatpush2.bf16.msra.mxu0 0
    %2094 = vmatprep.subr.bf16.mxu0 0
    %2095 = vmatpush2.bf16.msra.mxu0 0
    %2096 = vmatprep.subr.bf16.mxu0 0
    %2097 = vmatpush2.bf16.msra.mxu0 0
    %2098 = vmatprep.subr.bf16.mxu0 0
    %2099 = vmatpush2.bf16.msra.mxu0 0
    %2100 = vmatprep.subr.bf16.mxu0 0
    %2101 = vmatpush2.bf16.msra.mxu0 0
    %2102 = vmatprep.subr.bf16.mxu0 0
    %2103 = vmatpush2.bf16.msra.mxu0 0
    %2104 = vmatprep.subr.bf16.mxu0 0
    %2105 = vmatpush2.bf16.msra.mxu0 0
    %2106 = vmatprep.mubr.bf16.mxu0 0
    %2107 = vmatmul.mubr.bf16.gmra.mxu0 %v2069
    %v2108 = vpop.f32.mrf.mxu0
    %v2109 = vadd.f32 0.0, %v2108
    %v2110 = vpop.f32.mrf.mxu0
    %v2111 = vpop.f32.mrf.mxu0
    %v2112 = vpop.f32.mrf.mxu0
    %2113 = vdwg.mxu0
    %2114 = vrot.lane.b32.xlu0 %v1307, 72
    %v2115 = vpop.permute.xlu0 %2114
    %v2117 = vsel %vm181, %v2065, 0
    %v2120 = vsel %vm299, %v2115, 0
    %2122 = vmatprep.subr.bf16.mxu0 0
    %2123 = vmatpush1.bf16.msra.mxu0 0
    %2124 = vmatprep.subr.bf16.mxu0 0
    %2125 = vmatpush1.bf16.msra.mxu0 0
    %2126 = vmatprep.subr.bf16.mxu0 0
    %2127 = vmatpush1.bf16.msra.mxu0 0
    %2128 = vmatprep.subr.bf16.mxu0 0
    %2129 = vmatpush1.bf16.msra.mxu0 0
    %2130 = vmatprep.subr.bf16.mxu0 0
    %2131 = vmatpush1.bf16.msra.mxu0 0
    %2132 = vmatprep.subr.bf16.mxu0 0
    %2133 = vmatpush1.bf16.msra.mxu0 0
    %2134 = vmatprep.subr.bf16.mxu0 0
    %2135 = vmatpush1.bf16.msra.mxu0 0
    %2136 = vmatprep.subr.bf16.mxu0 0
    %2137 = vmatpush1.bf16.msra.mxu0 %v2120
    %2138 = vmatprep.subr.bf16.mxu0 0
    %2139 = vmatpush2.bf16.msra.mxu0 0
    %2140 = vmatprep.subr.bf16.mxu0 0
    %2141 = vmatpush2.bf16.msra.mxu0 0
    %2142 = vmatprep.subr.bf16.mxu0 0
    %2143 = vmatpush2.bf16.msra.mxu0 0
    %2144 = vmatprep.subr.bf16.mxu0 0
    %2145 = vmatpush2.bf16.msra.mxu0 0
    %2146 = vmatprep.subr.bf16.mxu0 0
    %2147 = vmatpush2.bf16.msra.mxu0 0
    %2148 = vmatprep.subr.bf16.mxu0 0
    %2149 = vmatpush2.bf16.msra.mxu0 0
    %2150 = vmatprep.subr.bf16.mxu0 0
    %2151 = vmatpush2.bf16.msra.mxu0 0
    %2152 = vmatprep.subr.bf16.mxu0 0
    %2153 = vmatpush2.bf16.msra.mxu0 0
    %2154 = vmatprep.mubr.bf16.mxu0 0
    %2155 = vmatmul.mubr.bf16.gmra.mxu0 %v2117
    %v2156 = vpop.f32.mrf.mxu0
    %v2157 = vadd.f32 0.0, %v2156
    %v2158 = vpop.f32.mrf.mxu0
    %v2159 = vpop.f32.mrf.mxu0
    %v2160 = vpop.f32.mrf.mxu0
    %2161 = vdwg.mxu0
    %2164 = vrot.lane.b32.xlu0 %v1685, 8
    %v2165 = vpop.permute.xlu0 %2164
    %2166 = vrot.lane.b32.xlu0 %v1733, 8
    %v2167 = vpop.permute.xlu0 %2166
    %2172 = vrot.lane.b32.xlu0 %v1897, 16
    %v2173 = vpop.permute.xlu0 %2172
    %2174 = vrot.lane.b32.xlu0 %v1945, 16
    %v2175 = vpop.permute.xlu0 %2174
    %2180 = vrot.lane.b32.xlu0 %v2109, 24
    %v2181 = vpop.permute.xlu0 %2180
    %2182 = vrot.lane.b32.xlu0 %v2157, 24
    %v2183 = vpop.permute.xlu0 %2182
    %v2186 = vsel %vm181, %v1468, %v2165
    %v2187 = vsel %vm181, %v1517, %v2167
    %v2188 = vsel %vm1056, %v2186, %v2173
    %v2189 = vsel %vm1056, %v2187, %v2175
    %v2190 = vsel %vm1059, %v2188, %v2181
    %v2191 = vsel %vm1059, %v2189, %v2183
    %v2192 = vpack.c.bf16 %v2191, %v2190
    %v2193 = vlaneseq
    %v2194 = vshrl.u32 %v2193, 7
    %v2195 = vsub.s32 7, %v2194
    %v2196 = vrot.slane %v76, %v2195
    %v2201 = vunpack.c.l.b16 %v1298
    %v2202 = vunpack.c.l.b16 %v1299
    %v2203 = vunpack.c.l.b16 %v1300
    %v2204 = vunpack.c.l.b16 %v1301
    %v2205 = vpack.c.b16 %v2202, %v2201
    %v2206 = vpack.c.b16 %v2204, %v2203
    %2207 = vrot.lane.b32.xlu0 %v2205, 96
    %v2208 = vpop.permute.xlu0 %2207
    %2209 = vrot.lane.b32.xlu0 %v2206, 96
    %v2210 = vpop.permute.xlu0 %2209
    %v2214 = vsel %vm97, %v2192, 0
    %2216 = vmatprep.subr.bf16.mxu0 0
    %2217 = vmatpush1.bf16.msra.mxu0 0
    %2218 = vmatprep.subr.bf16.mxu0 0
    %2219 = vmatpush1.bf16.msra.mxu0 0
    %2220 = vmatprep.subr.bf16.mxu0 0
    %2221 = vmatpush1.bf16.msra.mxu0 0
    %2222 = vmatprep.subr.bf16.mxu0 0
    %2223 = vmatpush1.bf16.msra.mxu0 0
    %2224 = vmatprep.subr.bf16.mxu0 0
    %2225 = vmatpush1.bf16.msra.mxu0 0
    %2226 = vmatprep.subr.bf16.mxu0 0
    %2227 = vmatpush1.bf16.msra.mxu0 0
    %2228 = vmatprep.subr.bf16.mxu0 0
    %2229 = vmatpush1.bf16.msra.mxu0 %v2210
    %2230 = vmatprep.subr.bf16.mxu0 0
    %2231 = vmatpush1.bf16.msra.mxu0 %v2208
    %2232 = vmatprep.subr.bf16.mxu0 0
    %2233 = vmatpush2.bf16.msra.mxu0 0
    %2234 = vmatprep.subr.bf16.mxu0 0
    %2235 = vmatpush2.bf16.msra.mxu0 0
    %2236 = vmatprep.subr.bf16.mxu0 0
    %2237 = vmatpush2.bf16.msra.mxu0 0
    %2238 = vmatprep.subr.bf16.mxu0 0
    %2239 = vmatpush2.bf16.msra.mxu0 0
    %2240 = vmatprep.subr.bf16.mxu0 0
    %2241 = vmatpush2.bf16.msra.mxu0 0
    %2242 = vmatprep.subr.bf16.mxu0 0
    %2243 = vmatpush2.bf16.msra.mxu0 0
    %2244 = vmatprep.subr.bf16.mxu0 0
    %2245 = vmatpush2.bf16.msra.mxu0 0
    %2246 = vmatprep.subr.bf16.mxu0 0
    %2247 = vmatpush2.bf16.msra.mxu0 0
    %2248 = vmatprep.mubr.bf16.mxu0 0
    %2249 = vmatmul.mubr.bf16.gmra.mxu0 %v2214
    %v2250 = vpop.f32.mrf.mxu0
    %v2251 = vadd.f32 %v2196, %v2250
    %v2252 = vpop.f32.mrf.mxu0
    %v2253 = vpop.f32.mrf.mxu0
    %v2254 = vadd.f32 %v2196, %v2253
    %v2255 = vpop.f32.mrf.mxu0
    %2256 = vdwg.mxu0
    %v2257 = vadd.f32 %v1162, %v2251
    %v2258 = vadd.f32 %v1163, %v2254
    %v2259 = vsel %vm97, %v2257, 0.0
    %2260 = vadd.xlane.f32.xlu0 %v2259
    %v2261 = vpop.xlane.xlu0 %2260
    %v2262 = vsel %vm97, %v2258, 0.0
    %2263 = vadd.xlane.f32.xlu0 %v2262
    %v2264 = vpop.xlane.xlu0 %2263
    %v2265 = vmul.f32 %v2261, %v1131
    %v2266 = vmul.f32 %v2264, %v1131
    %v2267 = vsub.f32 %v2257, %v2265
    %v2268 = vsub.f32 %v2258, %v2266
    %v2269 = vmul.f32 %v2267, %v2267
    %v2270 = vmul.f32 %v2268, %v2268
    %v2271 = vsel %vm97, %v2269, 0.0
    %2272 = vadd.xlane.f32.xlu0 %v2271
    %v2273 = vpop.xlane.xlu0 %2272
    %v2274 = vsel %vm97, %v2270, 0.0
    %2275 = vadd.xlane.f32.xlu0 %v2274
    %v2276 = vpop.xlane.xlu0 %2275
    %v2277 = vmul.f32 %v2273, %v1131
    %v2278 = vmul.f32 %v2276, %v1131
    %v2279 = vadd.f32 %v2277, 1e-05
    %v2280 = vadd.f32 %v2278, 1e-05
    %v2281 = vrsqrt.pop %v2279
    %v2282 = vrsqrt.pop %v2280
    %v2283 = vmul.f32 %v2267, %v2281
    %v2284 = vmul.f32 %v2268, %v2282
    %v2285 = vlaneseq
    %v2286 = vshrl.u32 %v2285, 7
    %v2287 = vsub.s32 3, %v2286
    %v2288 = vrot.slane %v77, %v2287
    %v2289 = vmul.f32 %v2283, %v2288
    %v2290 = vmul.f32 %v2284, %v2288
    %v2291 = vlaneseq
    %v2292 = vshrl.u32 %v2291, 7
    %v2293 = vsub.s32 6, %v2292
    %v2294 = vrot.slane %v77, %v2293
    %v2295 = vadd.f32 %v2289, %v2294
    %v2296 = vadd.f32 %v2290, %v2294
    %v2297 = vpack.c.bf16 %v2296, %v2295
    %v2298 = vld [vmem:[#allocation7 + $0x30] sm:$0xf]
    %v2299 = vld [vmem:[#allocation7 + $0x34] sm:$0xf]
    %v2300 = vld [vmem:[#allocation7 + $0x38] sm:$0xf]
    %v2301 = vld [vmem:[#allocation7 + $0x3c] sm:$0xf]
    %v2302 = vlaneseq
    %v2303 = vshrl.u32 %v2302, 7
    %v2304 = vsub.s32 0, %v2303
    %v2305 = vrot.slane %v77, %v2304
    %v2310 = vunpack.c.l.b16 %v2298
    %v2311 = vunpack.c.l.b16 %v2299
    %v2312 = vunpack.c.l.b16 %v2300
    %v2313 = vunpack.c.l.b16 %v2301
    %v2314 = vpack.c.b16 %v2311, %v2310
    %v2315 = vpack.c.b16 %v2313, %v2312
    %v2319 = vsel %vm97, %v2297, 0
    %2321 = vmatprep.subr.bf16.mxu0 0
    %2322 = vmatpush1.bf16.msra.mxu0 0
    %2323 = vmatprep.subr.bf16.mxu0 0
    %2324 = vmatpush1.bf16.msra.mxu0 0
    %2325 = vmatprep.subr.bf16.mxu0 0
    %2326 = vmatpush1.bf16.msra.mxu0 0
    %2327 = vmatprep.subr.bf16.mxu0 0
    %2328 = vmatpush1.bf16.msra.mxu0 0
    %2329 = vmatprep.subr.bf16.mxu0 0
    %2330 = vmatpush1.bf16.msra.mxu0 0
    %2331 = vmatprep.subr.bf16.mxu0 0
    %2332 = vmatpush1.bf16.msra.mxu0 0
    %2333 = vmatprep.subr.bf16.mxu0 0
    %2334 = vmatpush1.bf16.msra.mxu0 %v2315
    %2335 = vmatprep.subr.bf16.mxu0 0
    %2336 = vmatpush1.bf16.msra.mxu0 %v2314
    %2337 = vmatprep.subr.bf16.mxu0 0
    %2338 = vmatpush2.bf16.msra.mxu0 0
    %2339 = vmatprep.subr.bf16.mxu0 0
    %2340 = vmatpush2.bf16.msra.mxu0 0
    %2341 = vmatprep.subr.bf16.mxu0 0
    %2342 = vmatpush2.bf16.msra.mxu0 0
    %2343 = vmatprep.subr.bf16.mxu0 0
    %2344 = vmatpush2.bf16.msra.mxu0 0
    %2345 = vmatprep.subr.bf16.mxu0 0
    %2346 = vmatpush2.bf16.msra.mxu0 0
    %2347 = vmatprep.subr.bf16.mxu0 0
    %2348 = vmatpush2.bf16.msra.mxu0 0
    %2349 = vmatprep.subr.bf16.mxu0 0
    %2350 = vmatpush2.bf16.msra.mxu0 0
    %2351 = vmatprep.subr.bf16.mxu0 0
    %2352 = vmatpush2.bf16.msra.mxu0 0
    %2353 = vmatprep.mubr.bf16.mxu0 0
    %2354 = vmatmul.mubr.bf16.gmra.mxu0 %v2319
    %v2355 = vpop.f32.mrf.mxu0
    %v2356 = vadd.f32 %v2305, %v2355
    %v2357 = vpop.f32.mrf.mxu0
    %v2358 = vpop.f32.mrf.mxu0
    %v2359 = vadd.f32 %v2305, %v2358
    %v2360 = vpop.f32.mrf.mxu0
    %2361 = vdwg.mxu0
    %v2362 = vmax.f32 %v2356, 0.0
    %v2363 = vmax.f32 %v2359, 0.0
    %v2364 = vpack.c.bf16 %v2363, %v2362
    %v2365 = vld [vmem:[#allocation7 + $0x40] sm:$0xf]
    %v2366 = vld [vmem:[#allocation7 + $0x44] sm:$0xf]
    %v2367 = vld [vmem:[#allocation7 + $0x48] sm:$0xf]
    %v2368 = vld [vmem:[#allocation7 + $0x4c] sm:$0xf]
    %v2369 = vld [vmem:[#allocation7 + $0x50] sm:$0xf]
    %v2370 = vld [vmem:[#allocation7 + $0x54] sm:$0xf]
    %v2371 = vld [vmem:[#allocation7 + $0x58] sm:$0xf]
    %v2372 = vld [vmem:[#allocation7 + $0x5c] sm:$0xf]
    %v2373 = vlaneseq
    %v2374 = vshrl.u32 %v2373, 7
    %v2375 = vsub.s32 1, %v2374
    %v2376 = vrot.slane %v77, %v2375
    %v2385 = vunpack.c.l.b16 %v2365
    %v2386 = vunpack.c.l.b16 %v2366
    %v2387 = vunpack.c.l.b16 %v2367
    %v2388 = vunpack.c.l.b16 %v2368
    %v2389 = vunpack.c.l.b16 %v2369
    %v2390 = vunpack.c.l.b16 %v2370
    %v2391 = vunpack.c.l.b16 %v2371
    %v2392 = vunpack.c.l.b16 %v2372
    %v2393 = vpack.c.b16 %v2386, %v2385
    %v2394 = vpack.c.b16 %v2388, %v2387
    %v2395 = vpack.c.b16 %v2390, %v2389
    %v2396 = vpack.c.b16 %v2392, %v2391
    %vm2401 = vcmask 523264
    %v2403 = vsel %vm2401, %v2364, 0
    %2405 = vmatprep.subr.bf16.mxu0 0
    %2406 = vmatpush1.bf16.msra.mxu0 0
    %2407 = vmatprep.subr.bf16.mxu0 0
    %2408 = vmatpush1.bf16.msra.mxu0 0
    %2409 = vmatprep.subr.bf16.mxu0 0
    %2410 = vmatpush1.bf16.msra.mxu0 0
    %2411 = vmatprep.subr.bf16.mxu0 0
    %2412 = vmatpush1.bf16.msra.mxu0 0
    %2413 = vmatprep.subr.bf16.mxu0 0
    %2414 = vmatpush1.bf16.msra.mxu0 %v2396
    %2415 = vmatprep.subr.bf16.mxu0 0
    %2416 = vmatpush1.bf16.msra.mxu0 %v2395
    %2417 = vmatprep.subr.bf16.mxu0 0
    %2418 = vmatpush1.bf16.msra.mxu0 %v2394
    %2419 = vmatprep.subr.bf16.mxu0 0
    %2420 = vmatpush1.bf16.msra.mxu0 %v2393
    %2421 = vmatprep.subr.bf16.mxu0 0
    %2422 = vmatpush2.bf16.msra.mxu0 0
    %2423 = vmatprep.subr.bf16.mxu0 0
    %2424 = vmatpush2.bf16.msra.mxu0 0
    %2425 = vmatprep.subr.bf16.mxu0 0
    %2426 = vmatpush2.bf16.msra.mxu0 0
    %2427 = vmatprep.subr.bf16.mxu0 0
    %2428 = vmatpush2.bf16.msra.mxu0 0
    %2429 = vmatprep.subr.bf16.mxu0 0
    %2430 = vmatpush2.bf16.msra.mxu0 0
    %2431 = vmatprep.subr.bf16.mxu0 0
    %2432 = vmatpush2.bf16.msra.mxu0 0
    %2433 = vmatprep.subr.bf16.mxu0 0
    %2434 = vmatpush2.bf16.msra.mxu0 0
    %2435 = vmatprep.subr.bf16.mxu0 0
    %2436 = vmatpush2.bf16.msra.mxu0 0
    %2437 = vmatprep.mubr.bf16.mxu0 0
    %2438 = vmatmul.mubr.bf16.gmra.mxu0 %v2403
    %v2439 = vpop.f32.mrf.mxu0
    %v2440 = vadd.f32 %v2376, %v2439
    %v2441 = vpop.f32.mrf.mxu0
    %v2442 = vpop.f32.mrf.mxu0
    %v2443 = vadd.f32 %v2376, %v2442
    %v2444 = vpop.f32.mrf.mxu0
    %2445 = vdwg.mxu0
    %v2446 = vadd.f32 %v2295, %v2440
    %v2447 = vadd.f32 %v2296, %v2443
    %v2448 = vsel %vm97, %v2446, 0.0
    %2449 = vadd.xlane.f32.xlu0 %v2448
    %v2450 = vpop.xlane.xlu0 %2449
    %v2451 = vsel %vm97, %v2447, 0.0
    %2452 = vadd.xlane.f32.xlu0 %v2451
    %v2453 = vpop.xlane.xlu0 %2452
    %v2454 = vmul.f32 %v2450, %v1131
    %v2455 = vmul.f32 %v2453, %v1131
    %v2456 = vsub.f32 %v2446, %v2454
    %v2457 = vsub.f32 %v2447, %v2455
    %v2458 = vmul.f32 %v2456, %v2456
    %v2459 = vmul.f32 %v2457, %v2457
    %v2460 = vsel %vm97, %v2458, 0.0
    %2461 = vadd.xlane.f32.xlu0 %v2460
    %v2462 = vpop.xlane.xlu0 %2461
    %v2463 = vsel %vm97, %v2459, 0.0
    %2464 = vadd.xlane.f32.xlu0 %v2463
    %v2465 = vpop.xlane.xlu0 %2464
    %v2466 = vmul.f32 %v2462, %v1131
    %v2467 = vmul.f32 %v2465, %v1131
    %v2468 = vadd.f32 %v2466, 1e-05
    %v2469 = vadd.f32 %v2467, 1e-05
    %v2470 = vrsqrt.pop %v2468
    %v2471 = vrsqrt.pop %v2469
    %v2472 = vmul.f32 %v2456, %v2470
    %v2473 = vmul.f32 %v2457, %v2471
    %v2474 = vlaneseq
    %v2475 = vshrl.u32 %v2474, 7
    %v2476 = vsub.s32 4, %v2475
    %v2477 = vrot.slane %v77, %v2476
    %v2478 = vmul.f32 %v2472, %v2477
    %v2479 = vmul.f32 %v2473, %v2477
    %v2480 = vlaneseq
    %v2481 = vshrl.u32 %v2480, 7
    %v2482 = vsub.s32 7, %v2481
    %v2483 = vrot.slane %v77, %v2482
    %v2484 = vadd.f32 %v2478, %v2483
    %v2485 = vadd.f32 %v2479, %v2483
    %2486 = vst.msk [vmem:[#allocation10] sm:$0xff] %vm97, %v2484
    %2487 = vst.msk [vmem:[#allocation10 + $0x8] sm:$0xff] %vm97, %v2485
    // Predicated region
    $region34: #{tpu_custom_call.1} parent=1 // pred_check
      _
    $region35: #{tpu_custom_call.1} parent=1 // pred_check_branch
      %2489 = sbr.rel (0) target = $region37
    $region36: #{tpu_custom_call.1} parent=1 // pred_region
      %s2491 = ssub.s32 256, 256
      %2492 = vsyncadd [#allocation4], %s2491
      %s2493 = sshll.u32 [#allocation10], 4
      %s2494 = int_to_ptr.vmem [resolvable:$true] %s2493
      %2499 = dma.vmem_to_hbm [thread:$0]  %s2494, 256, %s4, [#allocation4], 128, 128, 8
    $region37: #{tpu_custom_call.1} parent=1 // pred_fallthru
      _
    // Predicated region
    $region38: #{tpu_custom_call.1} parent=1 // pred_check
      _
    $region39: #{tpu_custom_call.1} parent=1 // pred_check_branch
      %2501 = sbr.rel (0) target = $region41
    $region40: #{tpu_custom_call.1} parent=1 // pred_region
      %2502 = dma.done [#allocation4], 256
    $region41: #{tpu_custom_call.1} parent=1 // pred_fallthru
      _
    %2503 = vsyncpa [#allocation3], 1
    %2504 = vsyncpa [#allocation6], 1
    %2505 = vsyncpa [#allocation9], 1
    %2506 = vsyncpa [#allocation4], 1

</llo_original>
